<compile_context>
chip_gen: v7x
topology: tpu7x:2x2x1
jax: 0.10.0
libtpu: 0.0.40
codegen_flags: <defaults>
</compile_context>

<pallas_src>
import functools
import numpy as np
import jax
import jax.numpy as jnp
from jax.experimental import pallas as pl
from jax.experimental.pallas import tpu as pltpu

# ----------------------------- model sizes ---------------------------------
LATENT = 32
ACTION = 4
HIDDEN = 128                       # 4*H gate slices stay 128-lane aligned
NUM_LAYERS = 2
GAUSS = 5
SEQ_LEN = 8                        # dim0 of action  -> LSTM "batch" N
BS = 4                             # dim1 of action  -> LSTM "time"  T
IN_DIM = LATENT + ACTION
STRIDE = GAUSS * LATENT            # 160
HEAD_DIM = 2 * STRIDE + GAUSS      # 325 (mus | sigmas | pi)
HEAD_PAD = 384                     # 325 padded up to a multiple of 128

_PREC = jax.lax.Precision.HIGHEST  # reference only


# ------------------------------- kernel ------------------------------------
def mdlstm_kernel(x_ref, h0_ref, c0_ref,
                  wih0_ref, b0_ref,
                  wcomb_ref, b1_ref,
                  wh_hbm_ref, bh_ref,
                  out_ref,
                  gx0_ref, hs_ref, wh_vmem_ref, head_sem,
                  *, n_time, n_batch):
    H = HIDDEN

    # ---- prefetch the GMM-head weights; hidden under the serial recurrence --
    head_cp = pltpu.make_async_copy(wh_hbm_ref, wh_vmem_ref, head_sem)
    head_cp.start()

    # ---- prologue: batched layer-0 input projection over all T*N rows ------
    gx0_ref[...] = jnp.dot(x_ref[...], wih0_ref[...],
                           preferred_element_type=jnp.float32) + b0_ref[...]

    wcomb = wcomb_ref[...]                                   # (2H, 8H) bf16
    b1 = b1_ref[...]                                         # (1, 4H)  f32

    h0 = h0_ref[0]                                           # (N, H) layer-0 h
    c0 = c0_ref[0]
    h1 = h0_ref[1]                                           # (N, H) layer-1 h
    c1 = c0_ref[1]

    def sigmoid(x):                                          # 1 EUP op (tanh)
        return 0.5 * jnp.tanh(0.5 * x) + 0.5

    def gates_to_hc(gates, c_prev):
        i_g = sigmoid(gates[:, 0 * H:1 * H])
        f_g = sigmoid(gates[:, 1 * H:2 * H])
        g_g = jnp.tanh(gates[:, 2 * H:3 * H])
        o_g = sigmoid(gates[:, 3 * H:4 * H])
        c_new = f_g * c_prev + i_g * g_g
        return o_g * jnp.tanh(c_new), c_new

    # rec0(0) = h0_init @ W_hh0^T via the fused weight (columns 4H:8H)
    xh = jnp.concatenate([h0, h1], axis=-1).astype(jnp.bfloat16)
    rec0 = jnp.dot(xh, wcomb, preferred_element_type=jnp.float32)[:, 4 * H:]

    # ---- serial recurrence: one dependent MXU op per step -------------------
    for t in range(n_time):                                  # fully unrolled
        g0 = gx0_ref[t * n_batch:(t + 1) * n_batch, :] + rec0
        h0, c0 = gates_to_hc(g0, c0)
        # fused (N,2H)@(2H,8H): layer-1 gates(t) | layer-0 recurrent term(t+1)
        xh = jnp.concatenate([h0, h1], axis=-1).astype(jnp.bfloat16)
        fused = jnp.dot(xh, wcomb, preferred_element_type=jnp.float32)
        g1 = fused[:, :4 * H] + b1
        rec0 = fused[:, 4 * H:]
        h1, c1 = gates_to_hc(g1, c1)
        hs_ref[t * n_batch:(t + 1) * n_batch, :] = h1.astype(jnp.bfloat16)

    # ---- batched GMM head: wait on the prefetched weights, one matmul -------
    head_cp.wait()
    slab = jnp.dot(hs_ref[...], wh_vmem_ref[...],
                   preferred_element_type=jnp.float32) + bh_ref[...]  # (T*N,384)

    # lanes: mus [0,160) | sigmas [160,320) | pi [320,325) | pad [325,384)
    out_ref[:, 0:128] = slab[:, 0:128]                       # pure mus lanes

    mid = slab[:, 128:256]                                   # mus tail + sigmas
    lane_mid = jax.lax.broadcasted_iota(jnp.int32, mid.shape, 1) + 128
    is_sig_mid = lane_mid >= STRIDE
    out_ref[:, 128:256] = jnp.where(
        is_sig_mid, jnp.exp(jnp.where(is_sig_mid, mid, 0.0)), mid)

    hi = slab[:, 256:384]                                    # sigmas tail + pi
    lane_hi = jax.lax.broadcasted_iota(jnp.int32, hi.shape, 1) + 256
    is_sig_hi = lane_hi < 2 * STRIDE
    is_pi_hi = (lane_hi >= 2 * STRIDE) & (lane_hi < HEAD_DIM)

    neg = jnp.float32(-1e30)
    pi_masked = jnp.where(is_pi_hi, hi, neg)                 # only 128 lanes
    m = jnp.max(pi_masked, axis=-1, keepdims=True)
    se = jnp.sum(jnp.exp(pi_masked - m), axis=-1, keepdims=True)
    lse = m + jnp.log(se)
    sig_hi = jnp.exp(jnp.where(is_sig_hi, hi, 0.0))
    out_ref[:, 256:384] = jnp.where(is_pi_hi, hi - lse,
                                    jnp.where(is_sig_hi, sig_hi, hi))


# ---------------------- one-time weight re-layout ---------------------------
def prepare_params(params):
    """Hoisted out of the per-call jit: run once, reuse the results."""
    H = HIDDEN
    wih0 = params["w_ih0"].T.astype(jnp.bfloat16)                       # (I, 4H)
    b0 = (params["b_ih0"] + params["b_hh0"]).reshape(1, -1).astype(jnp.float32)
    # W_comb = [[W_ih1^T, W_hh0^T], [W_hh1^T, 0]]  -> (2H, 8H)
    top = jnp.concatenate([params["w_ih1"].T, params["w_hh0"].T], axis=1)
    bot = jnp.concatenate(
        [params["w_hh1"].T, jnp.zeros((H, 4 * H), jnp.float32)], axis=1)
    w_comb = jnp.concatenate([top, bot], axis=0).astype(jnp.bfloat16)   # (2H,8H)
    b1 = (params["b_ih1"] + params["b_hh1"]).reshape(1, -1).astype(jnp.float32)
    w_head = jnp.zeros((H, HEAD_PAD), jnp.float32)
    w_head = w_head.at[:, :HEAD_DIM].set(params["gmm_w"].T).astype(jnp.bfloat16)
    b_head = jnp.zeros((1, HEAD_PAD), jnp.float32)
    b_head = b_head.at[:, :HEAD_DIM].set(params["gmm_b"])
    return {"wih0": wih0, "b0": b0, "w_comb": w_comb, "b1": b1,
            "w_head": w_head, "b_head": b_head}


# ------------------------------ wrapper -------------------------------------
@jax.jit
def mdlstm_forward(action, latent, prepped, h0, c0):
    """action: (seq_len, bs, ACTION), latent: (seq_len, bs, LATENT)."""
    seq_len, bs = action.shape[0], action.shape[1]
    N, T = seq_len, bs                                       # LSTM batch / time

    in_al = jnp.concatenate([action, latent], axis=-1).astype(jnp.float32)
    x_tni = jnp.transpose(in_al, (1, 0, 2))                  # (T, N, I) time-major
    x2d = x_tni.reshape(T * N, IN_DIM).astype(jnp.bfloat16)

    vmem = pl.BlockSpec(memory_space=pltpu.MemorySpace.VMEM)
    hbm = pl.BlockSpec(memory_space=pl.ANY)                  # head weights: prefetched

    # advisory cost estimate for XLA's surrounding scheduling
    flops = (2 * T * N * IN_DIM * 4 * HIDDEN
             + 2 * (T + 1) * N * 2 * HIDDEN * 8 * HIDDEN
             + 2 * T * N * HIDDEN * HEAD_PAD)
    transc = 2 * T * 5 * N * HIDDEN + 3 * T * N * 128
    bytes_acc = (2 * (IN_DIM * 4 * HIDDEN + 2 * HIDDEN * 8 * HIDDEN
                      + HIDDEN * HEAD_PAD + T * N * IN_DIM)
                 + 4 * (T * N * HEAD_PAD + 2 * 2 * N * HIDDEN + 12 * HIDDEN))
    cost = pl.CostEstimate(flops=flops, transcendentals=transc,
                           bytes_accessed=bytes_acc)

    slab = pl.pallas_call(
        functools.partial(mdlstm_kernel, n_time=T, n_batch=N),
        out_shape=jax.ShapeDtypeStruct((T * N, HEAD_PAD), jnp.float32),
        in_specs=[vmem, vmem, vmem,      # x, h0, c0
                  vmem, vmem,            # wih0, b0
                  vmem, vmem,            # w_comb, b1
                  hbm, vmem],            # w_head (prefetched), b_head
        out_specs=vmem,
        scratch_shapes=[
            pltpu.VMEM((T * N, 4 * HIDDEN), jnp.float32),    # gx0 staging
            pltpu.VMEM((T * N, HIDDEN), jnp.bfloat16),       # h1 outputs
            pltpu.VMEM((HIDDEN, HEAD_PAD), jnp.bfloat16),    # head-weight buffer
            pltpu.SemaphoreType.DMA,                         # head-weight DMA sem
        ],
        cost_estimate=cost,
    )(x2d,
      h0.astype(jnp.float32), c0.astype(jnp.float32),
      prepped["wih0"], prepped["b0"],
      prepped["w_comb"], prepped["b1"],
      prepped["w_head"], prepped["b_head"])

    # back to PyTorch (seq_len, bs, ...) convention and split the slab
    slab3 = jnp.transpose(slab.reshape(T, N, HEAD_PAD), (1, 0, 2))
    mus = slab3[:, :, :STRIDE].reshape(seq_len, bs, GAUSS, LATENT)
    sigmas = slab3[:, :, STRIDE:2 * STRIDE].reshape(seq_len, bs, GAUSS, LATENT)
    logpi = slab3[:, :, 2 * STRIDE:HEAD_DIM]
    return mus, sigmas, logpi


# --------------------------- pure-JAX reference ------------------------------
def mdlstm_reference(action, latent, params, h0, c0):
    x = jnp.concatenate([action, latent], axis=-1).astype(jnp.float32)  # (N,T,I)
    N, T, _ = x.shape
    h = [h0[l] for l in range(NUM_LAYERS)]
    c = [c0[l] for l in range(NUM_LAYERS)]
    wih = [params["w_ih0"], params["w_ih1"]]
    whh = [params["w_hh0"], params["w_hh1"]]
    bih = [params["b_ih0"], params["b_ih1"]]
    bhh = [params["b_hh0"], params["b_hh1"]]
    outs = []
    for t in range(T):
        inp = x[:, t, :]
        for l in range(NUM_LAYERS):
            gates = (jnp.dot(inp, wih[l].T, precision=_PREC)
                     + jnp.dot(h[l], whh[l].T, precision=_PREC)
                     + bih[l] + bhh[l])
            i_g = jax.nn.sigmoid(gates[:, :HIDDEN])
            f_g = jax.nn.sigmoid(gates[:, HIDDEN:2 * HIDDEN])
            g_g = jnp.tanh(gates[:, 2 * HIDDEN:3 * HIDDEN])
            o_g = jax.nn.sigmoid(gates[:, 3 * HIDDEN:])
            c[l] = f_g * c[l] + i_g * g_g
            h[l] = o_g * jnp.tanh(c[l])
            inp = h[l]
        outs.append(inp)
    outs = jnp.stack(outs, axis=1)                                     # (N,T,H)
    gmm = jnp.einsum("nth,oh->nto", outs, params["gmm_w"],
                     precision=_PREC) + params["gmm_b"]
    mus = gmm[:, :, :STRIDE].reshape(N, T, GAUSS, LATENT)
    sigmas = jnp.exp(gmm[:, :, STRIDE:2 * STRIDE]).reshape(N, T, GAUSS, LATENT)
    pi = gmm[:, :, 2 * STRIDE:2 * STRIDE + GAUSS]
    logpi = jax.nn.log_softmax(pi, axis=-1)
    return mus, sigmas, logpi


# --------------------------------- main --------------------------------------
if __name__ == "__main__":
    key = jax.random.PRNGKey(0)
    ks = jax.random.split(key, 16)
    kscale = 1.0 / np.sqrt(HIDDEN)
    u = lambda k, s: jax.random.uniform(k, s, jnp.float32, -kscale, kscale)

    params = {
        "w_ih0": u(ks[0], (4 * HIDDEN, IN_DIM)),
        "w_hh0": u(ks[1], (4 * HIDDEN, HIDDEN)),
        "b_ih0": u(ks[2], (4 * HIDDEN,)),
        "b_hh0": u(ks[3], (4 * HIDDEN,)),
        "w_ih1": u(ks[4], (4 * HIDDEN, HIDDEN)),
        "w_hh1": u(ks[5], (4 * HIDDEN, HIDDEN)),
        "b_ih1": u(ks[6], (4 * HIDDEN,)),
        "b_hh1": u(ks[7], (4 * HIDDEN,)),
        "gmm_w": u(ks[8], ((2 * LATENT + 1) * GAUSS, HIDDEN)),
        "gmm_b": u(ks[9], ((2 * LATENT + 1) * GAUSS,)),
    }

    # one-time weight re-layout (hoisted out of the per-call jit path)
    prepped = prepare_params(params)
    prepped = jax.tree_util.tree_map(jax.block_until_ready, prepped)

    # init_hs: randn hidden/cell; LSTM "batch" axis here is seq_len (see header)
    h0 = jax.random.normal(ks[10], (NUM_LAYERS, SEQ_LEN, HIDDEN), jnp.float32)
    c0 = jax.random.normal(ks[11], (NUM_LAYERS, SEQ_LEN, HIDDEN), jnp.float32)

    action = jax.random.normal(ks[12], (SEQ_LEN, BS, ACTION), jnp.float32)
    latent = jax.random.normal(ks[13], (SEQ_LEN, BS, LATENT), jnp.float32)

    mus, sigmas, logpi = mdlstm_forward(action, latent, prepped, h0, c0)
    jax.block_until_ready((mus, sigmas, logpi))

    mus_r, sig_r, logpi_r = mdlstm_reference(action, latent, params, h0, c0)
    np.testing.assert_allclose(np.asarray(mus), np.asarray(mus_r),
                               rtol=1e-2, atol=1e-2)
    np.testing.assert_allclose(np.asarray(sigmas), np.asarray(sig_r),
                               rtol=1e-2, atol=1e-2)
    np.testing.assert_allclose(np.asarray(logpi), np.asarray(logpi_r),
                               rtol=1e-2, atol=1e-2)

    print("KERNEL_OK")
</pallas_src>

<mosaic_0001>
module attributes {stable_mosaic.version = 11 : i64} {
  func.func @mdlstm_kernel(%arg0: memref<32x36xbf16, #tpu.memory_space<vmem>>, %arg1: memref<2x8x128xf32, #tpu.memory_space<vmem>>, %arg2: memref<2x8x128xf32, #tpu.memory_space<vmem>>, %arg3: memref<36x512xbf16, #tpu.memory_space<vmem>>, %arg4: memref<1x512xf32, #tpu.memory_space<vmem>>, %arg5: memref<256x1024xbf16, #tpu.memory_space<vmem>>, %arg6: memref<1x512xf32, #tpu.memory_space<vmem>>, %arg7: memref<128x384xbf16, #tpu.memory_space<any>>, %arg8: memref<1x384xf32, #tpu.memory_space<vmem>>, %arg9: memref<32x384xf32, #tpu.memory_space<vmem>>, %arg10: memref<32x512xf32, #tpu.memory_space<vmem>>, %arg11: memref<32x128xbf16, #tpu.memory_space<vmem>>, %arg12: memref<128x384xbf16, #tpu.memory_space<vmem>>, %arg13: memref<!tpu.dma_semaphore, #tpu.memory_space<semaphore_mem>>) attributes {dimension_semantics = [], scalar_prefetch = 0 : i64, scratch_operands = 4 : i64, tpu.core_type = #tpu.core_type<tc>} {
    tpu.enqueue_dma source(%arg7 : memref<128x384xbf16, #tpu.memory_space<any>>) target(%arg12 : memref<128x384xbf16, #tpu.memory_space<vmem>>) target_semaphore(%arg13 : memref<!tpu.dma_semaphore, #tpu.memory_space<semaphore_mem>>)
    %c0 = arith.constant 0 : index
    %c0_0 = arith.constant 0 : index
    %0 = vector.load %arg0[%c0, %c0_0] : memref<32x36xbf16, #tpu.memory_space<vmem>>, vector<32x36xbf16>
    %c0_1 = arith.constant 0 : index
    %c0_2 = arith.constant 0 : index
    %1 = vector.load %arg3[%c0_1, %c0_2] : memref<36x512xbf16, #tpu.memory_space<vmem>>, vector<36x512xbf16>
    %cst = arith.constant dense<0.000000e+00> : vector<32x512xf32>
    %2 = tpu.matmul %0, %1, %cst {dimension_numbers = #tpu.dot_dimension_numbers<[1], [0], [0], [1], [0, 0, 1, 1], [], []>} : vector<32x36xbf16>, vector<36x512xbf16>, vector<32x512xf32> -> vector<32x512xf32>
    %c0_3 = arith.constant 0 : index
    %c0_4 = arith.constant 0 : index
    %3 = vector.load %arg4[%c0_3, %c0_4] : memref<1x512xf32, #tpu.memory_space<vmem>>, vector<1x512xf32>
    %4 = vector.broadcast %3 : vector<1x512xf32> to vector<32x512xf32>
    %5 = arith.addf %2, %4 : vector<32x512xf32>
    %c0_5 = arith.constant 0 : index
    %c0_6 = arith.constant 0 : index
    %6 = vector.load %arg10[%c0_5, %c0_6] : memref<32x512xf32, #tpu.memory_space<vmem>>, vector<32x512xf32>
    tpu.vector_store %arg10[%c0_5, %c0_6], %5 {strides = array<i32>} : memref<32x512xf32, #tpu.memory_space<vmem>>, vector<32x512xf32>,
    %c0_7 = arith.constant 0 : index
    %c0_8 = arith.constant 0 : index
    %7 = vector.load %arg5[%c0_7, %c0_8] : memref<256x1024xbf16, #tpu.memory_space<vmem>>, vector<256x1024xbf16>
    %c0_9 = arith.constant 0 : index
    %c0_10 = arith.constant 0 : index
    %8 = vector.load %arg6[%c0_9, %c0_10] : memref<1x512xf32, #tpu.memory_space<vmem>>, vector<1x512xf32>
    %c0_11 = arith.constant 0 : index
    %c0_12 = arith.constant 0 : index
    %c0_13 = arith.constant 0 : index
    %9 = vector.load %arg1[%c0_11, %c0_12, %c0_13] : memref<2x8x128xf32, #tpu.memory_space<vmem>>, vector<1x8x128xf32>
    %10 = vector.shape_cast %9 : vector<1x8x128xf32> to vector<8x128xf32>
    %c0_14 = arith.constant 0 : index
    %c0_15 = arith.constant 0 : index
    %c0_16 = arith.constant 0 : index
    %11 = vector.load %arg2[%c0_14, %c0_15, %c0_16] : memref<2x8x128xf32, #tpu.memory_space<vmem>>, vector<1x8x128xf32>
    %12 = vector.shape_cast %11 : vector<1x8x128xf32> to vector<8x128xf32>
    %c1 = arith.constant 1 : index
    %c0_17 = arith.constant 0 : index
    %c0_18 = arith.constant 0 : index
    %13 = vector.load %arg1[%c1, %c0_17, %c0_18] : memref<2x8x128xf32, #tpu.memory_space<vmem>>, vector<1x8x128xf32>
    %14 = vector.shape_cast %13 : vector<1x8x128xf32> to vector<8x128xf32>
    %c1_19 = arith.constant 1 : index
    %c0_20 = arith.constant 0 : index
    %c0_21 = arith.constant 0 : index
    %15 = vector.load %arg2[%c1_19, %c0_20, %c0_21] : memref<2x8x128xf32, #tpu.memory_space<vmem>>, vector<1x8x128xf32>
    %16 = vector.shape_cast %15 : vector<1x8x128xf32> to vector<8x128xf32>
    %17 = tpu.concatenate %10, %14 in 1 : vector<8x128xf32>, vector<8x128xf32> -> vector<8x256xf32>
    %18 = arith.truncf %17 : vector<8x256xf32> to vector<8x256xbf16>
    %cst_22 = arith.constant dense<0.000000e+00> : vector<8x1024xf32>
    %19 = tpu.matmul %18, %7, %cst_22 {dimension_numbers = #tpu.dot_dimension_numbers<[1], [0], [0], [1], [0, 0, 1, 1], [], []>} : vector<8x256xbf16>, vector<256x1024xbf16>, vector<8x1024xf32> -> vector<8x1024xf32>
    %20 = vector.extract_strided_slice %19 {offsets = [0, 512], sizes = [8, 512], strides = [1, 1]} : vector<8x1024xf32> to vector<8x512xf32>
    %c0_23 = arith.constant 0 : index
    %c0_24 = arith.constant 0 : index
    %21 = vector.load %arg10[%c0_23, %c0_24] : memref<32x512xf32, #tpu.memory_space<vmem>>, vector<8x512xf32>
    %22 = arith.addf %21, %20 : vector<8x512xf32>
    %23 = vector.extract_strided_slice %22 {offsets = [0, 0], sizes = [8, 128], strides = [1, 1]} : vector<8x512xf32> to vector<8x128xf32>
    %cst_25 = arith.constant 5.000000e-01 : f32
    %24 = vector.broadcast %cst_25 : f32 to vector<8x128xf32>
    %25 = arith.mulf %24, %23 : vector<8x128xf32>
    %26 = math.tanh %25 : vector<8x128xf32>
    %cst_26 = arith.constant 5.000000e-01 : f32
    %27 = vector.broadcast %cst_26 : f32 to vector<8x128xf32>
    %28 = arith.mulf %27, %26 : vector<8x128xf32>
    %cst_27 = arith.constant 5.000000e-01 : f32
    %29 = vector.broadcast %cst_27 : f32 to vector<8x128xf32>
    %30 = arith.addf %28, %29 : vector<8x128xf32>
    %31 = vector.extract_strided_slice %22 {offsets = [0, 128], sizes = [8, 128], strides = [1, 1]} : vector<8x512xf32> to vector<8x128xf32>
    %cst_28 = arith.constant 5.000000e-01 : f32
    %32 = vector.broadcast %cst_28 : f32 to vector<8x128xf32>
    %33 = arith.mulf %32, %31 : vector<8x128xf32>
    %34 = math.tanh %33 : vector<8x128xf32>
    %cst_29 = arith.constant 5.000000e-01 : f32
    %35 = vector.broadcast %cst_29 : f32 to vector<8x128xf32>
    %36 = arith.mulf %35, %34 : vector<8x128xf32>
    %cst_30 = arith.constant 5.000000e-01 : f32
    %37 = vector.broadcast %cst_30 : f32 to vector<8x128xf32>
    %38 = arith.addf %36, %37 : vector<8x128xf32>
    %39 = vector.extract_strided_slice %22 {offsets = [0, 256], sizes = [8, 128], strides = [1, 1]} : vector<8x512xf32> to vector<8x128xf32>
    %40 = math.tanh %39 : vector<8x128xf32>
    %41 = vector.extract_strided_slice %22 {offsets = [0, 384], sizes = [8, 128], strides = [1, 1]} : vector<8x512xf32> to vector<8x128xf32>
    %cst_31 = arith.constant 5.000000e-01 : f32
    %42 = vector.broadcast %cst_31 : f32 to vector<8x128xf32>
    %43 = arith.mulf %42, %41 : vector<8x128xf32>
    %44 = math.tanh %43 : vector<8x128xf32>
    %cst_32 = arith.constant 5.000000e-01 : f32
    %45 = vector.broadcast %cst_32 : f32 to vector<8x128xf32>
    %46 = arith.mulf %45, %44 : vector<8x128xf32>
    %cst_33 = arith.constant 5.000000e-01 : f32
    %47 = vector.broadcast %cst_33 : f32 to vector<8x128xf32>
    %48 = arith.addf %46, %47 : vector<8x128xf32>
    %49 = arith.mulf %38, %12 : vector<8x128xf32>
    %50 = arith.mulf %30, %40 : vector<8x128xf32>
    %51 = arith.addf %49, %50 : vector<8x128xf32>
    %52 = math.tanh %51 : vector<8x128xf32>
    %53 = arith.mulf %48, %52 : vector<8x128xf32>
    %54 = tpu.concatenate %53, %14 in 1 : vector<8x128xf32>, vector<8x128xf32> -> vector<8x256xf32>
    %55 = arith.truncf %54 : vector<8x256xf32> to vector<8x256xbf16>
    %cst_34 = arith.constant dense<0.000000e+00> : vector<8x1024xf32>
    %56 = tpu.matmul %55, %7, %cst_34 {dimension_numbers = #tpu.dot_dimension_numbers<[1], [0], [0], [1], [0, 0, 1, 1], [], []>} : vector<8x256xbf16>, vector<256x1024xbf16>, vector<8x1024xf32> -> vector<8x1024xf32>
    %57 = vector.extract_strided_slice %56 {offsets = [0, 0], sizes = [8, 512], strides = [1, 1]} : vector<8x1024xf32> to vector<8x512xf32>
    %58 = vector.broadcast %8 : vector<1x512xf32> to vector<8x512xf32>
    %59 = arith.addf %57, %58 : vector<8x512xf32>
    %60 = vector.extract_strided_slice %56 {offsets = [0, 512], sizes = [8, 512], strides = [1, 1]} : vector<8x1024xf32> to vector<8x512xf32>
    %61 = vector.extract_strided_slice %59 {offsets = [0, 0], sizes = [8, 128], strides = [1, 1]} : vector<8x512xf32> to vector<8x128xf32>
    %cst_35 = arith.constant 5.000000e-01 : f32
    %62 = vector.broadcast %cst_35 : f32 to vector<8x128xf32>
    %63 = arith.mulf %62, %61 : vector<8x128xf32>
    %64 = math.tanh %63 : vector<8x128xf32>
    %cst_36 = arith.constant 5.000000e-01 : f32
    %65 = vector.broadcast %cst_36 : f32 to vector<8x128xf32>
    %66 = arith.mulf %65, %64 : vector<8x128xf32>
    %cst_37 = arith.constant 5.000000e-01 : f32
    %67 = vector.broadcast %cst_37 : f32 to vector<8x128xf32>
    %68 = arith.addf %66, %67 : vector<8x128xf32>
    %69 = vector.extract_strided_slice %59 {offsets = [0, 128], sizes = [8, 128], strides = [1, 1]} : vector<8x512xf32> to vector<8x128xf32>
    %cst_38 = arith.constant 5.000000e-01 : f32
    %70 = vector.broadcast %cst_38 : f32 to vector<8x128xf32>
    %71 = arith.mulf %70, %69 : vector<8x128xf32>
    %72 = math.tanh %71 : vector<8x128xf32>
    %cst_39 = arith.constant 5.000000e-01 : f32
    %73 = vector.broadcast %cst_39 : f32 to vector<8x128xf32>
    %74 = arith.mulf %73, %72 : vector<8x128xf32>
    %cst_40 = arith.constant 5.000000e-01 : f32
    %75 = vector.broadcast %cst_40 : f32 to vector<8x128xf32>
    %76 = arith.addf %74, %75 : vector<8x128xf32>
    %77 = vector.extract_strided_slice %59 {offsets = [0, 256], sizes = [8, 128], strides = [1, 1]} : vector<8x512xf32> to vector<8x128xf32>
    %78 = math.tanh %77 : vector<8x128xf32>
    %79 = vector.extract_strided_slice %59 {offsets = [0, 384], sizes = [8, 128], strides = [1, 1]} : vector<8x512xf32> to vector<8x128xf32>
    %cst_41 = arith.constant 5.000000e-01 : f32
    %80 = vector.broadcast %cst_41 : f32 to vector<8x128xf32>
    %81 = arith.mulf %80, %79 : vector<8x128xf32>
    %82 = math.tanh %81 : vector<8x128xf32>
    %cst_42 = arith.constant 5.000000e-01 : f32
    %83 = vector.broadcast %cst_42 : f32 to vector<8x128xf32>
    %84 = arith.mulf %83, %82 : vector<8x128xf32>
    %cst_43 = arith.constant 5.000000e-01 : f32
    %85 = vector.broadcast %cst_43 : f32 to vector<8x128xf32>
    %86 = arith.addf %84, %85 : vector<8x128xf32>
    %87 = arith.mulf %76, %16 : vector<8x128xf32>
    %88 = arith.mulf %68, %78 : vector<8x128xf32>
    %89 = arith.addf %87, %88 : vector<8x128xf32>
    %90 = math.tanh %89 : vector<8x128xf32>
    %91 = arith.mulf %86, %90 : vector<8x128xf32>
    %92 = arith.truncf %91 : vector<8x128xf32> to vector<8x128xbf16>
    %c0_44 = arith.constant 0 : index
    %c0_45 = arith.constant 0 : index
    %93 = vector.load %arg11[%c0_44, %c0_45] : memref<32x128xbf16, #tpu.memory_space<vmem>>, vector<8x128xbf16>
    tpu.vector_store %arg11[%c0_44, %c0_45], %92 {strides = array<i32>} : memref<32x128xbf16, #tpu.memory_space<vmem>>, vector<8x128xbf16>,
    %c8 = arith.constant 8 : index
    %c0_46 = arith.constant 0 : index
    %94 = vector.load %arg10[%c8, %c0_46] : memref<32x512xf32, #tpu.memory_space<vmem>>, vector<8x512xf32>
    %95 = arith.addf %94, %60 : vector<8x512xf32>
    %96 = vector.extract_strided_slice %95 {offsets = [0, 0], sizes = [8, 128], strides = [1, 1]} : vector<8x512xf32> to vector<8x128xf32>
    %cst_47 = arith.constant 5.000000e-01 : f32
    %97 = vector.broadcast %cst_47 : f32 to vector<8x128xf32>
    %98 = arith.mulf %97, %96 : vector<8x128xf32>
    %99 = math.tanh %98 : vector<8x128xf32>
    %cst_48 = arith.constant 5.000000e-01 : f32
    %100 = vector.broadcast %cst_48 : f32 to vector<8x128xf32>
    %101 = arith.mulf %100, %99 : vector<8x128xf32>
    %cst_49 = arith.constant 5.000000e-01 : f32
    %102 = vector.broadcast %cst_49 : f32 to vector<8x128xf32>
    %103 = arith.addf %101, %102 : vector<8x128xf32>
    %104 = vector.extract_strided_slice %95 {offsets = [0, 128], sizes = [8, 128], strides = [1, 1]} : vector<8x512xf32> to vector<8x128xf32>
    %cst_50 = arith.constant 5.000000e-01 : f32
    %105 = vector.broadcast %cst_50 : f32 to vector<8x128xf32>
    %106 = arith.mulf %105, %104 : vector<8x128xf32>
    %107 = math.tanh %106 : vector<8x128xf32>
    %cst_51 = arith.constant 5.000000e-01 : f32
    %108 = vector.broadcast %cst_51 : f32 to vector<8x128xf32>
    %109 = arith.mulf %108, %107 : vector<8x128xf32>
    %cst_52 = arith.constant 5.000000e-01 : f32
    %110 = vector.broadcast %cst_52 : f32 to vector<8x128xf32>
    %111 = arith.addf %109, %110 : vector<8x128xf32>
    %112 = vector.extract_strided_slice %95 {offsets = [0, 256], sizes = [8, 128], strides = [1, 1]} : vector<8x512xf32> to vector<8x128xf32>
    %113 = math.tanh %112 : vector<8x128xf32>
    %114 = vector.extract_strided_slice %95 {offsets = [0, 384], sizes = [8, 128], strides = [1, 1]} : vector<8x512xf32> to vector<8x128xf32>
    %cst_53 = arith.constant 5.000000e-01 : f32
    %115 = vector.broadcast %cst_53 : f32 to vector<8x128xf32>
    %116 = arith.mulf %115, %114 : vector<8x128xf32>
    %117 = math.tanh %116 : vector<8x128xf32>
    %cst_54 = arith.constant 5.000000e-01 : f32
    %118 = vector.broadcast %cst_54 : f32 to vector<8x128xf32>
    %119 = arith.mulf %118, %117 : vector<8x128xf32>
    %cst_55 = arith.constant 5.000000e-01 : f32
    %120 = vector.broadcast %cst_55 : f32 to vector<8x128xf32>
    %121 = arith.addf %119, %120 : vector<8x128xf32>
    %122 = arith.mulf %111, %51 : vector<8x128xf32>
    %123 = arith.mulf %103, %113 : vector<8x128xf32>
    %124 = arith.addf %122, %123 : vector<8x128xf32>
    %125 = math.tanh %124 : vector<8x128xf32>
    %126 = arith.mulf %121, %125 : vector<8x128xf32>
    %127 = tpu.concatenate %126, %91 in 1 : vector<8x128xf32>, vector<8x128xf32> -> vector<8x256xf32>
    %128 = arith.truncf %127 : vector<8x256xf32> to vector<8x256xbf16>
    %cst_56 = arith.constant dense<0.000000e+00> : vector<8x1024xf32>
    %129 = tpu.matmul %128, %7, %cst_56 {dimension_numbers = #tpu.dot_dimension_numbers<[1], [0], [0], [1], [0, 0, 1, 1], [], []>} : vector<8x256xbf16>, vector<256x1024xbf16>, vector<8x1024xf32> -> vector<8x1024xf32>
    %130 = vector.extract_strided_slice %129 {offsets = [0, 0], sizes = [8, 512], strides = [1, 1]} : vector<8x1024xf32> to vector<8x512xf32>
    %131 = vector.broadcast %8 : vector<1x512xf32> to vector<8x512xf32>
    %132 = arith.addf %130, %131 : vector<8x512xf32>
    %133 = vector.extract_strided_slice %129 {offsets = [0, 512], sizes = [8, 512], strides = [1, 1]} : vector<8x1024xf32> to vector<8x512xf32>
    %134 = vector.extract_strided_slice %132 {offsets = [0, 0], sizes = [8, 128], strides = [1, 1]} : vector<8x512xf32> to vector<8x128xf32>
    %cst_57 = arith.constant 5.000000e-01 : f32
    %135 = vector.broadcast %cst_57 : f32 to vector<8x128xf32>
    %136 = arith.mulf %135, %134 : vector<8x128xf32>
    %137 = math.tanh %136 : vector<8x128xf32>
    %cst_58 = arith.constant 5.000000e-01 : f32
    %138 = vector.broadcast %cst_58 : f32 to vector<8x128xf32>
    %139 = arith.mulf %138, %137 : vector<8x128xf32>
    %cst_59 = arith.constant 5.000000e-01 : f32
    %140 = vector.broadcast %cst_59 : f32 to vector<8x128xf32>
    %141 = arith.addf %139, %140 : vector<8x128xf32>
    %142 = vector.extract_strided_slice %132 {offsets = [0, 128], sizes = [8, 128], strides = [1, 1]} : vector<8x512xf32> to vector<8x128xf32>
    %cst_60 = arith.constant 5.000000e-01 : f32
    %143 = vector.broadcast %cst_60 : f32 to vector<8x128xf32>
    %144 = arith.mulf %143, %142 : vector<8x128xf32>
    %145 = math.tanh %144 : vector<8x128xf32>
    %cst_61 = arith.constant 5.000000e-01 : f32
    %146 = vector.broadcast %cst_61 : f32 to vector<8x128xf32>
    %147 = arith.mulf %146, %145 : vector<8x128xf32>
    %cst_62 = arith.constant 5.000000e-01 : f32
    %148 = vector.broadcast %cst_62 : f32 to vector<8x128xf32>
    %149 = arith.addf %147, %148 : vector<8x128xf32>
    %150 = vector.extract_strided_slice %132 {offsets = [0, 256], sizes = [8, 128], strides = [1, 1]} : vector<8x512xf32> to vector<8x128xf32>
    %151 = math.tanh %150 : vector<8x128xf32>
    %152 = vector.extract_strided_slice %132 {offsets = [0, 384], sizes = [8, 128], strides = [1, 1]} : vector<8x512xf32> to vector<8x128xf32>
    %cst_63 = arith.constant 5.000000e-01 : f32
    %153 = vector.broadcast %cst_63 : f32 to vector<8x128xf32>
    %154 = arith.mulf %153, %152 : vector<8x128xf32>
    %155 = math.tanh %154 : vector<8x128xf32>
    %cst_64 = arith.constant 5.000000e-01 : f32
    %156 = vector.broadcast %cst_64 : f32 to vector<8x128xf32>
    %157 = arith.mulf %156, %155 : vector<8x128xf32>
    %cst_65 = arith.constant 5.000000e-01 : f32
    %158 = vector.broadcast %cst_65 : f32 to vector<8x128xf32>
    %159 = arith.addf %157, %158 : vector<8x128xf32>
    %160 = arith.mulf %149, %89 : vector<8x128xf32>
    %161 = arith.mulf %141, %151 : vector<8x128xf32>
    %162 = arith.addf %160, %161 : vector<8x128xf32>
    %163 = math.tanh %162 : vector<8x128xf32>
    %164 = arith.mulf %159, %163 : vector<8x128xf32>
    %165 = arith.truncf %164 : vector<8x128xf32> to vector<8x128xbf16>
    %c8_66 = arith.constant 8 : index
    %c0_67 = arith.constant 0 : index
    %166 = vector.load %arg11[%c8_66, %c0_67] : memref<32x128xbf16, #tpu.memory_space<vmem>>, vector<8x128xbf16>
    tpu.vector_store %arg11[%c8_66, %c0_67], %165 {strides = array<i32>} : memref<32x128xbf16, #tpu.memory_space<vmem>>, vector<8x128xbf16>,
    %c16 = arith.constant 16 : index
    %c0_68 = arith.constant 0 : index
    %167 = vector.load %arg10[%c16, %c0_68] : memref<32x512xf32, #tpu.memory_space<vmem>>, vector<8x512xf32>
    %168 = arith.addf %167, %133 : vector<8x512xf32>
    %169 = vector.extract_strided_slice %168 {offsets = [0, 0], sizes = [8, 128], strides = [1, 1]} : vector<8x512xf32> to vector<8x128xf32>
    %cst_69 = arith.constant 5.000000e-01 : f32
    %170 = vector.broadcast %cst_69 : f32 to vector<8x128xf32>
    %171 = arith.mulf %170, %169 : vector<8x128xf32>
    %172 = math.tanh %171 : vector<8x128xf32>
    %cst_70 = arith.constant 5.000000e-01 : f32
    %173 = vector.broadcast %cst_70 : f32 to vector<8x128xf32>
    %174 = arith.mulf %173, %172 : vector<8x128xf32>
    %cst_71 = arith.constant 5.000000e-01 : f32
    %175 = vector.broadcast %cst_71 : f32 to vector<8x128xf32>
    %176 = arith.addf %174, %175 : vector<8x128xf32>
    %177 = vector.extract_strided_slice %168 {offsets = [0, 128], sizes = [8, 128], strides = [1, 1]} : vector<8x512xf32> to vector<8x128xf32>
    %cst_72 = arith.constant 5.000000e-01 : f32
    %178 = vector.broadcast %cst_72 : f32 to vector<8x128xf32>
    %179 = arith.mulf %178, %177 : vector<8x128xf32>
    %180 = math.tanh %179 : vector<8x128xf32>
    %cst_73 = arith.constant 5.000000e-01 : f32
    %181 = vector.broadcast %cst_73 : f32 to vector<8x128xf32>
    %182 = arith.mulf %181, %180 : vector<8x128xf32>
    %cst_74 = arith.constant 5.000000e-01 : f32
    %183 = vector.broadcast %cst_74 : f32 to vector<8x128xf32>
    %184 = arith.addf %182, %183 : vector<8x128xf32>
    %185 = vector.extract_strided_slice %168 {offsets = [0, 256], sizes = [8, 128], strides = [1, 1]} : vector<8x512xf32> to vector<8x128xf32>
    %186 = math.tanh %185 : vector<8x128xf32>
    %187 = vector.extract_strided_slice %168 {offsets = [0, 384], sizes = [8, 128], strides = [1, 1]} : vector<8x512xf32> to vector<8x128xf32>
    %cst_75 = arith.constant 5.000000e-01 : f32
    %188 = vector.broadcast %cst_75 : f32 to vector<8x128xf32>
    %189 = arith.mulf %188, %187 : vector<8x128xf32>
    %190 = math.tanh %189 : vector<8x128xf32>
    %cst_76 = arith.constant 5.000000e-01 : f32
    %191 = vector.broadcast %cst_76 : f32 to vector<8x128xf32>
    %192 = arith.mulf %191, %190 : vector<8x128xf32>
    %cst_77 = arith.constant 5.000000e-01 : f32
    %193 = vector.broadcast %cst_77 : f32 to vector<8x128xf32>
    %194 = arith.addf %192, %193 : vector<8x128xf32>
    %195 = arith.mulf %184, %124 : vector<8x128xf32>
    %196 = arith.mulf %176, %186 : vector<8x128xf32>
    %197 = arith.addf %195, %196 : vector<8x128xf32>
    %198 = math.tanh %197 : vector<8x128xf32>
    %199 = arith.mulf %194, %198 : vector<8x128xf32>
    %200 = tpu.concatenate %199, %164 in 1 : vector<8x128xf32>, vector<8x128xf32> -> vector<8x256xf32>
    %201 = arith.truncf %200 : vector<8x256xf32> to vector<8x256xbf16>
    %cst_78 = arith.constant dense<0.000000e+00> : vector<8x1024xf32>
    %202 = tpu.matmul %201, %7, %cst_78 {dimension_numbers = #tpu.dot_dimension_numbers<[1], [0], [0], [1], [0, 0, 1, 1], [], []>} : vector<8x256xbf16>, vector<256x1024xbf16>, vector<8x1024xf32> -> vector<8x1024xf32>
    %203 = vector.extract_strided_slice %202 {offsets = [0, 0], sizes = [8, 512], strides = [1, 1]} : vector<8x1024xf32> to vector<8x512xf32>
    %204 = vector.broadcast %8 : vector<1x512xf32> to vector<8x512xf32>
    %205 = arith.addf %203, %204 : vector<8x512xf32>
    %206 = vector.extract_strided_slice %202 {offsets = [0, 512], sizes = [8, 512], strides = [1, 1]} : vector<8x1024xf32> to vector<8x512xf32>
    %207 = vector.extract_strided_slice %205 {offsets = [0, 0], sizes = [8, 128], strides = [1, 1]} : vector<8x512xf32> to vector<8x128xf32>
    %cst_79 = arith.constant 5.000000e-01 : f32
    %208 = vector.broadcast %cst_79 : f32 to vector<8x128xf32>
    %209 = arith.mulf %208, %207 : vector<8x128xf32>
    %210 = math.tanh %209 : vector<8x128xf32>
    %cst_80 = arith.constant 5.000000e-01 : f32
    %211 = vector.broadcast %cst_80 : f32 to vector<8x128xf32>
    %212 = arith.mulf %211, %210 : vector<8x128xf32>
    %cst_81 = arith.constant 5.000000e-01 : f32
    %213 = vector.broadcast %cst_81 : f32 to vector<8x128xf32>
    %214 = arith.addf %212, %213 : vector<8x128xf32>
    %215 = vector.extract_strided_slice %205 {offsets = [0, 128], sizes = [8, 128], strides = [1, 1]} : vector<8x512xf32> to vector<8x128xf32>
    %cst_82 = arith.constant 5.000000e-01 : f32
    %216 = vector.broadcast %cst_82 : f32 to vector<8x128xf32>
    %217 = arith.mulf %216, %215 : vector<8x128xf32>
    %218 = math.tanh %217 : vector<8x128xf32>
    %cst_83 = arith.constant 5.000000e-01 : f32
    %219 = vector.broadcast %cst_83 : f32 to vector<8x128xf32>
    %220 = arith.mulf %219, %218 : vector<8x128xf32>
    %cst_84 = arith.constant 5.000000e-01 : f32
    %221 = vector.broadcast %cst_84 : f32 to vector<8x128xf32>
    %222 = arith.addf %220, %221 : vector<8x128xf32>
    %223 = vector.extract_strided_slice %205 {offsets = [0, 256], sizes = [8, 128], strides = [1, 1]} : vector<8x512xf32> to vector<8x128xf32>
    %224 = math.tanh %223 : vector<8x128xf32>
    %225 = vector.extract_strided_slice %205 {offsets = [0, 384], sizes = [8, 128], strides = [1, 1]} : vector<8x512xf32> to vector<8x128xf32>
    %cst_85 = arith.constant 5.000000e-01 : f32
    %226 = vector.broadcast %cst_85 : f32 to vector<8x128xf32>
    %227 = arith.mulf %226, %225 : vector<8x128xf32>
    %228 = math.tanh %227 : vector<8x128xf32>
    %cst_86 = arith.constant 5.000000e-01 : f32
    %229 = vector.broadcast %cst_86 : f32 to vector<8x128xf32>
    %230 = arith.mulf %229, %228 : vector<8x128xf32>
    %cst_87 = arith.constant 5.000000e-01 : f32
    %231 = vector.broadcast %cst_87 : f32 to vector<8x128xf32>
    %232 = arith.addf %230, %231 : vector<8x128xf32>
    %233 = arith.mulf %222, %162 : vector<8x128xf32>
    %234 = arith.mulf %214, %224 : vector<8x128xf32>
    %235 = arith.addf %233, %234 : vector<8x128xf32>
    %236 = math.tanh %235 : vector<8x128xf32>
    %237 = arith.mulf %232, %236 : vector<8x128xf32>
    %238 = arith.truncf %237 : vector<8x128xf32> to vector<8x128xbf16>
    %c16_88 = arith.constant 16 : index
    %c0_89 = arith.constant 0 : index
    %239 = vector.load %arg11[%c16_88, %c0_89] : memref<32x128xbf16, #tpu.memory_space<vmem>>, vector<8x128xbf16>
    tpu.vector_store %arg11[%c16_88, %c0_89], %238 {strides = array<i32>} : memref<32x128xbf16, #tpu.memory_space<vmem>>, vector<8x128xbf16>,
    %c24 = arith.constant 24 : index
    %c0_90 = arith.constant 0 : index
    %240 = vector.load %arg10[%c24, %c0_90] : memref<32x512xf32, #tpu.memory_space<vmem>>, vector<8x512xf32>
    %241 = arith.addf %240, %206 : vector<8x512xf32>
    %242 = vector.extract_strided_slice %241 {offsets = [0, 0], sizes = [8, 128], strides = [1, 1]} : vector<8x512xf32> to vector<8x128xf32>
    %cst_91 = arith.constant 5.000000e-01 : f32
    %243 = vector.broadcast %cst_91 : f32 to vector<8x128xf32>
    %244 = arith.mulf %243, %242 : vector<8x128xf32>
    %245 = math.tanh %244 : vector<8x128xf32>
    %cst_92 = arith.constant 5.000000e-01 : f32
    %246 = vector.broadcast %cst_92 : f32 to vector<8x128xf32>
    %247 = arith.mulf %246, %245 : vector<8x128xf32>
    %cst_93 = arith.constant 5.000000e-01 : f32
    %248 = vector.broadcast %cst_93 : f32 to vector<8x128xf32>
    %249 = arith.addf %247, %248 : vector<8x128xf32>
    %250 = vector.extract_strided_slice %241 {offsets = [0, 128], sizes = [8, 128], strides = [1, 1]} : vector<8x512xf32> to vector<8x128xf32>
    %cst_94 = arith.constant 5.000000e-01 : f32
    %251 = vector.broadcast %cst_94 : f32 to vector<8x128xf32>
    %252 = arith.mulf %251, %250 : vector<8x128xf32>
    %253 = math.tanh %252 : vector<8x128xf32>
    %cst_95 = arith.constant 5.000000e-01 : f32
    %254 = vector.broadcast %cst_95 : f32 to vector<8x128xf32>
    %255 = arith.mulf %254, %253 : vector<8x128xf32>
    %cst_96 = arith.constant 5.000000e-01 : f32
    %256 = vector.broadcast %cst_96 : f32 to vector<8x128xf32>
    %257 = arith.addf %255, %256 : vector<8x128xf32>
    %258 = vector.extract_strided_slice %241 {offsets = [0, 256], sizes = [8, 128], strides = [1, 1]} : vector<8x512xf32> to vector<8x128xf32>
    %259 = math.tanh %258 : vector<8x128xf32>
    %260 = vector.extract_strided_slice %241 {offsets = [0, 384], sizes = [8, 128], strides = [1, 1]} : vector<8x512xf32> to vector<8x128xf32>
    %cst_97 = arith.constant 5.000000e-01 : f32
    %261 = vector.broadcast %cst_97 : f32 to vector<8x128xf32>
    %262 = arith.mulf %261, %260 : vector<8x128xf32>
    %263 = math.tanh %262 : vector<8x128xf32>
    %cst_98 = arith.constant 5.000000e-01 : f32
    %264 = vector.broadcast %cst_98 : f32 to vector<8x128xf32>
    %265 = arith.mulf %264, %263 : vector<8x128xf32>
    %cst_99 = arith.constant 5.000000e-01 : f32
    %266 = vector.broadcast %cst_99 : f32 to vector<8x128xf32>
    %267 = arith.addf %265, %266 : vector<8x128xf32>
    %268 = arith.mulf %257, %197 : vector<8x128xf32>
    %269 = arith.mulf %249, %259 : vector<8x128xf32>
    %270 = arith.addf %268, %269 : vector<8x128xf32>
    %271 = math.tanh %270 : vector<8x128xf32>
    %272 = arith.mulf %267, %271 : vector<8x128xf32>
    %273 = tpu.concatenate %272, %237 in 1 : vector<8x128xf32>, vector<8x128xf32> -> vector<8x256xf32>
    %274 = arith.truncf %273 : vector<8x256xf32> to vector<8x256xbf16>
    %cst_100 = arith.constant dense<0.000000e+00> : vector<8x1024xf32>
    %275 = tpu.matmul %274, %7, %cst_100 {dimension_numbers = #tpu.dot_dimension_numbers<[1], [0], [0], [1], [0, 0, 1, 1], [], []>} : vector<8x256xbf16>, vector<256x1024xbf16>, vector<8x1024xf32> -> vector<8x1024xf32>
    %276 = vector.extract_strided_slice %275 {offsets = [0, 0], sizes = [8, 512], strides = [1, 1]} : vector<8x1024xf32> to vector<8x512xf32>
    %277 = vector.broadcast %8 : vector<1x512xf32> to vector<8x512xf32>
    %278 = arith.addf %276, %277 : vector<8x512xf32>
    %279 = vector.extract_strided_slice %278 {offsets = [0, 0], sizes = [8, 128], strides = [1, 1]} : vector<8x512xf32> to vector<8x128xf32>
    %cst_101 = arith.constant 5.000000e-01 : f32
    %280 = vector.broadcast %cst_101 : f32 to vector<8x128xf32>
    %281 = arith.mulf %280, %279 : vector<8x128xf32>
    %282 = math.tanh %281 : vector<8x128xf32>
    %cst_102 = arith.constant 5.000000e-01 : f32
    %283 = vector.broadcast %cst_102 : f32 to vector<8x128xf32>
    %284 = arith.mulf %283, %282 : vector<8x128xf32>
    %cst_103 = arith.constant 5.000000e-01 : f32
    %285 = vector.broadcast %cst_103 : f32 to vector<8x128xf32>
    %286 = arith.addf %284, %285 : vector<8x128xf32>
    %287 = vector.extract_strided_slice %278 {offsets = [0, 128], sizes = [8, 128], strides = [1, 1]} : vector<8x512xf32> to vector<8x128xf32>
    %cst_104 = arith.constant 5.000000e-01 : f32
    %288 = vector.broadcast %cst_104 : f32 to vector<8x128xf32>
    %289 = arith.mulf %288, %287 : vector<8x128xf32>
    %290 = math.tanh %289 : vector<8x128xf32>
    %cst_105 = arith.constant 5.000000e-01 : f32
    %291 = vector.broadcast %cst_105 : f32 to vector<8x128xf32>
    %292 = arith.mulf %291, %290 : vector<8x128xf32>
    %cst_106 = arith.constant 5.000000e-01 : f32
    %293 = vector.broadcast %cst_106 : f32 to vector<8x128xf32>
    %294 = arith.addf %292, %293 : vector<8x128xf32>
    %295 = vector.extract_strided_slice %278 {offsets = [0, 256], sizes = [8, 128], strides = [1, 1]} : vector<8x512xf32> to vector<8x128xf32>
    %296 = math.tanh %295 : vector<8x128xf32>
    %297 = vector.extract_strided_slice %278 {offsets = [0, 384], sizes = [8, 128], strides = [1, 1]} : vector<8x512xf32> to vector<8x128xf32>
    %cst_107 = arith.constant 5.000000e-01 : f32
    %298 = vector.broadcast %cst_107 : f32 to vector<8x128xf32>
    %299 = arith.mulf %298, %297 : vector<8x128xf32>
    %300 = math.tanh %299 : vector<8x128xf32>
    %cst_108 = arith.constant 5.000000e-01 : f32
    %301 = vector.broadcast %cst_108 : f32 to vector<8x128xf32>
    %302 = arith.mulf %301, %300 : vector<8x128xf32>
    %cst_109 = arith.constant 5.000000e-01 : f32
    %303 = vector.broadcast %cst_109 : f32 to vector<8x128xf32>
    %304 = arith.addf %302, %303 : vector<8x128xf32>
    %305 = arith.mulf %294, %235 : vector<8x128xf32>
    %306 = arith.mulf %286, %296 : vector<8x128xf32>
    %307 = arith.addf %305, %306 : vector<8x128xf32>
    %308 = math.tanh %307 : vector<8x128xf32>
    %309 = arith.mulf %304, %308 : vector<8x128xf32>
    %310 = arith.truncf %309 : vector<8x128xf32> to vector<8x128xbf16>
    %c24_110 = arith.constant 24 : index
    %c0_111 = arith.constant 0 : index
    %311 = vector.load %arg11[%c24_110, %c0_111] : memref<32x128xbf16, #tpu.memory_space<vmem>>, vector<8x128xbf16>
    tpu.vector_store %arg11[%c24_110, %c0_111], %310 {strides = array<i32>} : memref<32x128xbf16, #tpu.memory_space<vmem>>, vector<8x128xbf16>,
    tpu.wait_dma2 semaphore(%arg13 : memref<!tpu.dma_semaphore, #tpu.memory_space<semaphore_mem>>) src(%arg7 : memref<128x384xbf16, #tpu.memory_space<any>>) dst(%arg12 : memref<128x384xbf16, #tpu.memory_space<vmem>>)
    %c0_112 = arith.constant 0 : index
    %c0_113 = arith.constant 0 : index
    %312 = vector.load %arg11[%c0_112, %c0_113] : memref<32x128xbf16, #tpu.memory_space<vmem>>, vector<32x128xbf16>
    %c0_114 = arith.constant 0 : index
    %c0_115 = arith.constant 0 : index
    %313 = vector.load %arg12[%c0_114, %c0_115] : memref<128x384xbf16, #tpu.memory_space<vmem>>, vector<128x384xbf16>
    %cst_116 = arith.constant dense<0.000000e+00> : vector<32x384xf32>
    %314 = tpu.matmul %312, %313, %cst_116 {dimension_numbers = #tpu.dot_dimension_numbers<[1], [0], [0], [1], [0, 0, 1, 1], [], []>} : vector<32x128xbf16>, vector<128x384xbf16>, vector<32x384xf32> -> vector<32x384xf32>
    %c0_117 = arith.constant 0 : index
    %c0_118 = arith.constant 0 : index
    %315 = vector.load %arg8[%c0_117, %c0_118] : memref<1x384xf32, #tpu.memory_space<vmem>>, vector<1x384xf32>
    %316 = vector.broadcast %315 : vector<1x384xf32> to vector<32x384xf32>
    %317 = arith.addf %314, %316 : vector<32x384xf32>
    %318 = vector.extract_strided_slice %317 {offsets = [0, 0], sizes = [32, 128], strides = [1, 1]} : vector<32x384xf32> to vector<32x128xf32>
    %c0_119 = arith.constant 0 : index
    %c0_120 = arith.constant 0 : index
    %319 = vector.load %arg9[%c0_119, %c0_120] : memref<32x384xf32, #tpu.memory_space<vmem>>, vector<32x128xf32>
    tpu.vector_store %arg9[%c0_119, %c0_120], %318 {strides = array<i32>} : memref<32x384xf32, #tpu.memory_space<vmem>>, vector<32x128xf32>,
    %320 = vector.extract_strided_slice %317 {offsets = [0, 128], sizes = [32, 128], strides = [1, 1]} : vector<32x384xf32> to vector<32x128xf32>
    %321 = tpu.iota {dimensions = array<i32: 1>} : vector<32x128xi32>
    %c128_i32 = arith.constant 128 : i32
    %322 = vector.broadcast %c128_i32 : i32 to vector<32x128xi32>
    %323 = arith.addi %321, %322 : vector<32x128xi32>
    %c160_i32 = arith.constant 160 : i32
    %324 = vector.broadcast %c160_i32 : i32 to vector<32x128xi32>
    %325 = arith.cmpi sge, %323, %324 : vector<32x128xi32>
    %cst_121 = arith.constant 0.000000e+00 : f32
    %326 = vector.broadcast %cst_121 : f32 to vector<32x128xf32>
    %327 = arith.select %325, %320, %326 : vector<32x128xi1>, vector<32x128xf32>
    %328 = math.exp %327 : vector<32x128xf32>
    %329 = arith.select %325, %328, %320 : vector<32x128xi1>, vector<32x128xf32>
    %c0_122 = arith.constant 0 : index
    %c128 = arith.constant 128 : index
    %330 = vector.load %arg9[%c0_122, %c128] : memref<32x384xf32, #tpu.memory_space<vmem>>, vector<32x128xf32>
    tpu.vector_store %arg9[%c0_122, %c128], %329 {strides = array<i32>} : memref<32x384xf32, #tpu.memory_space<vmem>>, vector<32x128xf32>,
    %331 = vector.extract_strided_slice %317 {offsets = [0, 256], sizes = [32, 128], strides = [1, 1]} : vector<32x384xf32> to vector<32x128xf32>
    %332 = tpu.iota {dimensions = array<i32: 1>} : vector<32x128xi32>
    %c256_i32 = arith.constant 256 : i32
    %333 = vector.broadcast %c256_i32 : i32 to vector<32x128xi32>
    %334 = arith.addi %332, %333 : vector<32x128xi32>
    %c320_i32 = arith.constant 320 : i32
    %335 = vector.broadcast %c320_i32 : i32 to vector<32x128xi32>
    %336 = arith.cmpi slt, %334, %335 : vector<32x128xi32>
    %c320_i32_123 = arith.constant 320 : i32
    %337 = vector.broadcast %c320_i32_123 : i32 to vector<32x128xi32>
    %338 = arith.cmpi sge, %334, %337 : vector<32x128xi32>
    %c325_i32 = arith.constant 325 : i32
    %339 = vector.broadcast %c325_i32 : i32 to vector<32x128xi32>
    %340 = arith.cmpi slt, %334, %339 : vector<32x128xi32>
    %341 = arith.andi %338, %340 : vector<32x128xi1>
    %cst_124 = arith.constant -1.000000e+30 : f32
    %342 = vector.broadcast %cst_124 : f32 to vector<32x128xf32>
    %343 = arith.select %341, %331, %342 : vector<32x128xi1>, vector<32x128xf32>
    %cst_125 = arith.constant dense<0xFF800000> : vector<32xf32>
    %344 = vector.multi_reduction <maximumf>, %343, %cst_125 [1] : vector<32x128xf32> to vector<32xf32>
    %345 = vector.shape_cast %344 : vector<32xf32> to vector<32x1xf32>
    %346 = vector.broadcast %345 : vector<32x1xf32> to vector<32x128xf32>
    %347 = arith.subf %343, %346 : vector<32x128xf32>
    %348 = math.exp %347 : vector<32x128xf32>
    %cst_126 = arith.constant dense<0.000000e+00> : vector<32xf32>
    %349 = vector.multi_reduction <add>, %348, %cst_126 [1] : vector<32x128xf32> to vector<32xf32>
    %350 = vector.shape_cast %349 : vector<32xf32> to vector<32x1xf32>
    %351 = math.log %350 : vector<32x1xf32>
    %352 = arith.addf %345, %351 : vector<32x1xf32>
    %cst_127 = arith.constant 0.000000e+00 : f32
    %353 = vector.broadcast %cst_127 : f32 to vector<32x128xf32>
    %354 = arith.select %336, %331, %353 : vector<32x128xi1>, vector<32x128xf32>
    %355 = math.exp %354 : vector<32x128xf32>
    %356 = vector.broadcast %352 : vector<32x1xf32> to vector<32x128xf32>
    %357 = arith.subf %331, %356 : vector<32x128xf32>
    %358 = arith.select %336, %355, %331 : vector<32x128xi1>, vector<32x128xf32>
    %359 = arith.select %341, %357, %358 : vector<32x128xi1>, vector<32x128xf32>
    %c0_128 = arith.constant 0 : index
    %c256 = arith.constant 256 : index
    %360 = vector.load %arg9[%c0_128, %c256] : memref<32x384xf32, #tpu.memory_space<vmem>>, vector<32x128xf32>
    tpu.vector_store %arg9[%c0_128, %c256], %359 {strides = array<i32>} : memref<32x384xf32, #tpu.memory_space<vmem>>, vector<32x128xf32>,
    return
  }
}

</mosaic_0001>

<llo_original>
// kernel: mdlstm_forward.1
$region0: #{mdlstm_forward.1}
  #allocation0 [shape = 'u32[]', space=smem, size = 0x4, offset = 0x4, fixed_abs, tag = 'smem constant byte address 0x4 - core index']
  #allocation1 [shape = 'u32[144,128]{1,0:T(1,128)}', space=vmem, size = 0x12000, scoped, tag = 'internal scratch']
  #allocation2 [shape = 'f32[32,512]{1,0:T(8,128)}', space=vmem, size = 0x10000, scoped, tag = 'scratch operand']
  #allocation3 [shape = 'bf16[32,128]{1,0:T(16,128)(2,1)}', space=vmem, size = 0x2000, scoped, tag = 'scratch operand']
  #allocation4 [shape = 'bf16[128,384]{1,0:T(16,128)(2,1)}', space=vmem, size = 0x18000, scoped, tag = 'scratch operand']
  #allocation5 [shape = 's32[1]{0}', space=sflag, size = 0x4, scoped, tag = 'scratch operand']
  #allocation16 [shape = 's32[]', space=sflag, size = 0x4, offset = 0, fixed_abs, tag = 'sflag constant byte address 0x0 - dummy sync flag']
  %s0 = inlined_call_operand.vmem [shape: bf16[32,36], index: 0, kind: input, shape index: {}]
  %s1 = inlined_call_operand.hbm [shape: f32[2,8,128], index: 1, kind: input, shape index: {}]
  %s2 = inlined_call_operand.vmem [shape: f32[2,8,128], index: 2, kind: input, shape index: {}]
  %s3 = inlined_call_operand.hbm [shape: bf16[36,512], index: 3, kind: input, shape index: {}]
  %s4 = inlined_call_operand.hbm [shape: f32[1,512], index: 4, kind: input, shape index: {}]
  %s5 = inlined_call_operand.hbm [shape: bf16[256,1024], index: 5, kind: input, shape index: {}]
  %s6 = inlined_call_operand.hbm [shape: f32[1,512], index: 6, kind: input, shape index: {}]
  %s7 = inlined_call_operand.vmem [shape: bf16[128,384], index: 7, kind: input, shape index: {}]
  %s8 = inlined_call_operand.hbm [shape: f32[1,384], index: 8, kind: input, shape index: {}]
  %s9 = inlined_call_operand.vmem [shape: f32[32,384], index: 9, kind: output, shape index: {}]
  %s10 = sld [smem:[#allocation0]]
  $region103: #{mdlstm_forward.1} parent=0
    _
  %s12 = ssub.s32 1, %s10
  %s13 = scalar_select 0, %s12, %s10
  $region1: #{mdlstm_forward.1} parent=0
    #allocation6 [shape = 'u8[8192]{0}', space=vmem, size = 0x2000, scoped, tag = 'input window, operand 1, single buffered']
    #allocation7 [shape = 's32[1]{0}', space=sflag, size = 0x4, scoped, tag = 'scoped memory for mdlstm_forward.1']
    #allocation8 [shape = 'u8[40960]{0}', space=vmem, size = 0xa000, scoped, tag = 'input window, operand 3, single buffered']
    #allocation9 [shape = 's32[1]{0}', space=sflag, size = 0x4, scoped, tag = 'scoped memory for mdlstm_forward.1']
    #allocation10 [shape = 'u8[2048]{0}', space=vmem, size = 0x800, scoped, tag = 'input window, operand 4, single buffered']
    #allocation11 [shape = 'u8[524288]{0}', space=vmem, size = 0x80000, scoped, tag = 'input window, operand 5, single buffered']
    #allocation12 [shape = 's32[1]{0}', space=sflag, size = 0x4, scoped, tag = 'scoped memory for mdlstm_forward.1']
    #allocation13 [shape = 'u8[2048]{0}', space=vmem, size = 0x800, scoped, tag = 'input window, operand 6, single buffered']
    #allocation14 [shape = 'u8[1536]{0}', space=vmem, size = 0x800, scoped, tag = 'input window, operand 8, single buffered']
    #allocation15 [shape = 's32[1]{0}', space=sflag, size = 0x4, scoped, tag = 'scoped memory for mdlstm_forward.1']
    %14 = vsyncpa [#allocation7], 0
    %15 = vsyncpa [#allocation9], 0
    %16 = vsyncpa [#allocation12], 0
    %17 = vsyncpa [#allocation15], 0
    // Predicated region
    $region2: #{mdlstm_forward.1} parent=1 // pred_check
      _
    $region3: #{mdlstm_forward.1} parent=1 // pred_check_branch
      %19 = sbr.rel (0) target = $region5
    $region4: #{mdlstm_forward.1} parent=1 // pred_region
      _
    $region5: #{mdlstm_forward.1} parent=1 // pred_fallthru
      _
    // Predicated region
    $region6: #{mdlstm_forward.1} parent=1 // pred_check
      _
    $region7: #{mdlstm_forward.1} parent=1 // pred_check_branch
      %21 = sbr.rel (0) target = $region9
    $region8: #{mdlstm_forward.1} parent=1 // pred_region
      %s23 = ssub.s32 256, 256
      %24 = vsyncadd [#allocation7], %s23
      %s25 = sshll.u32 [#allocation6], 4
      %s26 = int_to_ptr.vmem [resolvable:$true] %s25
      %31 = dma.hbm_to_vmem [thread:$0]  %s1, 256, %s26, [#allocation7], 128, 128, 8
    $region9: #{mdlstm_forward.1} parent=1 // pred_fallthru
      _
    // Predicated region
    $region10: #{mdlstm_forward.1} parent=1 // pred_check
      _
    $region11: #{mdlstm_forward.1} parent=1 // pred_check_branch
      %33 = sbr.rel (0) target = $region13
    $region12: #{mdlstm_forward.1} parent=1 // pred_region
      _
    $region13: #{mdlstm_forward.1} parent=1 // pred_fallthru
      _
    // Predicated region
    $region14: #{mdlstm_forward.1} parent=1 // pred_check
      _
    $region15: #{mdlstm_forward.1} parent=1 // pred_check_branch
      %35 = sbr.rel (0) target = $region17
    $region16: #{mdlstm_forward.1} parent=1 // pred_region
      %s37 = ssub.s32 1280, 1280
      %38 = vsyncadd [#allocation9], %s37
      %s39 = sshll.u32 [#allocation8], 4
      %s40 = int_to_ptr.vmem [resolvable:$true] %s39
      %45 = dma.hbm_to_vmem [thread:$0]  %s3, 1280, %s40, [#allocation9], 256, 256, 16
    $region17: #{mdlstm_forward.1} parent=1 // pred_fallthru
      _
    // Predicated region
    $region18: #{mdlstm_forward.1} parent=1 // pred_check
      _
    $region19: #{mdlstm_forward.1} parent=1 // pred_check_branch
      %47 = sbr.rel (0) target = $region21
    $region20: #{mdlstm_forward.1} parent=1 // pred_region
      %s49 = ssub.s32 64, 64
      %50 = vsyncadd [#allocation9], %s49
      %s52 = sshll.u32 [#allocation10], 4
      %s53 = int_to_ptr.vmem [resolvable:$true] %s52
      %55 = dma.hbm_to_vmem [thread:$0]  %s4, 64, %s53, [#allocation9]
    $region21: #{mdlstm_forward.1} parent=1 // pred_fallthru
      _
    // Predicated region
    $region22: #{mdlstm_forward.1} parent=1 // pred_check
      _
    $region23: #{mdlstm_forward.1} parent=1 // pred_check_branch
      %57 = sbr.rel (0) target = $region25
    $region24: #{mdlstm_forward.1} parent=1 // pred_region
      %s59 = ssub.s32 16384, 16384
      %60 = vsyncadd [#allocation12], %s59
      %s61 = sshll.u32 [#allocation11], 4
      %s62 = int_to_ptr.vmem [resolvable:$true] %s61
      %67 = dma.hbm_to_vmem [thread:$0]  %s5, 16384, %s62, [#allocation12], 512, 512, 32
    $region25: #{mdlstm_forward.1} parent=1 // pred_fallthru
      _
    // Predicated region
    $region26: #{mdlstm_forward.1} parent=1 // pred_check
      _
    $region27: #{mdlstm_forward.1} parent=1 // pred_check_branch
      %69 = sbr.rel (0) target = $region29
    $region28: #{mdlstm_forward.1} parent=1 // pred_region
      %s71 = ssub.s32 64, 64
      %72 = vsyncadd [#allocation12], %s71
      %s74 = sshll.u32 [#allocation13], 4
      %s75 = int_to_ptr.vmem [resolvable:$true] %s74
      %77 = dma.hbm_to_vmem [thread:$0]  %s6, 64, %s75, [#allocation12]
    $region29: #{mdlstm_forward.1} parent=1 // pred_fallthru
      _
    // Predicated region
    $region30: #{mdlstm_forward.1} parent=1 // pred_check
      _
    $region31: #{mdlstm_forward.1} parent=1 // pred_check_branch
      %79 = sbr.rel (0) target = $region33
    $region32: #{mdlstm_forward.1} parent=1 // pred_region
      %s81 = ssub.s32 48, 48
      %82 = vsyncadd [#allocation15], %s81
      %s84 = sshll.u32 [#allocation14], 4
      %s85 = int_to_ptr.vmem [resolvable:$true] %s84
      %87 = dma.hbm_to_vmem [thread:$0]  %s8, 48, %s85, [#allocation15]
    $region33: #{mdlstm_forward.1} parent=1 // pred_fallthru
      _
    // Predicated region
    $region34: #{mdlstm_forward.1} parent=1 // pred_check
      _
    $region35: #{mdlstm_forward.1} parent=1 // pred_check_branch
      %89 = sbr.rel (0) target = $region37
    $region36: #{mdlstm_forward.1} parent=1 // pred_region
      %90 = dma.done [#allocation7], 256
    $region37: #{mdlstm_forward.1} parent=1 // pred_fallthru
      _
    // Predicated region
    $region38: #{mdlstm_forward.1} parent=1 // pred_check
      _
    $region39: #{mdlstm_forward.1} parent=1 // pred_check_branch
      %92 = sbr.rel (0) target = $region41
    $region40: #{mdlstm_forward.1} parent=1 // pred_region
      %93 = dma.done [#allocation9], 1280
    $region41: #{mdlstm_forward.1} parent=1 // pred_fallthru
      _
    // Predicated region
    $region42: #{mdlstm_forward.1} parent=1 // pred_check
      _
    $region43: #{mdlstm_forward.1} parent=1 // pred_check_branch
      %95 = sbr.rel (0) target = $region45
    $region44: #{mdlstm_forward.1} parent=1 // pred_region
      %96 = dma.done [#allocation9], 64
    $region45: #{mdlstm_forward.1} parent=1 // pred_fallthru
      _
    // Predicated region
    $region46: #{mdlstm_forward.1} parent=1 // pred_check
      _
    $region47: #{mdlstm_forward.1} parent=1 // pred_check_branch
      %98 = sbr.rel (0) target = $region49
    $region48: #{mdlstm_forward.1} parent=1 // pred_region
      %99 = dma.done [#allocation12], 16384
    $region49: #{mdlstm_forward.1} parent=1 // pred_fallthru
      _
    // Predicated region
    $region50: #{mdlstm_forward.1} parent=1 // pred_check
      _
    $region51: #{mdlstm_forward.1} parent=1 // pred_check_branch
      %101 = sbr.rel (0) target = $region53
    $region52: #{mdlstm_forward.1} parent=1 // pred_region
      %102 = dma.done [#allocation12], 64
    $region53: #{mdlstm_forward.1} parent=1 // pred_fallthru
      _
    // Predicated region
    $region54: #{mdlstm_forward.1} parent=1 // pred_check
      _
    $region55: #{mdlstm_forward.1} parent=1 // pred_check_branch
      %104 = sbr.rel (0) target = $region57
    $region56: #{mdlstm_forward.1} parent=1 // pred_region
      %105 = dma.done [#allocation15], 48
    $region57: #{mdlstm_forward.1} parent=1 // pred_fallthru
      _
    %p108 = scmp.lt.u32.totalorder 4, 8
    %p109 = pneg %p108
    // Predicated region
    $region58: #{mdlstm_forward.1} parent=1 // pred_check
      _
    $region59: #{mdlstm_forward.1} parent=1 // pred_check_branch
      %111 = sbr.rel (%p108) target = $region61
    $region60: #{mdlstm_forward.1} parent=1 // pred_region
      %s220 = sand.u32 4, 7
      %p221 = scmp.eq.s32.totalorder %s220, 0
      %p222 = pneg %p221
      // Predicated region
      $region73: #{mdlstm_forward.1} parent=60 // pred_check
        _
      $region74: #{mdlstm_forward.1} parent=60 // pred_check_branch
        %224 = sbr.rel (%p221) target = $region76
      $region75: #{mdlstm_forward.1} parent=60 // pred_region
        %s225 = sand.u32 4, 7
        %s226 = ssub.s32 4, %s225
        %s227 = scalar_lea.vmem %s7, %s226
        %s228 = ssub.s32 4, %s225
        %s229 = scalar_lea.vmem [#allocation4], %s228
        loop: start=0, step=1, limit=1
        $region77: #{mdlstm_forward.1} parent=75 // loop_pre_header
          _
        $region78: #{mdlstm_forward.1} parent=75 // loop_header
          %s231 = sphi 0, %s235
          %p232 = scmp.ge.s32.totalorder %s231, 1
          %s236 = sphi %s7, %s7
          %s237 = sphi [#allocation4], [#allocation4]
        $region79: #{mdlstm_forward.1} parent=75 // loop_header_branch
          %234 = sbr.rel (%p232) target = $region83
        $region80: #{mdlstm_forward.1} parent=75 // loop_body
          _
        $region81: #{mdlstm_forward.1} parent=75 // loop_footer
          %s235 = sadd.s32 1, %s231
        $region82: #{mdlstm_forward.1} parent=75 // loop_footer_branch
          %230 = sbr.rel target = $region78
        $region83: #{mdlstm_forward.1} parent=75 // loop_exit
          _
        %s238 = sshllo.u32 0, %s225
        loop: start=0, step=1, limit=1
        $region84: #{mdlstm_forward.1} parent=75 // loop_pre_header
          _
        $region85: #{mdlstm_forward.1} parent=75 // loop_header
          %s240 = sphi 0, %s244
          %p241 = scmp.ge.s32.totalorder %s240, 1
          %s245 = sphi %s227, %s227
          %s246 = sphi %s229, %s229
        $region86: #{mdlstm_forward.1} parent=75 // loop_header_branch
          %243 = sbr.rel (%p241) target = $region90
        $region87: #{mdlstm_forward.1} parent=75 // loop_body
          %v247 = vld [vmem:[%s245] sm:%s238]
          %248 = vst [vmem:[%s246] sm:%s238] %v247
          %v249 = vld [vmem:[%s245 + $0xc] sm:%s238]
          %250 = vst [vmem:[%s246 + $0x4] sm:%s238] %v249
          %v251 = vld [vmem:[%s245 + $0x4] sm:%s238]
          %252 = vst [vmem:[%s246 + $0x8] sm:%s238] %v251
          %v253 = vld [vmem:[%s245 + $0x10] sm:%s238]
          %254 = vst [vmem:[%s246 + $0xc] sm:%s238] %v253
          %v255 = vld [vmem:[%s245 + $0x8] sm:%s238]
          %256 = vst [vmem:[%s246 + $0x10] sm:%s238] %v255
          %v257 = vld [vmem:[%s245 + $0x14] sm:%s238]
          %258 = vst [vmem:[%s246 + $0x14] sm:%s238] %v257
          %v259 = vld [vmem:[%s245 + $0x18] sm:%s238]
          %260 = vst [vmem:[%s246 + $0x18] sm:%s238] %v259
          %v261 = vld [vmem:[%s245 + $0x24] sm:%s238]
          %262 = vst [vmem:[%s246 + $0x1c] sm:%s238] %v261
          %v263 = vld [vmem:[%s245 + $0x1c] sm:%s238]
          %264 = vst [vmem:[%s246 + $0x20] sm:%s238] %v263
          %v265 = vld [vmem:[%s245 + $0x28] sm:%s238]
          %266 = vst [vmem:[%s246 + $0x24] sm:%s238] %v265
          %v267 = vld [vmem:[%s245 + $0x20] sm:%s238]
          %268 = vst [vmem:[%s246 + $0x28] sm:%s238] %v267
          %v269 = vld [vmem:[%s245 + $0x2c] sm:%s238]
          %270 = vst [vmem:[%s246 + $0x2c] sm:%s238] %v269
          %v271 = vld [vmem:[%s245 + $0x30] sm:%s238]
          %272 = vst [vmem:[%s246 + $0x30] sm:%s238] %v271
          %v273 = vld [vmem:[%s245 + $0x3c] sm:%s238]
          %274 = vst [vmem:[%s246 + $0x34] sm:%s238] %v273
          %v275 = vld [vmem:[%s245 + $0x34] sm:%s238]
          %276 = vst [vmem:[%s246 + $0x38] sm:%s238] %v275
          %v277 = vld [vmem:[%s245 + $0x40] sm:%s238]
          %278 = vst [vmem:[%s246 + $0x3c] sm:%s238] %v277
          %v279 = vld [vmem:[%s245 + $0x38] sm:%s238]
          %280 = vst [vmem:[%s246 + $0x40] sm:%s238] %v279
          %v281 = vld [vmem:[%s245 + $0x44] sm:%s238]
          %282 = vst [vmem:[%s246 + $0x44] sm:%s238] %v281
          %v283 = vld [vmem:[%s245 + $0x48] sm:%s238]
          %284 = vst [vmem:[%s246 + $0x48] sm:%s238] %v283
          %v285 = vld [vmem:[%s245 + $0x54] sm:%s238]
          %286 = vst [vmem:[%s246 + $0x4c] sm:%s238] %v285
          %v287 = vld [vmem:[%s245 + $0x4c] sm:%s238]
          %288 = vst [vmem:[%s246 + $0x50] sm:%s238] %v287
          %v289 = vld [vmem:[%s245 + $0x58] sm:%s238]
          %290 = vst [vmem:[%s246 + $0x54] sm:%s238] %v289
          %v291 = vld [vmem:[%s245 + $0x50] sm:%s238]
          %292 = vst [vmem:[%s246 + $0x58] sm:%s238] %v291
          %v293 = vld [vmem:[%s245 + $0x5c] sm:%s238]
          %294 = vst [vmem:[%s246 + $0x5c] sm:%s238] %v293
          %v295 = vld [vmem:[%s245 + $0x60] sm:%s238]
          %296 = vst [vmem:[%s246 + $0x60] sm:%s238] %v295
          %v297 = vld [vmem:[%s245 + $0x6c] sm:%s238]
          %298 = vst [vmem:[%s246 + $0x64] sm:%s238] %v297
          %v299 = vld [vmem:[%s245 + $0x64] sm:%s238]
          %300 = vst [vmem:[%s246 + $0x68] sm:%s238] %v299
          %v301 = vld [vmem:[%s245 + $0x70] sm:%s238]
          %302 = vst [vmem:[%s246 + $0x6c] sm:%s238] %v301
          %v303 = vld [vmem:[%s245 + $0x68] sm:%s238]
          %304 = vst [vmem:[%s246 + $0x70] sm:%s238] %v303
          %v305 = vld [vmem:[%s245 + $0x74] sm:%s238]
          %306 = vst [vmem:[%s246 + $0x74] sm:%s238] %v305
          %v307 = vld [vmem:[%s245 + $0x78] sm:%s238]
          %308 = vst [vmem:[%s246 + $0x78] sm:%s238] %v307
          %v309 = vld [vmem:[%s245 + $0x84] sm:%s238]
          %310 = vst [vmem:[%s246 + $0x7c] sm:%s238] %v309
          %v311 = vld [vmem:[%s245 + $0x7c] sm:%s238]
          %312 = vst [vmem:[%s246 + $0x80] sm:%s238] %v311
          %v313 = vld [vmem:[%s245 + $0x88] sm:%s238]
          %314 = vst [vmem:[%s246 + $0x84] sm:%s238] %v313
          %v315 = vld [vmem:[%s245 + $0x80] sm:%s238]
          %316 = vst [vmem:[%s246 + $0x88] sm:%s238] %v315
          %v317 = vld [vmem:[%s245 + $0x8c] sm:%s238]
          %318 = vst [vmem:[%s246 + $0x8c] sm:%s238] %v317
          %v319 = vld [vmem:[%s245 + $0x90] sm:%s238]
          %320 = vst [vmem:[%s246 + $0x90] sm:%s238] %v319
          %v321 = vld [vmem:[%s245 + $0x9c] sm:%s238]
          %322 = vst [vmem:[%s246 + $0x94] sm:%s238] %v321
          %v323 = vld [vmem:[%s245 + $0x94] sm:%s238]
          %324 = vst [vmem:[%s246 + $0x98] sm:%s238] %v323
          %v325 = vld [vmem:[%s245 + $0xa0] sm:%s238]
          %326 = vst [vmem:[%s246 + $0x9c] sm:%s238] %v325
          %v327 = vld [vmem:[%s245 + $0x98] sm:%s238]
          %328 = vst [vmem:[%s246 + $0xa0] sm:%s238] %v327
          %v329 = vld [vmem:[%s245 + $0xa4] sm:%s238]
          %330 = vst [vmem:[%s246 + $0xa4] sm:%s238] %v329
          %v331 = vld [vmem:[%s245 + $0xa8] sm:%s238]
          %332 = vst [vmem:[%s246 + $0xa8] sm:%s238] %v331
          %v333 = vld [vmem:[%s245 + $0xb4] sm:%s238]
          %334 = vst [vmem:[%s246 + $0xac] sm:%s238] %v333
          %v335 = vld [vmem:[%s245 + $0xac] sm:%s238]
          %336 = vst [vmem:[%s246 + $0xb0] sm:%s238] %v335
          %v337 = vld [vmem:[%s245 + $0xb8] sm:%s238]
          %338 = vst [vmem:[%s246 + $0xb4] sm:%s238] %v337
          %v339 = vld [vmem:[%s245 + $0xb0] sm:%s238]
          %340 = vst [vmem:[%s246 + $0xb8] sm:%s238] %v339
          %v341 = vld [vmem:[%s245 + $0xbc] sm:%s238]
          %342 = vst [vmem:[%s246 + $0xbc] sm:%s238] %v341
        $region88: #{mdlstm_forward.1} parent=75 // loop_footer
          %s244 = sadd.s32 1, %s240
        $region89: #{mdlstm_forward.1} parent=75 // loop_footer_branch
          %239 = sbr.rel target = $region85
        $region90: #{mdlstm_forward.1} parent=75 // loop_exit
          _
      $region76: #{mdlstm_forward.1} parent=60 // pred_fallthru
        _
    $region61: #{mdlstm_forward.1} parent=1 // pred_fallthru
      _
    // Predicated region
    $region62: #{mdlstm_forward.1} parent=1 // pred_check
      %p112 = pneg %p108
    $region63: #{mdlstm_forward.1} parent=1 // pred_check_branch
      %114 = sbr.rel (%p112) target = $region65
    $region64: #{mdlstm_forward.1} parent=1 // pred_region
      %s115 = sshllo.u32 0, 4
      loop: start=0, step=1, limit=1
      $region66: #{mdlstm_forward.1} parent=64 // loop_pre_header
        _
      $region67: #{mdlstm_forward.1} parent=64 // loop_header
        %s117 = sphi 0, %s121
        %p118 = scmp.ge.s32.totalorder %s117, 1
        %s122 = sphi %s7, %s7
        %s123 = sphi [#allocation4], [#allocation4]
      $region68: #{mdlstm_forward.1} parent=64 // loop_header_branch
        %120 = sbr.rel (%p118) target = $region72
      $region69: #{mdlstm_forward.1} parent=64 // loop_body
        %v124 = vld [vmem:[%s122] sm:%s115]
        %125 = vst [vmem:[%s123] sm:%s115] %v124
        %v126 = vld [vmem:[%s122 + $0xc] sm:%s115]
        %127 = vst [vmem:[%s123 + $0x4] sm:%s115] %v126
        %v128 = vld [vmem:[%s122 + $0x4] sm:%s115]
        %129 = vst [vmem:[%s123 + $0x8] sm:%s115] %v128
        %v130 = vld [vmem:[%s122 + $0x10] sm:%s115]
        %131 = vst [vmem:[%s123 + $0xc] sm:%s115] %v130
        %v132 = vld [vmem:[%s122 + $0x8] sm:%s115]
        %133 = vst [vmem:[%s123 + $0x10] sm:%s115] %v132
        %v134 = vld [vmem:[%s122 + $0x14] sm:%s115]
        %135 = vst [vmem:[%s123 + $0x14] sm:%s115] %v134
        %v136 = vld [vmem:[%s122 + $0x18] sm:%s115]
        %137 = vst [vmem:[%s123 + $0x18] sm:%s115] %v136
        %v138 = vld [vmem:[%s122 + $0x24] sm:%s115]
        %139 = vst [vmem:[%s123 + $0x1c] sm:%s115] %v138
        %v140 = vld [vmem:[%s122 + $0x1c] sm:%s115]
        %141 = vst [vmem:[%s123 + $0x20] sm:%s115] %v140
        %v142 = vld [vmem:[%s122 + $0x28] sm:%s115]
        %143 = vst [vmem:[%s123 + $0x24] sm:%s115] %v142
        %v144 = vld [vmem:[%s122 + $0x20] sm:%s115]
        %145 = vst [vmem:[%s123 + $0x28] sm:%s115] %v144
        %v146 = vld [vmem:[%s122 + $0x2c] sm:%s115]
        %147 = vst [vmem:[%s123 + $0x2c] sm:%s115] %v146
        %v148 = vld [vmem:[%s122 + $0x30] sm:%s115]
        %149 = vst [vmem:[%s123 + $0x30] sm:%s115] %v148
        %v150 = vld [vmem:[%s122 + $0x3c] sm:%s115]
        %151 = vst [vmem:[%s123 + $0x34] sm:%s115] %v150
        %v152 = vld [vmem:[%s122 + $0x34] sm:%s115]
        %153 = vst [vmem:[%s123 + $0x38] sm:%s115] %v152
        %v154 = vld [vmem:[%s122 + $0x40] sm:%s115]
        %155 = vst [vmem:[%s123 + $0x3c] sm:%s115] %v154
        %v156 = vld [vmem:[%s122 + $0x38] sm:%s115]
        %157 = vst [vmem:[%s123 + $0x40] sm:%s115] %v156
        %v158 = vld [vmem:[%s122 + $0x44] sm:%s115]
        %159 = vst [vmem:[%s123 + $0x44] sm:%s115] %v158
        %v160 = vld [vmem:[%s122 + $0x48] sm:%s115]
        %161 = vst [vmem:[%s123 + $0x48] sm:%s115] %v160
        %v162 = vld [vmem:[%s122 + $0x54] sm:%s115]
        %163 = vst [vmem:[%s123 + $0x4c] sm:%s115] %v162
        %v164 = vld [vmem:[%s122 + $0x4c] sm:%s115]
        %165 = vst [vmem:[%s123 + $0x50] sm:%s115] %v164
        %v166 = vld [vmem:[%s122 + $0x58] sm:%s115]
        %167 = vst [vmem:[%s123 + $0x54] sm:%s115] %v166
        %v168 = vld [vmem:[%s122 + $0x50] sm:%s115]
        %169 = vst [vmem:[%s123 + $0x58] sm:%s115] %v168
        %v170 = vld [vmem:[%s122 + $0x5c] sm:%s115]
        %171 = vst [vmem:[%s123 + $0x5c] sm:%s115] %v170
        %v172 = vld [vmem:[%s122 + $0x60] sm:%s115]
        %173 = vst [vmem:[%s123 + $0x60] sm:%s115] %v172
        %v174 = vld [vmem:[%s122 + $0x6c] sm:%s115]
        %175 = vst [vmem:[%s123 + $0x64] sm:%s115] %v174
        %v176 = vld [vmem:[%s122 + $0x64] sm:%s115]
        %177 = vst [vmem:[%s123 + $0x68] sm:%s115] %v176
        %v178 = vld [vmem:[%s122 + $0x70] sm:%s115]
        %179 = vst [vmem:[%s123 + $0x6c] sm:%s115] %v178
        %v180 = vld [vmem:[%s122 + $0x68] sm:%s115]
        %181 = vst [vmem:[%s123 + $0x70] sm:%s115] %v180
        %v182 = vld [vmem:[%s122 + $0x74] sm:%s115]
        %183 = vst [vmem:[%s123 + $0x74] sm:%s115] %v182
        %v184 = vld [vmem:[%s122 + $0x78] sm:%s115]
        %185 = vst [vmem:[%s123 + $0x78] sm:%s115] %v184
        %v186 = vld [vmem:[%s122 + $0x84] sm:%s115]
        %187 = vst [vmem:[%s123 + $0x7c] sm:%s115] %v186
        %v188 = vld [vmem:[%s122 + $0x7c] sm:%s115]
        %189 = vst [vmem:[%s123 + $0x80] sm:%s115] %v188
        %v190 = vld [vmem:[%s122 + $0x88] sm:%s115]
        %191 = vst [vmem:[%s123 + $0x84] sm:%s115] %v190
        %v192 = vld [vmem:[%s122 + $0x80] sm:%s115]
        %193 = vst [vmem:[%s123 + $0x88] sm:%s115] %v192
        %v194 = vld [vmem:[%s122 + $0x8c] sm:%s115]
        %195 = vst [vmem:[%s123 + $0x8c] sm:%s115] %v194
        %v196 = vld [vmem:[%s122 + $0x90] sm:%s115]
        %197 = vst [vmem:[%s123 + $0x90] sm:%s115] %v196
        %v198 = vld [vmem:[%s122 + $0x9c] sm:%s115]
        %199 = vst [vmem:[%s123 + $0x94] sm:%s115] %v198
        %v200 = vld [vmem:[%s122 + $0x94] sm:%s115]
        %201 = vst [vmem:[%s123 + $0x98] sm:%s115] %v200
        %v202 = vld [vmem:[%s122 + $0xa0] sm:%s115]
        %203 = vst [vmem:[%s123 + $0x9c] sm:%s115] %v202
        %v204 = vld [vmem:[%s122 + $0x98] sm:%s115]
        %205 = vst [vmem:[%s123 + $0xa0] sm:%s115] %v204
        %v206 = vld [vmem:[%s122 + $0xa4] sm:%s115]
        %207 = vst [vmem:[%s123 + $0xa4] sm:%s115] %v206
        %v208 = vld [vmem:[%s122 + $0xa8] sm:%s115]
        %209 = vst [vmem:[%s123 + $0xa8] sm:%s115] %v208
        %v210 = vld [vmem:[%s122 + $0xb4] sm:%s115]
        %211 = vst [vmem:[%s123 + $0xac] sm:%s115] %v210
        %v212 = vld [vmem:[%s122 + $0xac] sm:%s115]
        %213 = vst [vmem:[%s123 + $0xb0] sm:%s115] %v212
        %v214 = vld [vmem:[%s122 + $0xb8] sm:%s115]
        %215 = vst [vmem:[%s123 + $0xb4] sm:%s115] %v214
        %v216 = vld [vmem:[%s122 + $0xb0] sm:%s115]
        %217 = vst [vmem:[%s123 + $0xb8] sm:%s115] %v216
        %v218 = vld [vmem:[%s122 + $0xbc] sm:%s115]
        %219 = vst [vmem:[%s123 + $0xbc] sm:%s115] %v218
      $region70: #{mdlstm_forward.1} parent=64 // loop_footer
        %s121 = sadd.s32 1, %s117
      $region71: #{mdlstm_forward.1} parent=64 // loop_footer_branch
        %116 = sbr.rel target = $region67
      $region72: #{mdlstm_forward.1} parent=64 // loop_exit
        _
    $region65: #{mdlstm_forward.1} parent=1 // pred_fallthru
      _
    // Predicated region
    $region91: #{mdlstm_forward.1} parent=1 // pred_check
      _
    $region92: #{mdlstm_forward.1} parent=1 // pred_check_branch
      %345 = sbr.rel (0) target = $region94
    $region93: #{mdlstm_forward.1} parent=1 // pred_region
      %346 = vsyncadd [#allocation5], 3072
    $region94: #{mdlstm_forward.1} parent=1 // pred_fallthru
      _
    %v347 = vld [vmem:[%s0] sm:$0xf]
    %v348 = vld [vmem:[%s0 + $0x4] sm:$0xf]
    %v349 = vld [vmem:[%s0 + $0x8] sm:$0xf]
    %v350 = vld [vmem:[%s0 + $0xc] sm:$0xf]
    %v351 = vld [vmem:[#allocation8] sm:$0xff]
    %v352 = vld [vmem:[#allocation8 + $0x8] sm:$0xff]
    %v353 = vld [vmem:[#allocation8 + $0x10] sm:$0xff]
    %v354 = vld [vmem:[#allocation8 + $0x18] sm:$0xff]
    %v355 = vld [vmem:[#allocation8 + $0x20] sm:$0xff]
    %v356 = vld [vmem:[#allocation8 + $0x28] sm:$0xff]
    %v357 = vld [vmem:[#allocation8 + $0x30] sm:$0xff]
    %v358 = vld [vmem:[#allocation8 + $0x38] sm:$0xff]
    %v359 = vld [vmem:[#allocation8 + $0x40] sm:$0x33]
    %v360 = vld [vmem:[#allocation8 + $0x48] sm:$0x33]
    %v361 = vld [vmem:[#allocation10] sm:$0xf]
    %v363 = vlaneseq
    %v364 = vshrl.u32 %v363, 7
    %v365 = vsub.s32 0, %v364
    %v366 = vrot.slane %v361, %v365
    %v367 = vlaneseq
    %v368 = vshrl.u32 %v367, 7
    %v369 = vsub.s32 1, %v368
    %v370 = vrot.slane %v361, %v369
    %v371 = vlaneseq
    %v372 = vshrl.u32 %v371, 7
    %v373 = vsub.s32 2, %v372
    %v374 = vrot.slane %v361, %v373
    %v375 = vlaneseq
    %v376 = vshrl.u32 %v375, 7
    %v377 = vsub.s32 3, %v376
    %v378 = vrot.slane %v361, %v377
    %v387 = vunpack.c.l.b16 %v347
    %v388 = vunpack.c.l.b16 %v348
    %v389 = vunpack.c.l.b16 %v349
    %v390 = vunpack.c.l.b16 %v350
    %v391 = vpack.c.b16 %v388, %v387
    %v392 = vpack.c.b16 %v390, %v389
    %v403 = vunpack.c.l.b16 %v351
    %v404 = vunpack.c.h.b16 %v351
    %v405 = vunpack.c.l.b16 %v352
    %v406 = vunpack.c.h.b16 %v352
    %v407 = vunpack.c.l.b16 %v353
    %v408 = vunpack.c.h.b16 %v353
    %v409 = vunpack.c.l.b16 %v354
    %v410 = vunpack.c.h.b16 %v354
    %v411 = vunpack.c.l.b16 %v355
    %v412 = vunpack.c.h.b16 %v355
    %v413 = vunpack.c.l.b16 %v356
    %v414 = vunpack.c.h.b16 %v356
    %v415 = vunpack.c.l.b16 %v357
    %v416 = vunpack.c.h.b16 %v357
    %v417 = vunpack.c.l.b16 %v358
    %v418 = vunpack.c.h.b16 %v358
    %v419 = vunpack.c.l.b16 %v359
    %v420 = vunpack.c.h.b16 %v359
    %v421 = vunpack.c.l.b16 %v360
    %v422 = vunpack.c.h.b16 %v360
    %v423 = vpack.c.b16 %v407, %v403
    %v424 = vpack.c.b16 %v408, %v404
    %v425 = vpack.c.b16 %v409, %v405
    %v426 = vpack.c.b16 %v410, %v406
    %v427 = vpack.c.b16 %v415, %v411
    %v428 = vpack.c.b16 %v416, %v412
    %v429 = vpack.c.b16 %v417, %v413
    %v430 = vpack.c.b16 %v418, %v414
    %v431 = vpack.c.b16 %v419, %v419
    %v432 = vpack.c.b16 %v420, %v420
    %v433 = vpack.c.b16 %v421, %v421
    %v434 = vpack.c.b16 %v422, %v422
    %vm443 = vcmask 293888
    %v445 = vsel %vm443, %v391, 0
    %v448 = vsel %vm443, %v392, 0
    %vm450 = vcmask 1041408
    %v452 = vsel %vm450, %v431, 0
    %v455 = vsel %vm450, %v432, 0
    %v458 = vsel %vm450, %v433, 0
    %v461 = vsel %vm450, %v434, 0
    %463 = vmatprep.subr.bf16.mxu0 %v424
    %464 = vmatpush1.bf16.msra.mxu0 %v423
    %465 = vmatprep.subr.bf16.mxu0 %v428
    %466 = vmatpush1.bf16.msra.mxu0 %v427
    %467 = vmatprep.subr.bf16.mxu0 %v455
    %468 = vmatpush1.bf16.msra.mxu0 %v452
    %469 = vmatprep.subr.bf16.mxu0 0
    %470 = vmatpush1.bf16.msra.mxu0 0
    %471 = vmatprep.subr.bf16.mxu0 0
    %472 = vmatpush1.bf16.msra.mxu0 0
    %473 = vmatprep.subr.bf16.mxu0 0
    %474 = vmatpush1.bf16.msra.mxu0 0
    %475 = vmatprep.subr.bf16.mxu0 0
    %476 = vmatpush1.bf16.msra.mxu0 0
    %477 = vmatprep.subr.bf16.mxu0 0
    %478 = vmatpush1.bf16.msra.mxu0 0
    %479 = vmatprep.subr.bf16.mxu0 0
    %480 = vmatpush1.bf16.msra.mxu0 0
    %481 = vmatprep.subr.bf16.mxu0 0
    %482 = vmatpush1.bf16.msra.mxu0 0
    %483 = vmatprep.subr.bf16.mxu0 0
    %484 = vmatpush1.bf16.msra.mxu0 0
    %485 = vmatprep.subr.bf16.mxu0 0
    %486 = vmatpush1.bf16.msra.mxu0 0
    %487 = vmatprep.subr.bf16.mxu0 0
    %488 = vmatpush1.bf16.msra.mxu0 0
    %489 = vmatprep.subr.bf16.mxu0 0
    %490 = vmatpush1.bf16.msra.mxu0 0
    %491 = vmatprep.subr.bf16.mxu0 0
    %492 = vmatpush1.bf16.msra.mxu0 0
    %493 = vmatprep.subr.bf16.mxu0 0
    %494 = vmatpush1.bf16.msra.mxu0 0
    %495 = vmatprep.mubr.bf16.mxu0 0
    %496 = vmatmul.mubr.bf16.gmra.mrb[0].mxu0 %v445
    %v497 = vpop.f32.mrb[0].mxu0
    %v498 = vadd.f32 %v366, %v497
    %v499 = vpop.f32.mrb[0].mxu0
    %v500 = vadd.f32 %v370, %v499
    %v501 = vpop.f32.mrb[0].mxu0
    %v502 = vadd.f32 %v366, %v501
    %v503 = vpop.f32.mrb[0].mxu0
    %v504 = vadd.f32 %v370, %v503
    %505 = vmatprep.mubr.bf16.mxu0 0
    %506 = vmatmul.mubr.bf16.gmra.mrb[0].mxu0 %v448
    %v507 = vpop.f32.mrb[0].mxu0
    %v508 = vadd.f32 %v366, %v507
    %v509 = vpop.f32.mrb[0].mxu0
    %v510 = vadd.f32 %v370, %v509
    %v511 = vpop.f32.mrb[0].mxu0
    %v512 = vadd.f32 %v366, %v511
    %v513 = vpop.f32.mrb[0].mxu0
    %v514 = vadd.f32 %v370, %v513
    %515 = vdwg.mxu0
    %516 = vmatprep.subr.bf16.mxu0 %v426
    %517 = vmatpush1.bf16.msra.mxu0 %v425
    %518 = vmatprep.subr.bf16.mxu0 %v430
    %519 = vmatpush1.bf16.msra.mxu0 %v429
    %520 = vmatprep.subr.bf16.mxu0 %v461
    %521 = vmatpush1.bf16.msra.mxu0 %v458
    %522 = vmatprep.subr.bf16.mxu0 0
    %523 = vmatpush1.bf16.msra.mxu0 0
    %524 = vmatprep.subr.bf16.mxu0 0
    %525 = vmatpush1.bf16.msra.mxu0 0
    %526 = vmatprep.subr.bf16.mxu0 0
    %527 = vmatpush1.bf16.msra.mxu0 0
    %528 = vmatprep.subr.bf16.mxu0 0
    %529 = vmatpush1.bf16.msra.mxu0 0
    %530 = vmatprep.subr.bf16.mxu0 0
    %531 = vmatpush1.bf16.msra.mxu0 0
    %532 = vmatprep.subr.bf16.mxu0 0
    %533 = vmatpush1.bf16.msra.mxu0 0
    %534 = vmatprep.subr.bf16.mxu0 0
    %535 = vmatpush1.bf16.msra.mxu0 0
    %536 = vmatprep.subr.bf16.mxu0 0
    %537 = vmatpush1.bf16.msra.mxu0 0
    %538 = vmatprep.subr.bf16.mxu0 0
    %539 = vmatpush1.bf16.msra.mxu0 0
    %540 = vmatprep.subr.bf16.mxu0 0
    %541 = vmatpush1.bf16.msra.mxu0 0
    %542 = vmatprep.subr.bf16.mxu0 0
    %543 = vmatpush1.bf16.msra.mxu0 0
    %544 = vmatprep.subr.bf16.mxu0 0
    %545 = vmatpush1.bf16.msra.mxu0 0
    %546 = vmatprep.subr.bf16.mxu0 0
    %547 = vmatpush1.bf16.msra.mxu0 0
    %548 = vmatprep.mubr.bf16.mxu0 0
    %549 = vmatmul.mubr.bf16.gmra.mrb[0].mxu0 %v445
    %v550 = vpop.f32.mrb[0].mxu0
    %v551 = vadd.f32 %v374, %v550
    %v552 = vpop.f32.mrb[0].mxu0
    %v553 = vadd.f32 %v378, %v552
    %v554 = vpop.f32.mrb[0].mxu0
    %v555 = vadd.f32 %v374, %v554
    %v556 = vpop.f32.mrb[0].mxu0
    %v557 = vadd.f32 %v378, %v556
    %558 = vmatprep.mubr.bf16.mxu0 0
    %559 = vmatmul.mubr.bf16.gmra.mrb[0].mxu0 %v448
    %v560 = vpop.f32.mrb[0].mxu0
    %v561 = vadd.f32 %v374, %v560
    %v562 = vpop.f32.mrb[0].mxu0
    %v563 = vadd.f32 %v378, %v562
    %v564 = vpop.f32.mrb[0].mxu0
    %v565 = vadd.f32 %v374, %v564
    %v566 = vpop.f32.mrb[0].mxu0
    %v567 = vadd.f32 %v378, %v566
    %568 = vdwg.mxu0
    %569 = vst [vmem:[#allocation2] sm:$0xff] %v498
    %570 = vst [vmem:[#allocation2 + $0x8] sm:$0xff] %v500
    %571 = vst [vmem:[#allocation2 + $0x10] sm:$0xff] %v551
    %572 = vst [vmem:[#allocation2 + $0x18] sm:$0xff] %v553
    %573 = vst [vmem:[#allocation2 + $0x20] sm:$0xff] %v502
    %574 = vst [vmem:[#allocation2 + $0x28] sm:$0xff] %v504
    %575 = vst [vmem:[#allocation2 + $0x30] sm:$0xff] %v555
    %576 = vst [vmem:[#allocation2 + $0x38] sm:$0xff] %v557
    %577 = vst [vmem:[#allocation2 + $0x40] sm:$0xff] %v508
    %578 = vst [vmem:[#allocation2 + $0x48] sm:$0xff] %v510
    %579 = vst [vmem:[#allocation2 + $0x50] sm:$0xff] %v561
    %580 = vst [vmem:[#allocation2 + $0x58] sm:$0xff] %v563
    %581 = vst [vmem:[#allocation2 + $0x60] sm:$0xff] %v512
    %582 = vst [vmem:[#allocation2 + $0x68] sm:$0xff] %v514
    %583 = vst [vmem:[#allocation2 + $0x70] sm:$0xff] %v565
    %584 = vst [vmem:[#allocation2 + $0x78] sm:$0xff] %v567
    %v585 = vld [vmem:[#allocation11] sm:$0xff]
    %v586 = vld [vmem:[#allocation11 + $0x8] sm:$0xff]
    %v587 = vld [vmem:[#allocation11 + $0x10] sm:$0xff]
    %v588 = vld [vmem:[#allocation11 + $0x18] sm:$0xff]
    %v589 = vld [vmem:[#allocation11 + $0x20] sm:$0xff]
    %v590 = vld [vmem:[#allocation11 + $0x28] sm:$0xff]
    %v591 = vld [vmem:[#allocation11 + $0x30] sm:$0xff]
    %v592 = vld [vmem:[#allocation11 + $0x38] sm:$0xff]
    %v593 = vld [vmem:[#allocation11 + $0x40] sm:$0xff]
    %v594 = vld [vmem:[#allocation11 + $0x48] sm:$0xff]
    %v595 = vld [vmem:[#allocation11 + $0x50] sm:$0xff]
    %v596 = vld [vmem:[#allocation11 + $0x58] sm:$0xff]
    %v597 = vld [vmem:[#allocation11 + $0x60] sm:$0xff]
    %v598 = vld [vmem:[#allocation11 + $0x68] sm:$0xff]
    %v599 = vld [vmem:[#allocation11 + $0x70] sm:$0xff]
    %v600 = vld [vmem:[#allocation11 + $0x78] sm:$0xff]
    %v601 = vld [vmem:[#allocation11 + $0x80] sm:$0xff]
    %v602 = vld [vmem:[#allocation11 + $0x88] sm:$0xff]
    %v603 = vld [vmem:[#allocation11 + $0x90] sm:$0xff]
    %v604 = vld [vmem:[#allocation11 + $0x98] sm:$0xff]
    %v605 = vld [vmem:[#allocation11 + $0xa0] sm:$0xff]
    %v606 = vld [vmem:[#allocation11 + $0xa8] sm:$0xff]
    %v607 = vld [vmem:[#allocation11 + $0xb0] sm:$0xff]
    %v608 = vld [vmem:[#allocation11 + $0xb8] sm:$0xff]
    %v609 = vld [vmem:[#allocation11 + $0xc0] sm:$0xff]
    %v610 = vld [vmem:[#allocation11 + $0xc8] sm:$0xff]
    %v611 = vld [vmem:[#allocation11 + $0xd0] sm:$0xff]
    %v612 = vld [vmem:[#allocation11 + $0xd8] sm:$0xff]
    %v613 = vld [vmem:[#allocation11 + $0xe0] sm:$0xff]
    %v614 = vld [vmem:[#allocation11 + $0xe8] sm:$0xff]
    %v615 = vld [vmem:[#allocation11 + $0xf0] sm:$0xff]
    %v616 = vld [vmem:[#allocation11 + $0xf8] sm:$0xff]
    %v617 = vld [vmem:[#allocation11 + $0x100] sm:$0xff]
    %v618 = vld [vmem:[#allocation11 + $0x108] sm:$0xff]
    %v619 = vld [vmem:[#allocation11 + $0x110] sm:$0xff]
    %v620 = vld [vmem:[#allocation11 + $0x118] sm:$0xff]
    %v621 = vld [vmem:[#allocation11 + $0x120] sm:$0xff]
    %v622 = vld [vmem:[#allocation11 + $0x128] sm:$0xff]
    %v623 = vld [vmem:[#allocation11 + $0x130] sm:$0xff]
    %v624 = vld [vmem:[#allocation11 + $0x138] sm:$0xff]
    %v625 = vld [vmem:[#allocation11 + $0x140] sm:$0xff]
    %v626 = vld [vmem:[#allocation11 + $0x148] sm:$0xff]
    %v627 = vld [vmem:[#allocation11 + $0x150] sm:$0xff]
    %v628 = vld [vmem:[#allocation11 + $0x158] sm:$0xff]
    %v629 = vld [vmem:[#allocation11 + $0x160] sm:$0xff]
    %v630 = vld [vmem:[#allocation11 + $0x168] sm:$0xff]
    %v631 = vld [vmem:[#allocation11 + $0x170] sm:$0xff]
    %v632 = vld [vmem:[#allocation11 + $0x178] sm:$0xff]
    %v633 = vld [vmem:[#allocation11 + $0x180] sm:$0xff]
    %v634 = vld [vmem:[#allocation11 + $0x188] sm:$0xff]
    %v635 = vld [vmem:[#allocation11 + $0x190] sm:$0xff]
    %v636 = vld [vmem:[#allocation11 + $0x198] sm:$0xff]
    %v637 = vld [vmem:[#allocation11 + $0x1a0] sm:$0xff]
    %v638 = vld [vmem:[#allocation11 + $0x1a8] sm:$0xff]
    %v639 = vld [vmem:[#allocation11 + $0x1b0] sm:$0xff]
    %v640 = vld [vmem:[#allocation11 + $0x1b8] sm:$0xff]
    %v641 = vld [vmem:[#allocation11 + $0x1c0] sm:$0xff]
    %v642 = vld [vmem:[#allocation11 + $0x1c8] sm:$0xff]
    %v643 = vld [vmem:[#allocation11 + $0x1d0] sm:$0xff]
    %v644 = vld [vmem:[#allocation11 + $0x1d8] sm:$0xff]
    %v645 = vld [vmem:[#allocation11 + $0x1e0] sm:$0xff]
    %v646 = vld [vmem:[#allocation11 + $0x1e8] sm:$0xff]
    %v647 = vld [vmem:[#allocation11 + $0x1f0] sm:$0xff]
    %v648 = vld [vmem:[#allocation11 + $0x1f8] sm:$0xff]
    %v649 = vld [vmem:[#allocation11 + $0x200] sm:$0xff]
    %v650 = vld [vmem:[#allocation11 + $0x208] sm:$0xff]
    %v651 = vld [vmem:[#allocation11 + $0x210] sm:$0xff]
    %v652 = vld [vmem:[#allocation11 + $0x218] sm:$0xff]
    %v653 = vld [vmem:[#allocation11 + $0x220] sm:$0xff]
    %v654 = vld [vmem:[#allocation11 + $0x228] sm:$0xff]
    %v655 = vld [vmem:[#allocation11 + $0x230] sm:$0xff]
    %v656 = vld [vmem:[#allocation11 + $0x238] sm:$0xff]
    %v657 = vld [vmem:[#allocation11 + $0x240] sm:$0xff]
    %v658 = vld [vmem:[#allocation11 + $0x248] sm:$0xff]
    %v659 = vld [vmem:[#allocation11 + $0x250] sm:$0xff]
    %v660 = vld [vmem:[#allocation11 + $0x258] sm:$0xff]
    %v661 = vld [vmem:[#allocation11 + $0x260] sm:$0xff]
    %v662 = vld [vmem:[#allocation11 + $0x268] sm:$0xff]
    %v663 = vld [vmem:[#allocation11 + $0x270] sm:$0xff]
    %v664 = vld [vmem:[#allocation11 + $0x278] sm:$0xff]
    %v665 = vld [vmem:[#allocation11 + $0x280] sm:$0xff]
    %v666 = vld [vmem:[#allocation11 + $0x288] sm:$0xff]
    %v667 = vld [vmem:[#allocation11 + $0x290] sm:$0xff]
    %v668 = vld [vmem:[#allocation11 + $0x298] sm:$0xff]
    %v669 = vld [vmem:[#allocation11 + $0x2a0] sm:$0xff]
    %v670 = vld [vmem:[#allocation11 + $0x2a8] sm:$0xff]
    %v671 = vld [vmem:[#allocation11 + $0x2b0] sm:$0xff]
    %v672 = vld [vmem:[#allocation11 + $0x2b8] sm:$0xff]
    %v673 = vld [vmem:[#allocation11 + $0x2c0] sm:$0xff]
    %v674 = vld [vmem:[#allocation11 + $0x2c8] sm:$0xff]
    %v675 = vld [vmem:[#allocation11 + $0x2d0] sm:$0xff]
    %v676 = vld [vmem:[#allocation11 + $0x2d8] sm:$0xff]
    %v677 = vld [vmem:[#allocation11 + $0x2e0] sm:$0xff]
    %v678 = vld [vmem:[#allocation11 + $0x2e8] sm:$0xff]
    %v679 = vld [vmem:[#allocation11 + $0x2f0] sm:$0xff]
    %v680 = vld [vmem:[#allocation11 + $0x2f8] sm:$0xff]
    %v681 = vld [vmem:[#allocation11 + $0x300] sm:$0xff]
    %v682 = vld [vmem:[#allocation11 + $0x308] sm:$0xff]
    %v683 = vld [vmem:[#allocation11 + $0x310] sm:$0xff]
    %v684 = vld [vmem:[#allocation11 + $0x318] sm:$0xff]
    %v685 = vld [vmem:[#allocation11 + $0x320] sm:$0xff]
    %v686 = vld [vmem:[#allocation11 + $0x328] sm:$0xff]
    %v687 = vld [vmem:[#allocation11 + $0x330] sm:$0xff]
    %v688 = vld [vmem:[#allocation11 + $0x338] sm:$0xff]
    %v689 = vld [vmem:[#allocation11 + $0x340] sm:$0xff]
    %v690 = vld [vmem:[#allocation11 + $0x348] sm:$0xff]
    %v691 = vld [vmem:[#allocation11 + $0x350] sm:$0xff]
    %v692 = vld [vmem:[#allocation11 + $0x358] sm:$0xff]
    %v693 = vld [vmem:[#allocation11 + $0x360] sm:$0xff]
    %v694 = vld [vmem:[#allocation11 + $0x368] sm:$0xff]
    %v695 = vld [vmem:[#allocation11 + $0x370] sm:$0xff]
    %v696 = vld [vmem:[#allocation11 + $0x378] sm:$0xff]
    %v697 = vld [vmem:[#allocation11 + $0x380] sm:$0xff]
    %v698 = vld [vmem:[#allocation11 + $0x388] sm:$0xff]
    %v699 = vld [vmem:[#allocation11 + $0x390] sm:$0xff]
    %v700 = vld [vmem:[#allocation11 + $0x398] sm:$0xff]
    %v701 = vld [vmem:[#allocation11 + $0x3a0] sm:$0xff]
    %v702 = vld [vmem:[#allocation11 + $0x3a8] sm:$0xff]
    %v703 = vld [vmem:[#allocation11 + $0x3b0] sm:$0xff]
    %v704 = vld [vmem:[#allocation11 + $0x3b8] sm:$0xff]
    %v705 = vld [vmem:[#allocation11 + $0x3c0] sm:$0xff]
    %v706 = vld [vmem:[#allocation11 + $0x3c8] sm:$0xff]
    %v707 = vld [vmem:[#allocation11 + $0x3d0] sm:$0xff]
    %v708 = vld [vmem:[#allocation11 + $0x3d8] sm:$0xff]
    %v709 = vld [vmem:[#allocation11 + $0x3e0] sm:$0xff]
    %v710 = vld [vmem:[#allocation11 + $0x3e8] sm:$0xff]
    %v711 = vld [vmem:[#allocation11 + $0x3f0] sm:$0xff]
    %v712 = vld [vmem:[#allocation11 + $0x3f8] sm:$0xff]
    %v713 = vld [vmem:[#allocation13] sm:$0xf]
    %v714 = vld [vmem:[#allocation6] sm:$0xff]
    %v715 = vld [vmem:[%s2] sm:$0xff]
    %s716 = scalar_lea.vmem [#allocation6], 8
    %v717 = vld [vmem:[%s716] sm:$0xff]
    %s718 = scalar_lea.vmem %s2, 8
    %v719 = vld [vmem:[%s718] sm:$0xff]
    %v720 = vpack.c.bf16 %v714, %v714
    %v721 = vpack.c.bf16 %v717, %v717
    %v786 = vunpack.c.l.b16 %v587
    %v787 = vunpack.c.h.b16 %v587
    %v788 = vunpack.c.l.b16 %v588
    %v789 = vunpack.c.h.b16 %v588
    %v790 = vunpack.c.l.b16 %v591
    %v791 = vunpack.c.h.b16 %v591
    %v792 = vunpack.c.l.b16 %v592
    %v793 = vunpack.c.h.b16 %v592
    %v794 = vunpack.c.l.b16 %v595
    %v795 = vunpack.c.h.b16 %v595
    %v796 = vunpack.c.l.b16 %v596
    %v797 = vunpack.c.h.b16 %v596
    %v798 = vunpack.c.l.b16 %v599
    %v799 = vunpack.c.h.b16 %v599
    %v800 = vunpack.c.l.b16 %v600
    %v801 = vunpack.c.h.b16 %v600
    %v802 = vunpack.c.l.b16 %v603
    %v803 = vunpack.c.h.b16 %v603
    %v804 = vunpack.c.l.b16 %v604
    %v805 = vunpack.c.h.b16 %v604
    %v806 = vunpack.c.l.b16 %v607
    %v807 = vunpack.c.h.b16 %v607
    %v808 = vunpack.c.l.b16 %v608
    %v809 = vunpack.c.h.b16 %v608
    %v810 = vunpack.c.l.b16 %v611
    %v811 = vunpack.c.h.b16 %v611
    %v812 = vunpack.c.l.b16 %v612
    %v813 = vunpack.c.h.b16 %v612
    %v814 = vunpack.c.l.b16 %v615
    %v815 = vunpack.c.h.b16 %v615
    %v816 = vunpack.c.l.b16 %v616
    %v817 = vunpack.c.h.b16 %v616
    %v818 = vunpack.c.l.b16 %v619
    %v819 = vunpack.c.h.b16 %v619
    %v820 = vunpack.c.l.b16 %v620
    %v821 = vunpack.c.h.b16 %v620
    %v822 = vunpack.c.l.b16 %v623
    %v823 = vunpack.c.h.b16 %v623
    %v824 = vunpack.c.l.b16 %v624
    %v825 = vunpack.c.h.b16 %v624
    %v826 = vunpack.c.l.b16 %v627
    %v827 = vunpack.c.h.b16 %v627
    %v828 = vunpack.c.l.b16 %v628
    %v829 = vunpack.c.h.b16 %v628
    %v830 = vunpack.c.l.b16 %v631
    %v831 = vunpack.c.h.b16 %v631
    %v832 = vunpack.c.l.b16 %v632
    %v833 = vunpack.c.h.b16 %v632
    %v834 = vunpack.c.l.b16 %v635
    %v835 = vunpack.c.h.b16 %v635
    %v836 = vunpack.c.l.b16 %v636
    %v837 = vunpack.c.h.b16 %v636
    %v838 = vunpack.c.l.b16 %v639
    %v839 = vunpack.c.h.b16 %v639
    %v840 = vunpack.c.l.b16 %v640
    %v841 = vunpack.c.h.b16 %v640
    %v842 = vunpack.c.l.b16 %v643
    %v843 = vunpack.c.h.b16 %v643
    %v844 = vunpack.c.l.b16 %v644
    %v845 = vunpack.c.h.b16 %v644
    %v846 = vunpack.c.l.b16 %v647
    %v847 = vunpack.c.h.b16 %v647
    %v848 = vunpack.c.l.b16 %v648
    %v849 = vunpack.c.h.b16 %v648
    %v850 = vunpack.c.l.b16 %v651
    %v851 = vunpack.c.h.b16 %v651
    %v852 = vunpack.c.l.b16 %v652
    %v853 = vunpack.c.h.b16 %v652
    %v854 = vunpack.c.l.b16 %v655
    %v855 = vunpack.c.h.b16 %v655
    %v856 = vunpack.c.l.b16 %v656
    %v857 = vunpack.c.h.b16 %v656
    %v858 = vunpack.c.l.b16 %v659
    %v859 = vunpack.c.h.b16 %v659
    %v860 = vunpack.c.l.b16 %v660
    %v861 = vunpack.c.h.b16 %v660
    %v862 = vunpack.c.l.b16 %v663
    %v863 = vunpack.c.h.b16 %v663
    %v864 = vunpack.c.l.b16 %v664
    %v865 = vunpack.c.h.b16 %v664
    %v866 = vunpack.c.l.b16 %v667
    %v867 = vunpack.c.h.b16 %v667
    %v868 = vunpack.c.l.b16 %v668
    %v869 = vunpack.c.h.b16 %v668
    %v870 = vunpack.c.l.b16 %v671
    %v871 = vunpack.c.h.b16 %v671
    %v872 = vunpack.c.l.b16 %v672
    %v873 = vunpack.c.h.b16 %v672
    %v874 = vunpack.c.l.b16 %v675
    %v875 = vunpack.c.h.b16 %v675
    %v876 = vunpack.c.l.b16 %v676
    %v877 = vunpack.c.h.b16 %v676
    %v878 = vunpack.c.l.b16 %v679
    %v879 = vunpack.c.h.b16 %v679
    %v880 = vunpack.c.l.b16 %v680
    %v881 = vunpack.c.h.b16 %v680
    %v882 = vunpack.c.l.b16 %v683
    %v883 = vunpack.c.h.b16 %v683
    %v884 = vunpack.c.l.b16 %v684
    %v885 = vunpack.c.h.b16 %v684
    %v886 = vunpack.c.l.b16 %v687
    %v887 = vunpack.c.h.b16 %v687
    %v888 = vunpack.c.l.b16 %v688
    %v889 = vunpack.c.h.b16 %v688
    %v890 = vunpack.c.l.b16 %v691
    %v891 = vunpack.c.h.b16 %v691
    %v892 = vunpack.c.l.b16 %v692
    %v893 = vunpack.c.h.b16 %v692
    %v894 = vunpack.c.l.b16 %v695
    %v895 = vunpack.c.h.b16 %v695
    %v896 = vunpack.c.l.b16 %v696
    %v897 = vunpack.c.h.b16 %v696
    %v898 = vunpack.c.l.b16 %v699
    %v899 = vunpack.c.h.b16 %v699
    %v900 = vunpack.c.l.b16 %v700
    %v901 = vunpack.c.h.b16 %v700
    %v902 = vunpack.c.l.b16 %v703
    %v903 = vunpack.c.h.b16 %v703
    %v904 = vunpack.c.l.b16 %v704
    %v905 = vunpack.c.h.b16 %v704
    %v906 = vunpack.c.l.b16 %v707
    %v907 = vunpack.c.h.b16 %v707
    %v908 = vunpack.c.l.b16 %v708
    %v909 = vunpack.c.h.b16 %v708
    %v910 = vunpack.c.l.b16 %v711
    %v911 = vunpack.c.h.b16 %v711
    %v912 = vunpack.c.l.b16 %v712
    %v913 = vunpack.c.h.b16 %v712
    %v914 = vpack.c.b16 %v790, %v786
    %v915 = vpack.c.b16 %v791, %v787
    %v916 = vpack.c.b16 %v792, %v788
    %v917 = vpack.c.b16 %v793, %v789
    %v918 = vpack.c.b16 %v798, %v794
    %v919 = vpack.c.b16 %v799, %v795
    %v920 = vpack.c.b16 %v800, %v796
    %v921 = vpack.c.b16 %v801, %v797
    %v922 = vpack.c.b16 %v806, %v802
    %v923 = vpack.c.b16 %v807, %v803
    %v924 = vpack.c.b16 %v808, %v804
    %v925 = vpack.c.b16 %v809, %v805
    %v926 = vpack.c.b16 %v814, %v810
    %v927 = vpack.c.b16 %v815, %v811
    %v928 = vpack.c.b16 %v816, %v812
    %v929 = vpack.c.b16 %v817, %v813
    %v930 = vpack.c.b16 %v822, %v818
    %v931 = vpack.c.b16 %v823, %v819
    %v932 = vpack.c.b16 %v824, %v820
    %v933 = vpack.c.b16 %v825, %v821
    %v934 = vpack.c.b16 %v830, %v826
    %v935 = vpack.c.b16 %v831, %v827
    %v936 = vpack.c.b16 %v832, %v828
    %v937 = vpack.c.b16 %v833, %v829
    %v938 = vpack.c.b16 %v838, %v834
    %v939 = vpack.c.b16 %v839, %v835
    %v940 = vpack.c.b16 %v840, %v836
    %v941 = vpack.c.b16 %v841, %v837
    %v942 = vpack.c.b16 %v846, %v842
    %v943 = vpack.c.b16 %v847, %v843
    %v944 = vpack.c.b16 %v848, %v844
    %v945 = vpack.c.b16 %v849, %v845
    %v946 = vpack.c.b16 %v854, %v850
    %v947 = vpack.c.b16 %v855, %v851
    %v948 = vpack.c.b16 %v856, %v852
    %v949 = vpack.c.b16 %v857, %v853
    %v950 = vpack.c.b16 %v862, %v858
    %v951 = vpack.c.b16 %v863, %v859
    %v952 = vpack.c.b16 %v864, %v860
    %v953 = vpack.c.b16 %v865, %v861
    %v954 = vpack.c.b16 %v870, %v866
    %v955 = vpack.c.b16 %v871, %v867
    %v956 = vpack.c.b16 %v872, %v868
    %v957 = vpack.c.b16 %v873, %v869
    %v958 = vpack.c.b16 %v878, %v874
    %v959 = vpack.c.b16 %v879, %v875
    %v960 = vpack.c.b16 %v880, %v876
    %v961 = vpack.c.b16 %v881, %v877
    %v962 = vpack.c.b16 %v886, %v882
    %v963 = vpack.c.b16 %v887, %v883
    %v964 = vpack.c.b16 %v888, %v884
    %v965 = vpack.c.b16 %v889, %v885
    %v966 = vpack.c.b16 %v894, %v890
    %v967 = vpack.c.b16 %v895, %v891
    %v968 = vpack.c.b16 %v896, %v892
    %v969 = vpack.c.b16 %v897, %v893
    %v970 = vpack.c.b16 %v902, %v898
    %v971 = vpack.c.b16 %v903, %v899
    %v972 = vpack.c.b16 %v904, %v900
    %v973 = vpack.c.b16 %v905, %v901
    %v974 = vpack.c.b16 %v910, %v906
    %v975 = vpack.c.b16 %v911, %v907
    %v976 = vpack.c.b16 %v912, %v908
    %v977 = vpack.c.b16 %v913, %v909
    %1042 = vmatprep.subr.bf16.mxu0 %v915
    %1043 = vmatpush1.bf16.msra.mxu0 %v914
    %1044 = vmatprep.subr.bf16.mxu0 %v919
    %1045 = vmatpush1.bf16.msra.mxu0 %v918
    %1046 = vmatprep.subr.bf16.mxu0 %v923
    %1047 = vmatpush1.bf16.msra.mxu0 %v922
    %1048 = vmatprep.subr.bf16.mxu0 %v927
    %1049 = vmatpush1.bf16.msra.mxu0 %v926
    %1050 = vmatprep.subr.bf16.mxu0 %v931
    %1051 = vmatpush1.bf16.msra.mxu0 %v930
    %1052 = vmatprep.subr.bf16.mxu0 %v935
    %1053 = vmatpush1.bf16.msra.mxu0 %v934
    %1054 = vmatprep.subr.bf16.mxu0 %v939
    %1055 = vmatpush1.bf16.msra.mxu0 %v938
    %1056 = vmatprep.subr.bf16.mxu0 %v943
    %1057 = vmatpush1.bf16.msra.mxu0 %v942
    %1058 = vmatprep.subr.bf16.mxu0 %v947
    %1059 = vmatpush1.bf16.msra.mxu0 %v946
    %1060 = vmatprep.subr.bf16.mxu0 %v951
    %1061 = vmatpush1.bf16.msra.mxu0 %v950
    %1062 = vmatprep.subr.bf16.mxu0 %v955
    %1063 = vmatpush1.bf16.msra.mxu0 %v954
    %1064 = vmatprep.subr.bf16.mxu0 %v959
    %1065 = vmatpush1.bf16.msra.mxu0 %v958
    %1066 = vmatprep.subr.bf16.mxu0 %v963
    %1067 = vmatpush1.bf16.msra.mxu0 %v962
    %1068 = vmatprep.subr.bf16.mxu0 %v967
    %1069 = vmatpush1.bf16.msra.mxu0 %v966
    %1070 = vmatprep.subr.bf16.mxu0 %v971
    %1071 = vmatpush1.bf16.msra.mxu0 %v970
    %1072 = vmatprep.subr.bf16.mxu0 %v975
    %1073 = vmatpush1.bf16.msra.mxu0 %v974
    %1074 = vmatprep.mubr.bf16.mxu0 %v721
    %1075 = vmatmul.mubr.bf16.gmra.mrb[0].mxu0 %v720
    %v1076 = vpop.f32.mrb[0].mxu0
    %v1077 = vadd.f32 0.0, %v1076
    %v1078 = vpop.f32.mrb[0].mxu0
    %v1079 = vadd.f32 0.0, %v1078
    %v1080 = vpop.f32.mrb[0].mxu0
    %v1081 = vpop.f32.mrb[0].mxu0
    %1082 = vdwg.mxu0
    %1083 = vmatprep.subr.bf16.mxu0 %v917
    %1084 = vmatpush1.bf16.msra.mxu0 %v916
    %1085 = vmatprep.subr.bf16.mxu0 %v921
    %1086 = vmatpush1.bf16.msra.mxu0 %v920
    %1087 = vmatprep.subr.bf16.mxu0 %v925
    %1088 = vmatpush1.bf16.msra.mxu0 %v924
    %1089 = vmatprep.subr.bf16.mxu0 %v929
    %1090 = vmatpush1.bf16.msra.mxu0 %v928
    %1091 = vmatprep.subr.bf16.mxu0 %v933
    %1092 = vmatpush1.bf16.msra.mxu0 %v932
    %1093 = vmatprep.subr.bf16.mxu0 %v937
    %1094 = vmatpush1.bf16.msra.mxu0 %v936
    %1095 = vmatprep.subr.bf16.mxu0 %v941
    %1096 = vmatpush1.bf16.msra.mxu0 %v940
    %1097 = vmatprep.subr.bf16.mxu0 %v945
    %1098 = vmatpush1.bf16.msra.mxu0 %v944
    %1099 = vmatprep.subr.bf16.mxu0 %v949
    %1100 = vmatpush1.bf16.msra.mxu0 %v948
    %1101 = vmatprep.subr.bf16.mxu0 %v953
    %1102 = vmatpush1.bf16.msra.mxu0 %v952
    %1103 = vmatprep.subr.bf16.mxu0 %v957
    %1104 = vmatpush1.bf16.msra.mxu0 %v956
    %1105 = vmatprep.subr.bf16.mxu0 %v961
    %1106 = vmatpush1.bf16.msra.mxu0 %v960
    %1107 = vmatprep.subr.bf16.mxu0 %v965
    %1108 = vmatpush1.bf16.msra.mxu0 %v964
    %1109 = vmatprep.subr.bf16.mxu0 %v969
    %1110 = vmatpush1.bf16.msra.mxu0 %v968
    %1111 = vmatprep.subr.bf16.mxu0 %v973
    %1112 = vmatpush1.bf16.msra.mxu0 %v972
    %1113 = vmatprep.subr.bf16.mxu0 %v977
    %1114 = vmatpush1.bf16.msra.mxu0 %v976
    %1115 = vmatprep.mubr.bf16.mxu0 %v721
    %1116 = vmatmul.mubr.bf16.gmra.mrb[0].mxu0 %v720
    %v1117 = vpop.f32.mrb[0].mxu0
    %v1118 = vadd.f32 0.0, %v1117
    %v1119 = vpop.f32.mrb[0].mxu0
    %v1120 = vadd.f32 0.0, %v1119
    %v1121 = vpop.f32.mrb[0].mxu0
    %v1122 = vpop.f32.mrb[0].mxu0
    %1123 = vdwg.mxu0
    %v1124 = vld [vmem:[#allocation2] sm:$0xff]
    %v1125 = vld [vmem:[#allocation2 + $0x8] sm:$0xff]
    %v1126 = vld [vmem:[#allocation2 + $0x10] sm:$0xff]
    %v1127 = vld [vmem:[#allocation2 + $0x18] sm:$0xff]
    %v1128 = vadd.f32 %v1124, %v1077
    %v1129 = vadd.f32 %v1125, %v1079
    %v1130 = vadd.f32 %v1126, %v1118
    %v1131 = vadd.f32 %v1127, %v1120
    %v1132 = vmul.f32 %v1128, 0.5
    %v1133 = vtanh.pop %v1132
    %v1134 = vmul.f32 %v1133, 0.5
    %v1135 = vadd.f32 %v1134, 0.5
    %v1136 = vmul.f32 %v1129, 0.5
    %v1137 = vtanh.pop %v1136
    %v1138 = vmul.f32 %v1137, 0.5
    %v1139 = vadd.f32 %v1138, 0.5
    %v1140 = vtanh.pop %v1130
    %v1141 = vmul.f32 %v1131, 0.5
    %v1142 = vtanh.pop %v1141
    %v1143 = vmul.f32 %v1142, 0.5
    %v1144 = vadd.f32 %v1143, 0.5
    %v1145 = vmul.f32 %v1139, %v715
    %v1146 = vmul.f32 %v1135, %v1140
    %v1147 = vadd.f32 %v1145, %v1146
    %v1148 = vtanh.pop %v1147
    %v1149 = vmul.f32 %v1144, %v1148
    %v1150 = vpack.c.bf16 %v1149, %v1149
    %v1215 = vunpack.c.l.b16 %v585
    %v1216 = vunpack.c.h.b16 %v585
    %v1217 = vunpack.c.l.b16 %v586
    %v1218 = vunpack.c.h.b16 %v586
    %v1219 = vunpack.c.l.b16 %v589
    %v1220 = vunpack.c.h.b16 %v589
    %v1221 = vunpack.c.l.b16 %v590
    %v1222 = vunpack.c.h.b16 %v590
    %v1223 = vunpack.c.l.b16 %v593
    %v1224 = vunpack.c.h.b16 %v593
    %v1225 = vunpack.c.l.b16 %v594
    %v1226 = vunpack.c.h.b16 %v594
    %v1227 = vunpack.c.l.b16 %v597
    %v1228 = vunpack.c.h.b16 %v597
    %v1229 = vunpack.c.l.b16 %v598
    %v1230 = vunpack.c.h.b16 %v598
    %v1231 = vunpack.c.l.b16 %v601
    %v1232 = vunpack.c.h.b16 %v601
    %v1233 = vunpack.c.l.b16 %v602
    %v1234 = vunpack.c.h.b16 %v602
    %v1235 = vunpack.c.l.b16 %v605
    %v1236 = vunpack.c.h.b16 %v605
    %v1237 = vunpack.c.l.b16 %v606
    %v1238 = vunpack.c.h.b16 %v606
    %v1239 = vunpack.c.l.b16 %v609
    %v1240 = vunpack.c.h.b16 %v609
    %v1241 = vunpack.c.l.b16 %v610
    %v1242 = vunpack.c.h.b16 %v610
    %v1243 = vunpack.c.l.b16 %v613
    %v1244 = vunpack.c.h.b16 %v613
    %v1245 = vunpack.c.l.b16 %v614
    %v1246 = vunpack.c.h.b16 %v614
    %v1247 = vunpack.c.l.b16 %v617
    %v1248 = vunpack.c.h.b16 %v617
    %v1249 = vunpack.c.l.b16 %v618
    %v1250 = vunpack.c.h.b16 %v618
    %v1251 = vunpack.c.l.b16 %v621
    %v1252 = vunpack.c.h.b16 %v621
    %v1253 = vunpack.c.l.b16 %v622
    %v1254 = vunpack.c.h.b16 %v622
    %v1255 = vunpack.c.l.b16 %v625
    %v1256 = vunpack.c.h.b16 %v625
    %v1257 = vunpack.c.l.b16 %v626
    %v1258 = vunpack.c.h.b16 %v626
    %v1259 = vunpack.c.l.b16 %v629
    %v1260 = vunpack.c.h.b16 %v629
    %v1261 = vunpack.c.l.b16 %v630
    %v1262 = vunpack.c.h.b16 %v630
    %v1263 = vunpack.c.l.b16 %v633
    %v1264 = vunpack.c.h.b16 %v633
    %v1265 = vunpack.c.l.b16 %v634
    %v1266 = vunpack.c.h.b16 %v634
    %v1267 = vunpack.c.l.b16 %v637
    %v1268 = vunpack.c.h.b16 %v637
    %v1269 = vunpack.c.l.b16 %v638
    %v1270 = vunpack.c.h.b16 %v638
    %v1271 = vunpack.c.l.b16 %v641
    %v1272 = vunpack.c.h.b16 %v641
    %v1273 = vunpack.c.l.b16 %v642
    %v1274 = vunpack.c.h.b16 %v642
    %v1275 = vunpack.c.l.b16 %v645
    %v1276 = vunpack.c.h.b16 %v645
    %v1277 = vunpack.c.l.b16 %v646
    %v1278 = vunpack.c.h.b16 %v646
    %v1279 = vunpack.c.l.b16 %v649
    %v1280 = vunpack.c.h.b16 %v649
    %v1281 = vunpack.c.l.b16 %v650
    %v1282 = vunpack.c.h.b16 %v650
    %v1283 = vunpack.c.l.b16 %v653
    %v1284 = vunpack.c.h.b16 %v653
    %v1285 = vunpack.c.l.b16 %v654
    %v1286 = vunpack.c.h.b16 %v654
    %v1287 = vunpack.c.l.b16 %v657
    %v1288 = vunpack.c.h.b16 %v657
    %v1289 = vunpack.c.l.b16 %v658
    %v1290 = vunpack.c.h.b16 %v658
    %v1291 = vunpack.c.l.b16 %v661
    %v1292 = vunpack.c.h.b16 %v661
    %v1293 = vunpack.c.l.b16 %v662
    %v1294 = vunpack.c.h.b16 %v662
    %v1295 = vunpack.c.l.b16 %v665
    %v1296 = vunpack.c.h.b16 %v665
    %v1297 = vunpack.c.l.b16 %v666
    %v1298 = vunpack.c.h.b16 %v666
    %v1299 = vunpack.c.l.b16 %v669
    %v1300 = vunpack.c.h.b16 %v669
    %v1301 = vunpack.c.l.b16 %v670
    %v1302 = vunpack.c.h.b16 %v670
    %v1303 = vunpack.c.l.b16 %v673
    %v1304 = vunpack.c.h.b16 %v673
    %v1305 = vunpack.c.l.b16 %v674
    %v1306 = vunpack.c.h.b16 %v674
    %v1307 = vunpack.c.l.b16 %v677
    %v1308 = vunpack.c.h.b16 %v677
    %v1309 = vunpack.c.l.b16 %v678
    %v1310 = vunpack.c.h.b16 %v678
    %v1311 = vunpack.c.l.b16 %v681
    %v1312 = vunpack.c.h.b16 %v681
    %v1313 = vunpack.c.l.b16 %v682
    %v1314 = vunpack.c.h.b16 %v682
    %v1315 = vunpack.c.l.b16 %v685
    %v1316 = vunpack.c.h.b16 %v685
    %v1317 = vunpack.c.l.b16 %v686
    %v1318 = vunpack.c.h.b16 %v686
    %v1319 = vunpack.c.l.b16 %v689
    %v1320 = vunpack.c.h.b16 %v689
    %v1321 = vunpack.c.l.b16 %v690
    %v1322 = vunpack.c.h.b16 %v690
    %v1323 = vunpack.c.l.b16 %v693
    %v1324 = vunpack.c.h.b16 %v693
    %v1325 = vunpack.c.l.b16 %v694
    %v1326 = vunpack.c.h.b16 %v694
    %v1327 = vunpack.c.l.b16 %v697
    %v1328 = vunpack.c.h.b16 %v697
    %v1329 = vunpack.c.l.b16 %v698
    %v1330 = vunpack.c.h.b16 %v698
    %v1331 = vunpack.c.l.b16 %v701
    %v1332 = vunpack.c.h.b16 %v701
    %v1333 = vunpack.c.l.b16 %v702
    %v1334 = vunpack.c.h.b16 %v702
    %v1335 = vunpack.c.l.b16 %v705
    %v1336 = vunpack.c.h.b16 %v705
    %v1337 = vunpack.c.l.b16 %v706
    %v1338 = vunpack.c.h.b16 %v706
    %v1339 = vunpack.c.l.b16 %v709
    %v1340 = vunpack.c.h.b16 %v709
    %v1341 = vunpack.c.l.b16 %v710
    %v1342 = vunpack.c.h.b16 %v710
    %v1343 = vpack.c.b16 %v1219, %v1215
    %v1344 = vpack.c.b16 %v1220, %v1216
    %v1345 = vpack.c.b16 %v1221, %v1217
    %v1346 = vpack.c.b16 %v1222, %v1218
    %v1347 = vpack.c.b16 %v1227, %v1223
    %v1348 = vpack.c.b16 %v1228, %v1224
    %v1349 = vpack.c.b16 %v1229, %v1225
    %v1350 = vpack.c.b16 %v1230, %v1226
    %v1351 = vpack.c.b16 %v1235, %v1231
    %v1352 = vpack.c.b16 %v1236, %v1232
    %v1353 = vpack.c.b16 %v1237, %v1233
    %v1354 = vpack.c.b16 %v1238, %v1234
    %v1355 = vpack.c.b16 %v1243, %v1239
    %v1356 = vpack.c.b16 %v1244, %v1240
    %v1357 = vpack.c.b16 %v1245, %v1241
    %v1358 = vpack.c.b16 %v1246, %v1242
    %v1359 = vpack.c.b16 %v1251, %v1247
    %v1360 = vpack.c.b16 %v1252, %v1248
    %v1361 = vpack.c.b16 %v1253, %v1249
    %v1362 = vpack.c.b16 %v1254, %v1250
    %v1363 = vpack.c.b16 %v1259, %v1255
    %v1364 = vpack.c.b16 %v1260, %v1256
    %v1365 = vpack.c.b16 %v1261, %v1257
    %v1366 = vpack.c.b16 %v1262, %v1258
    %v1367 = vpack.c.b16 %v1267, %v1263
    %v1368 = vpack.c.b16 %v1268, %v1264
    %v1369 = vpack.c.b16 %v1269, %v1265
    %v1370 = vpack.c.b16 %v1270, %v1266
    %v1371 = vpack.c.b16 %v1275, %v1271
    %v1372 = vpack.c.b16 %v1276, %v1272
    %v1373 = vpack.c.b16 %v1277, %v1273
    %v1374 = vpack.c.b16 %v1278, %v1274
    %v1375 = vpack.c.b16 %v1283, %v1279
    %v1376 = vpack.c.b16 %v1284, %v1280
    %v1377 = vpack.c.b16 %v1285, %v1281
    %v1378 = vpack.c.b16 %v1286, %v1282
    %v1379 = vpack.c.b16 %v1291, %v1287
    %v1380 = vpack.c.b16 %v1292, %v1288
    %v1381 = vpack.c.b16 %v1293, %v1289
    %v1382 = vpack.c.b16 %v1294, %v1290
    %v1383 = vpack.c.b16 %v1299, %v1295
    %v1384 = vpack.c.b16 %v1300, %v1296
    %v1385 = vpack.c.b16 %v1301, %v1297
    %v1386 = vpack.c.b16 %v1302, %v1298
    %v1387 = vpack.c.b16 %v1307, %v1303
    %v1388 = vpack.c.b16 %v1308, %v1304
    %v1389 = vpack.c.b16 %v1309, %v1305
    %v1390 = vpack.c.b16 %v1310, %v1306
    %v1391 = vpack.c.b16 %v1315, %v1311
    %v1392 = vpack.c.b16 %v1316, %v1312
    %v1393 = vpack.c.b16 %v1317, %v1313
    %v1394 = vpack.c.b16 %v1318, %v1314
    %v1395 = vpack.c.b16 %v1323, %v1319
    %v1396 = vpack.c.b16 %v1324, %v1320
    %v1397 = vpack.c.b16 %v1325, %v1321
    %v1398 = vpack.c.b16 %v1326, %v1322
    %v1399 = vpack.c.b16 %v1331, %v1327
    %v1400 = vpack.c.b16 %v1332, %v1328
    %v1401 = vpack.c.b16 %v1333, %v1329
    %v1402 = vpack.c.b16 %v1334, %v1330
    %v1403 = vpack.c.b16 %v1339, %v1335
    %v1404 = vpack.c.b16 %v1340, %v1336
    %v1405 = vpack.c.b16 %v1341, %v1337
    %v1406 = vpack.c.b16 %v1342, %v1338
    %1471 = vmatprep.subr.bf16.mxu0 %v1344
    %1472 = vmatpush1.bf16.msra.mxu0 %v1343
    %1473 = vmatprep.subr.bf16.mxu0 %v1348
    %1474 = vmatpush1.bf16.msra.mxu0 %v1347
    %1475 = vmatprep.subr.bf16.mxu0 %v1352
    %1476 = vmatpush1.bf16.msra.mxu0 %v1351
    %1477 = vmatprep.subr.bf16.mxu0 %v1356
    %1478 = vmatpush1.bf16.msra.mxu0 %v1355
    %1479 = vmatprep.subr.bf16.mxu0 %v1360
    %1480 = vmatpush1.bf16.msra.mxu0 %v1359
    %1481 = vmatprep.subr.bf16.mxu0 %v1364
    %1482 = vmatpush1.bf16.msra.mxu0 %v1363
    %1483 = vmatprep.subr.bf16.mxu0 %v1368
    %1484 = vmatpush1.bf16.msra.mxu0 %v1367
    %1485 = vmatprep.subr.bf16.mxu0 %v1372
    %1486 = vmatpush1.bf16.msra.mxu0 %v1371
    %1487 = vmatprep.subr.bf16.mxu0 %v1376
    %1488 = vmatpush1.bf16.msra.mxu0 %v1375
    %1489 = vmatprep.subr.bf16.mxu0 %v1380
    %1490 = vmatpush1.bf16.msra.mxu0 %v1379
    %1491 = vmatprep.subr.bf16.mxu0 %v1384
    %1492 = vmatpush1.bf16.msra.mxu0 %v1383
    %1493 = vmatprep.subr.bf16.mxu0 %v1388
    %1494 = vmatpush1.bf16.msra.mxu0 %v1387
    %1495 = vmatprep.subr.bf16.mxu0 %v1392
    %1496 = vmatpush1.bf16.msra.mxu0 %v1391
    %1497 = vmatprep.subr.bf16.mxu0 %v1396
    %1498 = vmatpush1.bf16.msra.mxu0 %v1395
    %1499 = vmatprep.subr.bf16.mxu0 %v1400
    %1500 = vmatpush1.bf16.msra.mxu0 %v1399
    %1501 = vmatprep.subr.bf16.mxu0 %v1404
    %1502 = vmatpush1.bf16.msra.mxu0 %v1403
    %1503 = vmatprep.mubr.bf16.mxu0 %v721
    %1504 = vmatmul.mubr.bf16.gmra.mrb[0].mxu0 %v1150
    %v1505 = vpop.f32.mrb[0].mxu0
    %v1506 = vadd.f32 0.0, %v1505
    %v1507 = vpop.f32.mrb[0].mxu0
    %v1508 = vadd.f32 0.0, %v1507
    %v1509 = vpop.f32.mrb[0].mxu0
    %v1510 = vpop.f32.mrb[0].mxu0
    %1511 = vdwg.mxu0
    %1512 = vmatprep.subr.bf16.mxu0 %v1346
    %1513 = vmatpush1.bf16.msra.mxu0 %v1345
    %1514 = vmatprep.subr.bf16.mxu0 %v1350
    %1515 = vmatpush1.bf16.msra.mxu0 %v1349
    %1516 = vmatprep.subr.bf16.mxu0 %v1354
    %1517 = vmatpush1.bf16.msra.mxu0 %v1353
    %1518 = vmatprep.subr.bf16.mxu0 %v1358
    %1519 = vmatpush1.bf16.msra.mxu0 %v1357
    %1520 = vmatprep.subr.bf16.mxu0 %v1362
    %1521 = vmatpush1.bf16.msra.mxu0 %v1361
    %1522 = vmatprep.subr.bf16.mxu0 %v1366
    %1523 = vmatpush1.bf16.msra.mxu0 %v1365
    %1524 = vmatprep.subr.bf16.mxu0 %v1370
    %1525 = vmatpush1.bf16.msra.mxu0 %v1369
    %1526 = vmatprep.subr.bf16.mxu0 %v1374
    %1527 = vmatpush1.bf16.msra.mxu0 %v1373
    %1528 = vmatprep.subr.bf16.mxu0 %v1378
    %1529 = vmatpush1.bf16.msra.mxu0 %v1377
    %1530 = vmatprep.subr.bf16.mxu0 %v1382
    %1531 = vmatpush1.bf16.msra.mxu0 %v1381
    %1532 = vmatprep.subr.bf16.mxu0 %v1386
    %1533 = vmatpush1.bf16.msra.mxu0 %v1385
    %1534 = vmatprep.subr.bf16.mxu0 %v1390
    %1535 = vmatpush1.bf16.msra.mxu0 %v1389
    %1536 = vmatprep.subr.bf16.mxu0 %v1394
    %1537 = vmatpush1.bf16.msra.mxu0 %v1393
    %1538 = vmatprep.subr.bf16.mxu0 %v1398
    %1539 = vmatpush1.bf16.msra.mxu0 %v1397
    %1540 = vmatprep.subr.bf16.mxu0 %v1402
    %1541 = vmatpush1.bf16.msra.mxu0 %v1401
    %1542 = vmatprep.subr.bf16.mxu0 %v1406
    %1543 = vmatpush1.bf16.msra.mxu0 %v1405
    %1544 = vmatprep.mubr.bf16.mxu0 %v721
    %1545 = vmatmul.mubr.bf16.gmra.mrb[0].mxu0 %v1150
    %v1546 = vpop.f32.mrb[0].mxu0
    %v1547 = vadd.f32 0.0, %v1546
    %v1548 = vpop.f32.mrb[0].mxu0
    %v1549 = vadd.f32 0.0, %v1548
    %v1550 = vpop.f32.mrb[0].mxu0
    %v1551 = vpop.f32.mrb[0].mxu0
    %1552 = vdwg.mxu0
    %1553 = vmatprep.subr.bf16.mxu0 %v915
    %1554 = vmatpush1.bf16.msra.mxu0 %v914
    %1555 = vmatprep.subr.bf16.mxu0 %v919
    %1556 = vmatpush1.bf16.msra.mxu0 %v918
    %1557 = vmatprep.subr.bf16.mxu0 %v923
    %1558 = vmatpush1.bf16.msra.mxu0 %v922
    %1559 = vmatprep.subr.bf16.mxu0 %v927
    %1560 = vmatpush1.bf16.msra.mxu0 %v926
    %1561 = vmatprep.subr.bf16.mxu0 %v931
    %1562 = vmatpush1.bf16.msra.mxu0 %v930
    %1563 = vmatprep.subr.bf16.mxu0 %v935
    %1564 = vmatpush1.bf16.msra.mxu0 %v934
    %1565 = vmatprep.subr.bf16.mxu0 %v939
    %1566 = vmatpush1.bf16.msra.mxu0 %v938
    %1567 = vmatprep.subr.bf16.mxu0 %v943
    %1568 = vmatpush1.bf16.msra.mxu0 %v942
    %1569 = vmatprep.subr.bf16.mxu0 %v947
    %1570 = vmatpush1.bf16.msra.mxu0 %v946
    %1571 = vmatprep.subr.bf16.mxu0 %v951
    %1572 = vmatpush1.bf16.msra.mxu0 %v950
    %1573 = vmatprep.subr.bf16.mxu0 %v955
    %1574 = vmatpush1.bf16.msra.mxu0 %v954
    %1575 = vmatprep.subr.bf16.mxu0 %v959
    %1576 = vmatpush1.bf16.msra.mxu0 %v958
    %1577 = vmatprep.subr.bf16.mxu0 %v963
    %1578 = vmatpush1.bf16.msra.mxu0 %v962
    %1579 = vmatprep.subr.bf16.mxu0 %v967
    %1580 = vmatpush1.bf16.msra.mxu0 %v966
    %1581 = vmatprep.subr.bf16.mxu0 %v971
    %1582 = vmatpush1.bf16.msra.mxu0 %v970
    %1583 = vmatprep.subr.bf16.mxu0 %v975
    %1584 = vmatpush1.bf16.msra.mxu0 %v974
    %1585 = vmatprep.mubr.bf16.mxu0 %v721
    %1586 = vmatmul.mubr.bf16.gmra.mrb[0].mxu0 %v1150
    %v1587 = vpop.f32.mrb[0].mxu0
    %v1588 = vadd.f32 0.0, %v1587
    %v1589 = vpop.f32.mrb[0].mxu0
    %v1590 = vadd.f32 0.0, %v1589
    %v1591 = vpop.f32.mrb[0].mxu0
    %v1592 = vpop.f32.mrb[0].mxu0
    %1593 = vdwg.mxu0
    %1594 = vmatprep.subr.bf16.mxu0 %v917
    %1595 = vmatpush1.bf16.msra.mxu0 %v916
    %1596 = vmatprep.subr.bf16.mxu0 %v921
    %1597 = vmatpush1.bf16.msra.mxu0 %v920
    %1598 = vmatprep.subr.bf16.mxu0 %v925
    %1599 = vmatpush1.bf16.msra.mxu0 %v924
    %1600 = vmatprep.subr.bf16.mxu0 %v929
    %1601 = vmatpush1.bf16.msra.mxu0 %v928
    %1602 = vmatprep.subr.bf16.mxu0 %v933
    %1603 = vmatpush1.bf16.msra.mxu0 %v932
    %1604 = vmatprep.subr.bf16.mxu0 %v937
    %1605 = vmatpush1.bf16.msra.mxu0 %v936
    %1606 = vmatprep.subr.bf16.mxu0 %v941
    %1607 = vmatpush1.bf16.msra.mxu0 %v940
    %1608 = vmatprep.subr.bf16.mxu0 %v945
    %1609 = vmatpush1.bf16.msra.mxu0 %v944
    %1610 = vmatprep.subr.bf16.mxu0 %v949
    %1611 = vmatpush1.bf16.msra.mxu0 %v948
    %1612 = vmatprep.subr.bf16.mxu0 %v953
    %1613 = vmatpush1.bf16.msra.mxu0 %v952
    %1614 = vmatprep.subr.bf16.mxu0 %v957
    %1615 = vmatpush1.bf16.msra.mxu0 %v956
    %1616 = vmatprep.subr.bf16.mxu0 %v961
    %1617 = vmatpush1.bf16.msra.mxu0 %v960
    %1618 = vmatprep.subr.bf16.mxu0 %v965
    %1619 = vmatpush1.bf16.msra.mxu0 %v964
    %1620 = vmatprep.subr.bf16.mxu0 %v969
    %1621 = vmatpush1.bf16.msra.mxu0 %v968
    %1622 = vmatprep.subr.bf16.mxu0 %v973
    %1623 = vmatpush1.bf16.msra.mxu0 %v972
    %1624 = vmatprep.subr.bf16.mxu0 %v977
    %1625 = vmatpush1.bf16.msra.mxu0 %v976
    %1626 = vmatprep.mubr.bf16.mxu0 %v721
    %1627 = vmatmul.mubr.bf16.gmra.mrb[0].mxu0 %v1150
    %v1628 = vpop.f32.mrb[0].mxu0
    %v1629 = vadd.f32 0.0, %v1628
    %v1630 = vpop.f32.mrb[0].mxu0
    %v1631 = vadd.f32 0.0, %v1630
    %v1632 = vpop.f32.mrb[0].mxu0
    %v1633 = vpop.f32.mrb[0].mxu0
    %1634 = vdwg.mxu0
    %v1636 = vlaneseq
    %v1637 = vshrl.u32 %v1636, 7
    %v1638 = vsub.s32 0, %v1637
    %v1639 = vrot.slane %v713, %v1638
    %v1640 = vlaneseq
    %v1641 = vshrl.u32 %v1640, 7
    %v1642 = vsub.s32 1, %v1641
    %v1643 = vrot.slane %v713, %v1642
    %v1644 = vlaneseq
    %v1645 = vshrl.u32 %v1644, 7
    %v1646 = vsub.s32 2, %v1645
    %v1647 = vrot.slane %v713, %v1646
    %v1648 = vlaneseq
    %v1649 = vshrl.u32 %v1648, 7
    %v1650 = vsub.s32 3, %v1649
    %v1651 = vrot.slane %v713, %v1650
    %v1656 = vadd.f32 %v1506, %v1639
    %v1657 = vadd.f32 %v1508, %v1643
    %v1658 = vadd.f32 %v1547, %v1647
    %v1659 = vadd.f32 %v1549, %v1651
    %v1660 = vmul.f32 %v1656, 0.5
    %v1661 = vtanh.pop %v1660
    %v1662 = vmul.f32 %v1661, 0.5
    %v1663 = vadd.f32 %v1662, 0.5
    %v1664 = vmul.f32 %v1657, 0.5
    %v1665 = vtanh.pop %v1664
    %v1666 = vmul.f32 %v1665, 0.5
    %v1667 = vadd.f32 %v1666, 0.5
    %v1668 = vtanh.pop %v1658
    %v1669 = vmul.f32 %v1659, 0.5
    %v1670 = vtanh.pop %v1669
    %v1671 = vmul.f32 %v1670, 0.5
    %v1672 = vadd.f32 %v1671, 0.5
    %v1673 = vmul.f32 %v1667, %v719
    %v1674 = vmul.f32 %v1663, %v1668
    %v1675 = vadd.f32 %v1673, %v1674
    %v1676 = vtanh.pop %v1675
    %v1677 = vmul.f32 %v1672, %v1676
    %v1678 = vpack.c.bf16 %v1677, %v1677
    %1679 = vst [vmem:[#allocation3] sm:$0xf] %v1678
    %v1680 = vld [vmem:[#allocation2 + $0x20] sm:$0xff]
    %v1681 = vld [vmem:[#allocation2 + $0x28] sm:$0xff]
    %v1682 = vld [vmem:[#allocation2 + $0x30] sm:$0xff]
    %v1683 = vld [vmem:[#allocation2 + $0x38] sm:$0xff]
    %v1684 = vadd.f32 %v1680, %v1588
    %v1685 = vadd.f32 %v1681, %v1590
    %v1686 = vadd.f32 %v1682, %v1629
    %v1687 = vadd.f32 %v1683, %v1631
    %v1688 = vmul.f32 %v1684, 0.5
    %v1689 = vtanh.pop %v1688
    %v1690 = vmul.f32 %v1689, 0.5
    %v1691 = vadd.f32 %v1690, 0.5
    %v1692 = vmul.f32 %v1685, 0.5
    %v1693 = vtanh.pop %v1692
    %v1694 = vmul.f32 %v1693, 0.5
    %v1695 = vadd.f32 %v1694, 0.5
    %v1696 = vtanh.pop %v1686
    %v1697 = vmul.f32 %v1687, 0.5
    %v1698 = vtanh.pop %v1697
    %v1699 = vmul.f32 %v1698, 0.5
    %v1700 = vadd.f32 %v1699, 0.5
    %v1701 = vmul.f32 %v1695, %v1147
    %v1702 = vmul.f32 %v1691, %v1696
    %v1703 = vadd.f32 %v1701, %v1702
    %v1704 = vtanh.pop %v1703
    %v1705 = vmul.f32 %v1700, %v1704
    %v1706 = vpack.c.bf16 %v1705, %v1705
    %1707 = vmatprep.subr.bf16.mxu0 %v1344
    %1708 = vmatpush1.bf16.msra.mxu0 %v1343
    %1709 = vmatprep.subr.bf16.mxu0 %v1348
    %1710 = vmatpush1.bf16.msra.mxu0 %v1347
    %1711 = vmatprep.subr.bf16.mxu0 %v1352
    %1712 = vmatpush1.bf16.msra.mxu0 %v1351
    %1713 = vmatprep.subr.bf16.mxu0 %v1356
    %1714 = vmatpush1.bf16.msra.mxu0 %v1355
    %1715 = vmatprep.subr.bf16.mxu0 %v1360
    %1716 = vmatpush1.bf16.msra.mxu0 %v1359
    %1717 = vmatprep.subr.bf16.mxu0 %v1364
    %1718 = vmatpush1.bf16.msra.mxu0 %v1363
    %1719 = vmatprep.subr.bf16.mxu0 %v1368
    %1720 = vmatpush1.bf16.msra.mxu0 %v1367
    %1721 = vmatprep.subr.bf16.mxu0 %v1372
    %1722 = vmatpush1.bf16.msra.mxu0 %v1371
    %1723 = vmatprep.subr.bf16.mxu0 %v1376
    %1724 = vmatpush1.bf16.msra.mxu0 %v1375
    %1725 = vmatprep.subr.bf16.mxu0 %v1380
    %1726 = vmatpush1.bf16.msra.mxu0 %v1379
    %1727 = vmatprep.subr.bf16.mxu0 %v1384
    %1728 = vmatpush1.bf16.msra.mxu0 %v1383
    %1729 = vmatprep.subr.bf16.mxu0 %v1388
    %1730 = vmatpush1.bf16.msra.mxu0 %v1387
    %1731 = vmatprep.subr.bf16.mxu0 %v1392
    %1732 = vmatpush1.bf16.msra.mxu0 %v1391
    %1733 = vmatprep.subr.bf16.mxu0 %v1396
    %1734 = vmatpush1.bf16.msra.mxu0 %v1395
    %1735 = vmatprep.subr.bf16.mxu0 %v1400
    %1736 = vmatpush1.bf16.msra.mxu0 %v1399
    %1737 = vmatprep.subr.bf16.mxu0 %v1404
    %1738 = vmatpush1.bf16.msra.mxu0 %v1403
    %1739 = vmatprep.mubr.bf16.mxu0 %v1678
    %1740 = vmatmul.mubr.bf16.gmra.mrb[0].mxu0 %v1706
    %v1741 = vpop.f32.mrb[0].mxu0
    %v1742 = vadd.f32 0.0, %v1741
    %v1743 = vpop.f32.mrb[0].mxu0
    %v1744 = vadd.f32 0.0, %v1743
    %v1745 = vpop.f32.mrb[0].mxu0
    %v1746 = vpop.f32.mrb[0].mxu0
    %1747 = vdwg.mxu0
    %1748 = vmatprep.subr.bf16.mxu0 %v1346
    %1749 = vmatpush1.bf16.msra.mxu0 %v1345
    %1750 = vmatprep.subr.bf16.mxu0 %v1350
    %1751 = vmatpush1.bf16.msra.mxu0 %v1349
    %1752 = vmatprep.subr.bf16.mxu0 %v1354
    %1753 = vmatpush1.bf16.msra.mxu0 %v1353
    %1754 = vmatprep.subr.bf16.mxu0 %v1358
    %1755 = vmatpush1.bf16.msra.mxu0 %v1357
    %1756 = vmatprep.subr.bf16.mxu0 %v1362
    %1757 = vmatpush1.bf16.msra.mxu0 %v1361
    %1758 = vmatprep.subr.bf16.mxu0 %v1366
    %1759 = vmatpush1.bf16.msra.mxu0 %v1365
    %1760 = vmatprep.subr.bf16.mxu0 %v1370
    %1761 = vmatpush1.bf16.msra.mxu0 %v1369
    %1762 = vmatprep.subr.bf16.mxu0 %v1374
    %1763 = vmatpush1.bf16.msra.mxu0 %v1373
    %1764 = vmatprep.subr.bf16.mxu0 %v1378
    %1765 = vmatpush1.bf16.msra.mxu0 %v1377
    %1766 = vmatprep.subr.bf16.mxu0 %v1382
    %1767 = vmatpush1.bf16.msra.mxu0 %v1381
    %1768 = vmatprep.subr.bf16.mxu0 %v1386
    %1769 = vmatpush1.bf16.msra.mxu0 %v1385
    %1770 = vmatprep.subr.bf16.mxu0 %v1390
    %1771 = vmatpush1.bf16.msra.mxu0 %v1389
    %1772 = vmatprep.subr.bf16.mxu0 %v1394
    %1773 = vmatpush1.bf16.msra.mxu0 %v1393
    %1774 = vmatprep.subr.bf16.mxu0 %v1398
    %1775 = vmatpush1.bf16.msra.mxu0 %v1397
    %1776 = vmatprep.subr.bf16.mxu0 %v1402
    %1777 = vmatpush1.bf16.msra.mxu0 %v1401
    %1778 = vmatprep.subr.bf16.mxu0 %v1406
    %1779 = vmatpush1.bf16.msra.mxu0 %v1405
    %1780 = vmatprep.mubr.bf16.mxu0 %v1678
    %1781 = vmatmul.mubr.bf16.gmra.mrb[0].mxu0 %v1706
    %v1782 = vpop.f32.mrb[0].mxu0
    %v1783 = vadd.f32 0.0, %v1782
    %v1784 = vpop.f32.mrb[0].mxu0
    %v1785 = vadd.f32 0.0, %v1784
    %v1786 = vpop.f32.mrb[0].mxu0
    %v1787 = vpop.f32.mrb[0].mxu0
    %1788 = vdwg.mxu0
    %1789 = vmatprep.subr.bf16.mxu0 %v915
    %1790 = vmatpush1.bf16.msra.mxu0 %v914
    %1791 = vmatprep.subr.bf16.mxu0 %v919
    %1792 = vmatpush1.bf16.msra.mxu0 %v918
    %1793 = vmatprep.subr.bf16.mxu0 %v923
    %1794 = vmatpush1.bf16.msra.mxu0 %v922
    %1795 = vmatprep.subr.bf16.mxu0 %v927
    %1796 = vmatpush1.bf16.msra.mxu0 %v926
    %1797 = vmatprep.subr.bf16.mxu0 %v931
    %1798 = vmatpush1.bf16.msra.mxu0 %v930
    %1799 = vmatprep.subr.bf16.mxu0 %v935
    %1800 = vmatpush1.bf16.msra.mxu0 %v934
    %1801 = vmatprep.subr.bf16.mxu0 %v939
    %1802 = vmatpush1.bf16.msra.mxu0 %v938
    %1803 = vmatprep.subr.bf16.mxu0 %v943
    %1804 = vmatpush1.bf16.msra.mxu0 %v942
    %1805 = vmatprep.subr.bf16.mxu0 %v947
    %1806 = vmatpush1.bf16.msra.mxu0 %v946
    %1807 = vmatprep.subr.bf16.mxu0 %v951
    %1808 = vmatpush1.bf16.msra.mxu0 %v950
    %1809 = vmatprep.subr.bf16.mxu0 %v955
    %1810 = vmatpush1.bf16.msra.mxu0 %v954
    %1811 = vmatprep.subr.bf16.mxu0 %v959
    %1812 = vmatpush1.bf16.msra.mxu0 %v958
    %1813 = vmatprep.subr.bf16.mxu0 %v963
    %1814 = vmatpush1.bf16.msra.mxu0 %v962
    %1815 = vmatprep.subr.bf16.mxu0 %v967
    %1816 = vmatpush1.bf16.msra.mxu0 %v966
    %1817 = vmatprep.subr.bf16.mxu0 %v971
    %1818 = vmatpush1.bf16.msra.mxu0 %v970
    %1819 = vmatprep.subr.bf16.mxu0 %v975
    %1820 = vmatpush1.bf16.msra.mxu0 %v974
    %1821 = vmatprep.mubr.bf16.mxu0 %v1678
    %1822 = vmatmul.mubr.bf16.gmra.mrb[0].mxu0 %v1706
    %v1823 = vpop.f32.mrb[0].mxu0
    %v1824 = vadd.f32 0.0, %v1823
    %v1825 = vpop.f32.mrb[0].mxu0
    %v1826 = vadd.f32 0.0, %v1825
    %v1827 = vpop.f32.mrb[0].mxu0
    %v1828 = vpop.f32.mrb[0].mxu0
    %1829 = vdwg.mxu0
    %1830 = vmatprep.subr.bf16.mxu0 %v917
    %1831 = vmatpush1.bf16.msra.mxu0 %v916
    %1832 = vmatprep.subr.bf16.mxu0 %v921
    %1833 = vmatpush1.bf16.msra.mxu0 %v920
    %1834 = vmatprep.subr.bf16.mxu0 %v925
    %1835 = vmatpush1.bf16.msra.mxu0 %v924
    %1836 = vmatprep.subr.bf16.mxu0 %v929
    %1837 = vmatpush1.bf16.msra.mxu0 %v928
    %1838 = vmatprep.subr.bf16.mxu0 %v933
    %1839 = vmatpush1.bf16.msra.mxu0 %v932
    %1840 = vmatprep.subr.bf16.mxu0 %v937
    %1841 = vmatpush1.bf16.msra.mxu0 %v936
    %1842 = vmatprep.subr.bf16.mxu0 %v941
    %1843 = vmatpush1.bf16.msra.mxu0 %v940
    %1844 = vmatprep.subr.bf16.mxu0 %v945
    %1845 = vmatpush1.bf16.msra.mxu0 %v944
    %1846 = vmatprep.subr.bf16.mxu0 %v949
    %1847 = vmatpush1.bf16.msra.mxu0 %v948
    %1848 = vmatprep.subr.bf16.mxu0 %v953
    %1849 = vmatpush1.bf16.msra.mxu0 %v952
    %1850 = vmatprep.subr.bf16.mxu0 %v957
    %1851 = vmatpush1.bf16.msra.mxu0 %v956
    %1852 = vmatprep.subr.bf16.mxu0 %v961
    %1853 = vmatpush1.bf16.msra.mxu0 %v960
    %1854 = vmatprep.subr.bf16.mxu0 %v965
    %1855 = vmatpush1.bf16.msra.mxu0 %v964
    %1856 = vmatprep.subr.bf16.mxu0 %v969
    %1857 = vmatpush1.bf16.msra.mxu0 %v968
    %1858 = vmatprep.subr.bf16.mxu0 %v973
    %1859 = vmatpush1.bf16.msra.mxu0 %v972
    %1860 = vmatprep.subr.bf16.mxu0 %v977
    %1861 = vmatpush1.bf16.msra.mxu0 %v976
    %1862 = vmatprep.mubr.bf16.mxu0 %v1678
    %1863 = vmatmul.mubr.bf16.gmra.mrb[0].mxu0 %v1706
    %v1864 = vpop.f32.mrb[0].mxu0
    %v1865 = vadd.f32 0.0, %v1864
    %v1866 = vpop.f32.mrb[0].mxu0
    %v1867 = vadd.f32 0.0, %v1866
    %v1868 = vpop.f32.mrb[0].mxu0
    %v1869 = vpop.f32.mrb[0].mxu0
    %1870 = vdwg.mxu0
    %v1871 = vadd.f32 %v1742, %v1639
    %v1872 = vadd.f32 %v1744, %v1643
    %v1873 = vadd.f32 %v1783, %v1647
    %v1874 = vadd.f32 %v1785, %v1651
    %v1875 = vmul.f32 %v1871, 0.5
    %v1876 = vtanh.pop %v1875
    %v1877 = vmul.f32 %v1876, 0.5
    %v1878 = vadd.f32 %v1877, 0.5
    %v1879 = vmul.f32 %v1872, 0.5
    %v1880 = vtanh.pop %v1879
    %v1881 = vmul.f32 %v1880, 0.5
    %v1882 = vadd.f32 %v1881, 0.5
    %v1883 = vtanh.pop %v1873
    %v1884 = vmul.f32 %v1874, 0.5
    %v1885 = vtanh.pop %v1884
    %v1886 = vmul.f32 %v1885, 0.5
    %v1887 = vadd.f32 %v1886, 0.5
    %v1888 = vmul.f32 %v1882, %v1675
    %v1889 = vmul.f32 %v1878, %v1883
    %v1890 = vadd.f32 %v1888, %v1889
    %v1891 = vtanh.pop %v1890
    %v1892 = vmul.f32 %v1887, %v1891
    %v1893 = vpack.c.bf16 %v1892, %v1892
    %v1895 = vrot.slane %v1893, 4
    %1897 = vst [vmem:[#allocation3] sm:$0xf0] %v1895
    %v1898 = vld [vmem:[#allocation2 + $0x40] sm:$0xff]
    %v1899 = vld [vmem:[#allocation2 + $0x48] sm:$0xff]
    %v1900 = vld [vmem:[#allocation2 + $0x50] sm:$0xff]
    %v1901 = vld [vmem:[#allocation2 + $0x58] sm:$0xff]
    %v1902 = vadd.f32 %v1898, %v1824
    %v1903 = vadd.f32 %v1899, %v1826
    %v1904 = vadd.f32 %v1900, %v1865
    %v1905 = vadd.f32 %v1901, %v1867
    %v1906 = vmul.f32 %v1902, 0.5
    %v1907 = vtanh.pop %v1906
    %v1908 = vmul.f32 %v1907, 0.5
    %v1909 = vadd.f32 %v1908, 0.5
    %v1910 = vmul.f32 %v1903, 0.5
    %v1911 = vtanh.pop %v1910
    %v1912 = vmul.f32 %v1911, 0.5
    %v1913 = vadd.f32 %v1912, 0.5
    %v1914 = vtanh.pop %v1904
    %v1915 = vmul.f32 %v1905, 0.5
    %v1916 = vtanh.pop %v1915
    %v1917 = vmul.f32 %v1916, 0.5
    %v1918 = vadd.f32 %v1917, 0.5
    %v1919 = vmul.f32 %v1913, %v1703
    %v1920 = vmul.f32 %v1909, %v1914
    %v1921 = vadd.f32 %v1919, %v1920
    %v1922 = vtanh.pop %v1921
    %v1923 = vmul.f32 %v1918, %v1922
    %v1924 = vpack.c.bf16 %v1923, %v1923
    %1925 = vmatprep.subr.bf16.mxu0 %v1344
    %1926 = vmatpush1.bf16.msra.mxu0 %v1343
    %1927 = vmatprep.subr.bf16.mxu0 %v1348
    %1928 = vmatpush1.bf16.msra.mxu0 %v1347
    %1929 = vmatprep.subr.bf16.mxu0 %v1352
    %1930 = vmatpush1.bf16.msra.mxu0 %v1351
    %1931 = vmatprep.subr.bf16.mxu0 %v1356
    %1932 = vmatpush1.bf16.msra.mxu0 %v1355
    %1933 = vmatprep.subr.bf16.mxu0 %v1360
    %1934 = vmatpush1.bf16.msra.mxu0 %v1359
    %1935 = vmatprep.subr.bf16.mxu0 %v1364
    %1936 = vmatpush1.bf16.msra.mxu0 %v1363
    %1937 = vmatprep.subr.bf16.mxu0 %v1368
    %1938 = vmatpush1.bf16.msra.mxu0 %v1367
    %1939 = vmatprep.subr.bf16.mxu0 %v1372
    %1940 = vmatpush1.bf16.msra.mxu0 %v1371
    %1941 = vmatprep.subr.bf16.mxu0 %v1376
    %1942 = vmatpush1.bf16.msra.mxu0 %v1375
    %1943 = vmatprep.subr.bf16.mxu0 %v1380
    %1944 = vmatpush1.bf16.msra.mxu0 %v1379
    %1945 = vmatprep.subr.bf16.mxu0 %v1384
    %1946 = vmatpush1.bf16.msra.mxu0 %v1383
    %1947 = vmatprep.subr.bf16.mxu0 %v1388
    %1948 = vmatpush1.bf16.msra.mxu0 %v1387
    %1949 = vmatprep.subr.bf16.mxu0 %v1392
    %1950 = vmatpush1.bf16.msra.mxu0 %v1391
    %1951 = vmatprep.subr.bf16.mxu0 %v1396
    %1952 = vmatpush1.bf16.msra.mxu0 %v1395
    %1953 = vmatprep.subr.bf16.mxu0 %v1400
    %1954 = vmatpush1.bf16.msra.mxu0 %v1399
    %1955 = vmatprep.subr.bf16.mxu0 %v1404
    %1956 = vmatpush1.bf16.msra.mxu0 %v1403
    %1957 = vmatprep.mubr.bf16.mxu0 %v1893
    %1958 = vmatmul.mubr.bf16.gmra.mrb[0].mxu0 %v1924
    %v1959 = vpop.f32.mrb[0].mxu0
    %v1960 = vadd.f32 0.0, %v1959
    %v1961 = vpop.f32.mrb[0].mxu0
    %v1962 = vadd.f32 0.0, %v1961
    %v1963 = vpop.f32.mrb[0].mxu0
    %v1964 = vpop.f32.mrb[0].mxu0
    %1965 = vdwg.mxu0
    %1966 = vmatprep.subr.bf16.mxu0 %v1346
    %1967 = vmatpush1.bf16.msra.mxu0 %v1345
    %1968 = vmatprep.subr.bf16.mxu0 %v1350
    %1969 = vmatpush1.bf16.msra.mxu0 %v1349
    %1970 = vmatprep.subr.bf16.mxu0 %v1354
    %1971 = vmatpush1.bf16.msra.mxu0 %v1353
    %1972 = vmatprep.subr.bf16.mxu0 %v1358
    %1973 = vmatpush1.bf16.msra.mxu0 %v1357
    %1974 = vmatprep.subr.bf16.mxu0 %v1362
    %1975 = vmatpush1.bf16.msra.mxu0 %v1361
    %1976 = vmatprep.subr.bf16.mxu0 %v1366
    %1977 = vmatpush1.bf16.msra.mxu0 %v1365
    %1978 = vmatprep.subr.bf16.mxu0 %v1370
    %1979 = vmatpush1.bf16.msra.mxu0 %v1369
    %1980 = vmatprep.subr.bf16.mxu0 %v1374
    %1981 = vmatpush1.bf16.msra.mxu0 %v1373
    %1982 = vmatprep.subr.bf16.mxu0 %v1378
    %1983 = vmatpush1.bf16.msra.mxu0 %v1377
    %1984 = vmatprep.subr.bf16.mxu0 %v1382
    %1985 = vmatpush1.bf16.msra.mxu0 %v1381
    %1986 = vmatprep.subr.bf16.mxu0 %v1386
    %1987 = vmatpush1.bf16.msra.mxu0 %v1385
    %1988 = vmatprep.subr.bf16.mxu0 %v1390
    %1989 = vmatpush1.bf16.msra.mxu0 %v1389
    %1990 = vmatprep.subr.bf16.mxu0 %v1394
    %1991 = vmatpush1.bf16.msra.mxu0 %v1393
    %1992 = vmatprep.subr.bf16.mxu0 %v1398
    %1993 = vmatpush1.bf16.msra.mxu0 %v1397
    %1994 = vmatprep.subr.bf16.mxu0 %v1402
    %1995 = vmatpush1.bf16.msra.mxu0 %v1401
    %1996 = vmatprep.subr.bf16.mxu0 %v1406
    %1997 = vmatpush1.bf16.msra.mxu0 %v1405
    %1998 = vmatprep.mubr.bf16.mxu0 %v1893
    %1999 = vmatmul.mubr.bf16.gmra.mrb[0].mxu0 %v1924
    %v2000 = vpop.f32.mrb[0].mxu0
    %v2001 = vadd.f32 0.0, %v2000
    %v2002 = vpop.f32.mrb[0].mxu0
    %v2003 = vadd.f32 0.0, %v2002
    %v2004 = vpop.f32.mrb[0].mxu0
    %v2005 = vpop.f32.mrb[0].mxu0
    %2006 = vdwg.mxu0
    %2007 = vmatprep.subr.bf16.mxu0 %v915
    %2008 = vmatpush1.bf16.msra.mxu0 %v914
    %2009 = vmatprep.subr.bf16.mxu0 %v919
    %2010 = vmatpush1.bf16.msra.mxu0 %v918
    %2011 = vmatprep.subr.bf16.mxu0 %v923
    %2012 = vmatpush1.bf16.msra.mxu0 %v922
    %2013 = vmatprep.subr.bf16.mxu0 %v927
    %2014 = vmatpush1.bf16.msra.mxu0 %v926
    %2015 = vmatprep.subr.bf16.mxu0 %v931
    %2016 = vmatpush1.bf16.msra.mxu0 %v930
    %2017 = vmatprep.subr.bf16.mxu0 %v935
    %2018 = vmatpush1.bf16.msra.mxu0 %v934
    %2019 = vmatprep.subr.bf16.mxu0 %v939
    %2020 = vmatpush1.bf16.msra.mxu0 %v938
    %2021 = vmatprep.subr.bf16.mxu0 %v943
    %2022 = vmatpush1.bf16.msra.mxu0 %v942
    %2023 = vmatprep.subr.bf16.mxu0 %v947
    %2024 = vmatpush1.bf16.msra.mxu0 %v946
    %2025 = vmatprep.subr.bf16.mxu0 %v951
    %2026 = vmatpush1.bf16.msra.mxu0 %v950
    %2027 = vmatprep.subr.bf16.mxu0 %v955
    %2028 = vmatpush1.bf16.msra.mxu0 %v954
    %2029 = vmatprep.subr.bf16.mxu0 %v959
    %2030 = vmatpush1.bf16.msra.mxu0 %v958
    %2031 = vmatprep.subr.bf16.mxu0 %v963
    %2032 = vmatpush1.bf16.msra.mxu0 %v962
    %2033 = vmatprep.subr.bf16.mxu0 %v967
    %2034 = vmatpush1.bf16.msra.mxu0 %v966
    %2035 = vmatprep.subr.bf16.mxu0 %v971
    %2036 = vmatpush1.bf16.msra.mxu0 %v970
    %2037 = vmatprep.subr.bf16.mxu0 %v975
    %2038 = vmatpush1.bf16.msra.mxu0 %v974
    %2039 = vmatprep.mubr.bf16.mxu0 %v1893
    %2040 = vmatmul.mubr.bf16.gmra.mrb[0].mxu0 %v1924
    %v2041 = vpop.f32.mrb[0].mxu0
    %v2042 = vadd.f32 0.0, %v2041
    %v2043 = vpop.f32.mrb[0].mxu0
    %v2044 = vadd.f32 0.0, %v2043
    %v2045 = vpop.f32.mrb[0].mxu0
    %v2046 = vpop.f32.mrb[0].mxu0
    %2047 = vdwg.mxu0
    %2048 = vmatprep.subr.bf16.mxu0 %v917
    %2049 = vmatpush1.bf16.msra.mxu0 %v916
    %2050 = vmatprep.subr.bf16.mxu0 %v921
    %2051 = vmatpush1.bf16.msra.mxu0 %v920
    %2052 = vmatprep.subr.bf16.mxu0 %v925
    %2053 = vmatpush1.bf16.msra.mxu0 %v924
    %2054 = vmatprep.subr.bf16.mxu0 %v929
    %2055 = vmatpush1.bf16.msra.mxu0 %v928
    %2056 = vmatprep.subr.bf16.mxu0 %v933
    %2057 = vmatpush1.bf16.msra.mxu0 %v932
    %2058 = vmatprep.subr.bf16.mxu0 %v937
    %2059 = vmatpush1.bf16.msra.mxu0 %v936
    %2060 = vmatprep.subr.bf16.mxu0 %v941
    %2061 = vmatpush1.bf16.msra.mxu0 %v940
    %2062 = vmatprep.subr.bf16.mxu0 %v945
    %2063 = vmatpush1.bf16.msra.mxu0 %v944
    %2064 = vmatprep.subr.bf16.mxu0 %v949
    %2065 = vmatpush1.bf16.msra.mxu0 %v948
    %2066 = vmatprep.subr.bf16.mxu0 %v953
    %2067 = vmatpush1.bf16.msra.mxu0 %v952
    %2068 = vmatprep.subr.bf16.mxu0 %v957
    %2069 = vmatpush1.bf16.msra.mxu0 %v956
    %2070 = vmatprep.subr.bf16.mxu0 %v961
    %2071 = vmatpush1.bf16.msra.mxu0 %v960
    %2072 = vmatprep.subr.bf16.mxu0 %v965
    %2073 = vmatpush1.bf16.msra.mxu0 %v964
    %2074 = vmatprep.subr.bf16.mxu0 %v969
    %2075 = vmatpush1.bf16.msra.mxu0 %v968
    %2076 = vmatprep.subr.bf16.mxu0 %v973
    %2077 = vmatpush1.bf16.msra.mxu0 %v972
    %2078 = vmatprep.subr.bf16.mxu0 %v977
    %2079 = vmatpush1.bf16.msra.mxu0 %v976
    %2080 = vmatprep.mubr.bf16.mxu0 %v1893
    %2081 = vmatmul.mubr.bf16.gmra.mrb[0].mxu0 %v1924
    %v2082 = vpop.f32.mrb[0].mxu0
    %v2083 = vadd.f32 0.0, %v2082
    %v2084 = vpop.f32.mrb[0].mxu0
    %v2085 = vadd.f32 0.0, %v2084
    %v2086 = vpop.f32.mrb[0].mxu0
    %v2087 = vpop.f32.mrb[0].mxu0
    %2088 = vdwg.mxu0
    %v2089 = vadd.f32 %v1960, %v1639
    %v2090 = vadd.f32 %v1962, %v1643
    %v2091 = vadd.f32 %v2001, %v1647
    %v2092 = vadd.f32 %v2003, %v1651
    %v2093 = vmul.f32 %v2089, 0.5
    %v2094 = vtanh.pop %v2093
    %v2095 = vmul.f32 %v2094, 0.5
    %v2096 = vadd.f32 %v2095, 0.5
    %v2097 = vmul.f32 %v2090, 0.5
    %v2098 = vtanh.pop %v2097
    %v2099 = vmul.f32 %v2098, 0.5
    %v2100 = vadd.f32 %v2099, 0.5
    %v2101 = vtanh.pop %v2091
    %v2102 = vmul.f32 %v2092, 0.5
    %v2103 = vtanh.pop %v2102
    %v2104 = vmul.f32 %v2103, 0.5
    %v2105 = vadd.f32 %v2104, 0.5
    %v2106 = vmul.f32 %v2100, %v1890
    %v2107 = vmul.f32 %v2096, %v2101
    %v2108 = vadd.f32 %v2106, %v2107
    %v2109 = vtanh.pop %v2108
    %v2110 = vmul.f32 %v2105, %v2109
    %v2111 = vpack.c.bf16 %v2110, %v2110
    %2112 = vst [vmem:[#allocation3 + $0x8] sm:$0xf] %v2111
    %v2113 = vld [vmem:[#allocation2 + $0x60] sm:$0xff]
    %v2114 = vld [vmem:[#allocation2 + $0x68] sm:$0xff]
    %v2115 = vld [vmem:[#allocation2 + $0x70] sm:$0xff]
    %v2116 = vld [vmem:[#allocation2 + $0x78] sm:$0xff]
    %v2117 = vadd.f32 %v2113, %v2042
    %v2118 = vadd.f32 %v2114, %v2044
    %v2119 = vadd.f32 %v2115, %v2083
    %v2120 = vadd.f32 %v2116, %v2085
    %v2121 = vmul.f32 %v2117, 0.5
    %v2122 = vtanh.pop %v2121
    %v2123 = vmul.f32 %v2122, 0.5
    %v2124 = vadd.f32 %v2123, 0.5
    %v2125 = vmul.f32 %v2118, 0.5
    %v2126 = vtanh.pop %v2125
    %v2127 = vmul.f32 %v2126, 0.5
    %v2128 = vadd.f32 %v2127, 0.5
    %v2129 = vtanh.pop %v2119
    %v2130 = vmul.f32 %v2120, 0.5
    %v2131 = vtanh.pop %v2130
    %v2132 = vmul.f32 %v2131, 0.5
    %v2133 = vadd.f32 %v2132, 0.5
    %v2134 = vmul.f32 %v2128, %v1921
    %v2135 = vmul.f32 %v2124, %v2129
    %v2136 = vadd.f32 %v2134, %v2135
    %v2137 = vtanh.pop %v2136
    %v2138 = vmul.f32 %v2133, %v2137
    %v2139 = vpack.c.bf16 %v2138, %v2138
    %2140 = vmatprep.subr.bf16.mxu0 %v1344
    %2141 = vmatpush1.bf16.msra.mxu0 %v1343
    %2142 = vmatprep.subr.bf16.mxu0 %v1348
    %2143 = vmatpush1.bf16.msra.mxu0 %v1347
    %2144 = vmatprep.subr.bf16.mxu0 %v1352
    %2145 = vmatpush1.bf16.msra.mxu0 %v1351
    %2146 = vmatprep.subr.bf16.mxu0 %v1356
    %2147 = vmatpush1.bf16.msra.mxu0 %v1355
    %2148 = vmatprep.subr.bf16.mxu0 %v1360
    %2149 = vmatpush1.bf16.msra.mxu0 %v1359
    %2150 = vmatprep.subr.bf16.mxu0 %v1364
    %2151 = vmatpush1.bf16.msra.mxu0 %v1363
    %2152 = vmatprep.subr.bf16.mxu0 %v1368
    %2153 = vmatpush1.bf16.msra.mxu0 %v1367
    %2154 = vmatprep.subr.bf16.mxu0 %v1372
    %2155 = vmatpush1.bf16.msra.mxu0 %v1371
    %2156 = vmatprep.subr.bf16.mxu0 %v1376
    %2157 = vmatpush1.bf16.msra.mxu0 %v1375
    %2158 = vmatprep.subr.bf16.mxu0 %v1380
    %2159 = vmatpush1.bf16.msra.mxu0 %v1379
    %2160 = vmatprep.subr.bf16.mxu0 %v1384
    %2161 = vmatpush1.bf16.msra.mxu0 %v1383
    %2162 = vmatprep.subr.bf16.mxu0 %v1388
    %2163 = vmatpush1.bf16.msra.mxu0 %v1387
    %2164 = vmatprep.subr.bf16.mxu0 %v1392
    %2165 = vmatpush1.bf16.msra.mxu0 %v1391
    %2166 = vmatprep.subr.bf16.mxu0 %v1396
    %2167 = vmatpush1.bf16.msra.mxu0 %v1395
    %2168 = vmatprep.subr.bf16.mxu0 %v1400
    %2169 = vmatpush1.bf16.msra.mxu0 %v1399
    %2170 = vmatprep.subr.bf16.mxu0 %v1404
    %2171 = vmatpush1.bf16.msra.mxu0 %v1403
    %2172 = vmatprep.mubr.bf16.mxu0 %v2111
    %2173 = vmatmul.mubr.bf16.gmra.mrb[0].mxu0 %v2139
    %v2174 = vpop.f32.mrb[0].mxu0
    %v2175 = vadd.f32 0.0, %v2174
    %v2176 = vpop.f32.mrb[0].mxu0
    %v2177 = vadd.f32 0.0, %v2176
    %v2178 = vpop.f32.mrb[0].mxu0
    %v2179 = vpop.f32.mrb[0].mxu0
    %2180 = vdwg.mxu0
    %2181 = vmatprep.subr.bf16.mxu0 %v1346
    %2182 = vmatpush1.bf16.msra.mxu0 %v1345
    %2183 = vmatprep.subr.bf16.mxu0 %v1350
    %2184 = vmatpush1.bf16.msra.mxu0 %v1349
    %2185 = vmatprep.subr.bf16.mxu0 %v1354
    %2186 = vmatpush1.bf16.msra.mxu0 %v1353
    %2187 = vmatprep.subr.bf16.mxu0 %v1358
    %2188 = vmatpush1.bf16.msra.mxu0 %v1357
    %2189 = vmatprep.subr.bf16.mxu0 %v1362
    %2190 = vmatpush1.bf16.msra.mxu0 %v1361
    %2191 = vmatprep.subr.bf16.mxu0 %v1366
    %2192 = vmatpush1.bf16.msra.mxu0 %v1365
    %2193 = vmatprep.subr.bf16.mxu0 %v1370
    %2194 = vmatpush1.bf16.msra.mxu0 %v1369
    %2195 = vmatprep.subr.bf16.mxu0 %v1374
    %2196 = vmatpush1.bf16.msra.mxu0 %v1373
    %2197 = vmatprep.subr.bf16.mxu0 %v1378
    %2198 = vmatpush1.bf16.msra.mxu0 %v1377
    %2199 = vmatprep.subr.bf16.mxu0 %v1382
    %2200 = vmatpush1.bf16.msra.mxu0 %v1381
    %2201 = vmatprep.subr.bf16.mxu0 %v1386
    %2202 = vmatpush1.bf16.msra.mxu0 %v1385
    %2203 = vmatprep.subr.bf16.mxu0 %v1390
    %2204 = vmatpush1.bf16.msra.mxu0 %v1389
    %2205 = vmatprep.subr.bf16.mxu0 %v1394
    %2206 = vmatpush1.bf16.msra.mxu0 %v1393
    %2207 = vmatprep.subr.bf16.mxu0 %v1398
    %2208 = vmatpush1.bf16.msra.mxu0 %v1397
    %2209 = vmatprep.subr.bf16.mxu0 %v1402
    %2210 = vmatpush1.bf16.msra.mxu0 %v1401
    %2211 = vmatprep.subr.bf16.mxu0 %v1406
    %2212 = vmatpush1.bf16.msra.mxu0 %v1405
    %2213 = vmatprep.mubr.bf16.mxu0 %v2111
    %2214 = vmatmul.mubr.bf16.gmra.mrb[0].mxu0 %v2139
    %v2215 = vpop.f32.mrb[0].mxu0
    %v2216 = vadd.f32 0.0, %v2215
    %v2217 = vpop.f32.mrb[0].mxu0
    %v2218 = vadd.f32 0.0, %v2217
    %v2219 = vpop.f32.mrb[0].mxu0
    %v2220 = vpop.f32.mrb[0].mxu0
    %2221 = vdwg.mxu0
    %v2222 = vadd.f32 %v2175, %v1639
    %v2223 = vadd.f32 %v2177, %v1643
    %v2224 = vadd.f32 %v2216, %v1647
    %v2225 = vadd.f32 %v2218, %v1651
    %v2226 = vmul.f32 %v2222, 0.5
    %v2227 = vtanh.pop %v2226
    %v2228 = vmul.f32 %v2227, 0.5
    %v2229 = vadd.f32 %v2228, 0.5
    %v2230 = vmul.f32 %v2223, 0.5
    %v2231 = vtanh.pop %v2230
    %v2232 = vmul.f32 %v2231, 0.5
    %v2233 = vadd.f32 %v2232, 0.5
    %v2234 = vtanh.pop %v2224
    %v2235 = vmul.f32 %v2225, 0.5
    %v2236 = vtanh.pop %v2235
    %v2237 = vmul.f32 %v2236, 0.5
    %v2238 = vadd.f32 %v2237, 0.5
    %v2239 = vmul.f32 %v2233, %v2108
    %v2240 = vmul.f32 %v2229, %v2234
    %v2241 = vadd.f32 %v2239, %v2240
    %v2242 = vtanh.pop %v2241
    %v2243 = vmul.f32 %v2238, %v2242
    %v2244 = vpack.c.bf16 %v2243, %v2243
    %v2246 = vrot.slane %v2244, 4
    %2248 = vst [vmem:[#allocation3 + $0x8] sm:$0xf0] %v2246
    %s2249 = smul.u32 4, 16
    %s2250 = smul.u32 %s2249, 3
    %s2251 = sshll.u32 %s2250, 4
    %2252 = dma.done [#allocation5], %s2251
    %v2253 = vld [vmem:[#allocation3] sm:$0xff]
    %v2254 = vld [vmem:[#allocation3 + $0x8] sm:$0xff]
    %v2255 = vld [vmem:[#allocation4] sm:$0xff]
    %v2256 = vld [vmem:[#allocation4 + $0x8] sm:$0xff]
    %v2257 = vld [vmem:[#allocation4 + $0x10] sm:$0xff]
    %v2258 = vld [vmem:[#allocation4 + $0x18] sm:$0xff]
    %v2259 = vld [vmem:[#allocation4 + $0x20] sm:$0xff]
    %v2260 = vld [vmem:[#allocation4 + $0x28] sm:$0xff]
    %v2261 = vld [vmem:[#allocation4 + $0x30] sm:$0xff]
    %v2262 = vld [vmem:[#allocation4 + $0x38] sm:$0xff]
    %v2263 = vld [vmem:[#allocation4 + $0x40] sm:$0xff]
    %v2264 = vld [vmem:[#allocation4 + $0x48] sm:$0xff]
    %v2265 = vld [vmem:[#allocation4 + $0x50] sm:$0xff]
    %v2266 = vld [vmem:[#allocation4 + $0x58] sm:$0xff]
    %v2267 = vld [vmem:[#allocation4 + $0x60] sm:$0xff]
    %v2268 = vld [vmem:[#allocation4 + $0x68] sm:$0xff]
    %v2269 = vld [vmem:[#allocation4 + $0x70] sm:$0xff]
    %v2270 = vld [vmem:[#allocation4 + $0x78] sm:$0xff]
    %v2271 = vld [vmem:[#allocation4 + $0x80] sm:$0xff]
    %v2272 = vld [vmem:[#allocation4 + $0x88] sm:$0xff]
    %v2273 = vld [vmem:[#allocation4 + $0x90] sm:$0xff]
    %v2274 = vld [vmem:[#allocation4 + $0x98] sm:$0xff]
    %v2275 = vld [vmem:[#allocation4 + $0xa0] sm:$0xff]
    %v2276 = vld [vmem:[#allocation4 + $0xa8] sm:$0xff]
    %v2277 = vld [vmem:[#allocation4 + $0xb0] sm:$0xff]
    %v2278 = vld [vmem:[#allocation4 + $0xb8] sm:$0xff]
    %v2279 = vld [vmem:[#allocation14] sm:$0x7]
    %v2281 = vlaneseq
    %v2282 = vshrl.u32 %v2281, 7
    %v2283 = vsub.s32 0, %v2282
    %v2284 = vrot.slane %v2279, %v2283
    %v2285 = vlaneseq
    %v2286 = vshrl.u32 %v2285, 7
    %v2287 = vsub.s32 1, %v2286
    %v2288 = vrot.slane %v2279, %v2287
    %v2289 = vlaneseq
    %v2290 = vshrl.u32 %v2289, 7
    %v2291 = vsub.s32 2, %v2290
    %v2292 = vrot.slane %v2279, %v2291
    %2296 = vmatprep.subr.bf16.mxu0 %v2256
    %2297 = vmatpush1.bf16.msra.mxu0 %v2255
    %2298 = vmatprep.subr.bf16.mxu0 %v2259
    %2299 = vmatpush1.bf16.msra.mxu0 %v2258
    %2300 = vmatprep.subr.bf16.mxu0 %v2262
    %2301 = vmatpush1.bf16.msra.mxu0 %v2261
    %2302 = vmatprep.subr.bf16.mxu0 %v2265
    %2303 = vmatpush1.bf16.msra.mxu0 %v2264
    %2304 = vmatprep.subr.bf16.mxu0 %v2268
    %2305 = vmatpush1.bf16.msra.mxu0 %v2267
    %2306 = vmatprep.subr.bf16.mxu0 %v2271
    %2307 = vmatpush1.bf16.msra.mxu0 %v2270
    %2308 = vmatprep.subr.bf16.mxu0 %v2274
    %2309 = vmatpush1.bf16.msra.mxu0 %v2273
    %2310 = vmatprep.subr.bf16.mxu0 %v2277
    %2311 = vmatpush1.bf16.msra.mxu0 %v2276
    %2312 = vmatprep.subr.bf16.mxu0 0
    %2313 = vmatpush1.bf16.msra.mxu0 0
    %2314 = vmatprep.subr.bf16.mxu0 0
    %2315 = vmatpush1.bf16.msra.mxu0 0
    %2316 = vmatprep.subr.bf16.mxu0 0
    %2317 = vmatpush1.bf16.msra.mxu0 0
    %2318 = vmatprep.subr.bf16.mxu0 0
    %2319 = vmatpush1.bf16.msra.mxu0 0
    %2320 = vmatprep.subr.bf16.mxu0 0
    %2321 = vmatpush1.bf16.msra.mxu0 0
    %2322 = vmatprep.subr.bf16.mxu0 0
    %2323 = vmatpush1.bf16.msra.mxu0 0
    %2324 = vmatprep.subr.bf16.mxu0 0
    %2325 = vmatpush1.bf16.msra.mxu0 0
    %2326 = vmatprep.subr.bf16.mxu0 0
    %2327 = vmatpush1.bf16.msra.mxu0 0
    %2328 = vmatprep.mubr.bf16.mxu0 0
    %2329 = vmatmul.mubr.bf16.gmra.mrb[0].mxu0 %v2253
    %v2330 = vpop.f32.mrb[0].mxu0
    %v2331 = vadd.f32 %v2284, %v2330
    %v2332 = vpop.f32.mrb[0].mxu0
    %v2333 = vadd.f32 %v2288, %v2332
    %v2334 = vpop.f32.mrb[0].mxu0
    %v2335 = vadd.f32 %v2284, %v2334
    %v2336 = vpop.f32.mrb[0].mxu0
    %v2337 = vadd.f32 %v2288, %v2336
    %2338 = vmatprep.mubr.bf16.mxu0 0
    %2339 = vmatmul.mubr.bf16.gmra.mrb[0].mxu0 %v2254
    %v2340 = vpop.f32.mrb[0].mxu0
    %v2341 = vadd.f32 %v2284, %v2340
    %v2342 = vpop.f32.mrb[0].mxu0
    %v2343 = vadd.f32 %v2288, %v2342
    %v2344 = vpop.f32.mrb[0].mxu0
    %v2345 = vadd.f32 %v2284, %v2344
    %v2346 = vpop.f32.mrb[0].mxu0
    %v2347 = vadd.f32 %v2288, %v2346
    %2348 = vdwg.mxu0
    %2349 = vmatprep.subr.bf16.mxu0 0
    %2350 = vmatpush1.bf16.msra.mxu0 %v2257
    %2351 = vmatprep.subr.bf16.mxu0 0
    %2352 = vmatpush1.bf16.msra.mxu0 %v2260
    %2353 = vmatprep.subr.bf16.mxu0 0
    %2354 = vmatpush1.bf16.msra.mxu0 %v2263
    %2355 = vmatprep.subr.bf16.mxu0 0
    %2356 = vmatpush1.bf16.msra.mxu0 %v2266
    %2357 = vmatprep.subr.bf16.mxu0 0
    %2358 = vmatpush1.bf16.msra.mxu0 %v2269
    %2359 = vmatprep.subr.bf16.mxu0 0
    %2360 = vmatpush1.bf16.msra.mxu0 %v2272
    %2361 = vmatprep.subr.bf16.mxu0 0
    %2362 = vmatpush1.bf16.msra.mxu0 %v2275
    %2363 = vmatprep.subr.bf16.mxu0 0
    %2364 = vmatpush1.bf16.msra.mxu0 %v2278
    %2365 = vmatprep.subr.bf16.mxu0 0
    %2366 = vmatpush1.bf16.msra.mxu0 0
    %2367 = vmatprep.subr.bf16.mxu0 0
    %2368 = vmatpush1.bf16.msra.mxu0 0
    %2369 = vmatprep.subr.bf16.mxu0 0
    %2370 = vmatpush1.bf16.msra.mxu0 0
    %2371 = vmatprep.subr.bf16.mxu0 0
    %2372 = vmatpush1.bf16.msra.mxu0 0
    %2373 = vmatprep.subr.bf16.mxu0 0
    %2374 = vmatpush1.bf16.msra.mxu0 0
    %2375 = vmatprep.subr.bf16.mxu0 0
    %2376 = vmatpush1.bf16.msra.mxu0 0
    %2377 = vmatprep.subr.bf16.mxu0 0
    %2378 = vmatpush1.bf16.msra.mxu0 0
    %2379 = vmatprep.subr.bf16.mxu0 0
    %2380 = vmatpush1.bf16.msra.mxu0 0
    %2381 = vmatprep.mubr.bf16.mxu0 0
    %2382 = vmatmul.mubr.bf16.gmra.mrb[0].mxu0 %v2253
    %v2383 = vpop.f32.mrb[0].mxu0
    %v2384 = vadd.f32 %v2292, %v2383
    %v2385 = vpop.f32.mrb[0].mxu0
    %v2386 = vpop.f32.mrb[0].mxu0
    %v2387 = vadd.f32 %v2292, %v2386
    %v2388 = vpop.f32.mrb[0].mxu0
    %2389 = vmatprep.mubr.bf16.mxu0 0
    %2390 = vmatmul.mubr.bf16.gmra.mrb[0].mxu0 %v2254
    %v2391 = vpop.f32.mrb[0].mxu0
    %v2392 = vadd.f32 %v2292, %v2391
    %v2393 = vpop.f32.mrb[0].mxu0
    %v2394 = vpop.f32.mrb[0].mxu0
    %v2395 = vadd.f32 %v2292, %v2394
    %v2396 = vpop.f32.mrb[0].mxu0
    %2397 = vdwg.mxu0
    %2398 = vst [vmem:[%s9] sm:$0xff] %v2331
    %2399 = vst [vmem:[%s9 + $0x18] sm:$0xff] %v2335
    %2400 = vst [vmem:[%s9 + $0x30] sm:$0xff] %v2341
    %2401 = vst [vmem:[%s9 + $0x48] sm:$0xff] %v2345
    %v2402 = vlaneseq
    %v2403 = vand.u32 %v2402, 127
    %v2404 = vadd.s32 %v2403, 128
    %vm2405 = vcmp.ge.s32.totalorder %v2404, 160
    %v2406 = vsel %vm2405, %v2333, 0.0
    %v2407 = vsel %vm2405, %v2337, 0.0
    %v2408 = vsel %vm2405, %v2343, 0.0
    %v2409 = vsel %vm2405, %v2347, 0.0
    %v2410 = vmul.f32 %v2406, 1.442695
    %v2411 = vpow.pop %v2410
    %v2412 = vmul.f32 %v2407, 1.442695
    %v2413 = vpow.pop %v2412
    %v2414 = vmul.f32 %v2408, 1.442695
    %v2415 = vpow.pop %v2414
    %v2416 = vmul.f32 %v2409, 1.442695
    %v2417 = vpow.pop %v2416
    %v2418 = vsel %vm2405, %v2411, %v2333
    %v2419 = vsel %vm2405, %v2413, %v2337
    %v2420 = vsel %vm2405, %v2415, %v2343
    %v2421 = vsel %vm2405, %v2417, %v2347
    %2422 = vst [vmem:[%s9 + $0x8] sm:$0xff] %v2418
    %2423 = vst [vmem:[%s9 + $0x20] sm:$0xff] %v2419
    %2424 = vst [vmem:[%s9 + $0x38] sm:$0xff] %v2420
    %2425 = vst [vmem:[%s9 + $0x50] sm:$0xff] %v2421
    %v2426 = vadd.s32 %v2403, 256
    %vm2427 = vcmp.lt.s32.totalorder %v2426, 320
    %vm2428 = vcmp.ge.s32.totalorder %v2426, 320
    %vm2429 = vcmp.lt.s32.totalorder %v2426, 325
    %vm2430 = vmand %vm2428, %vm2429
    %v2431 = vsel %vm2430, %v2384, -1e+30
    %v2432 = vsel %vm2430, %v2387, -1e+30
    %v2433 = vsel %vm2430, %v2392, -1e+30
    %v2434 = vsel %vm2430, %v2395, -1e+30
    %2435 = vmax.xlane.f32.xlu0 %v2431
    %v2436 = vpop.xlane.xlu0 %2435
    %2437 = vmax.xlane.f32.xlu0 %v2432
    %v2438 = vpop.xlane.xlu0 %2437
    %2439 = vmax.xlane.f32.xlu0 %v2433
    %v2440 = vpop.xlane.xlu0 %2439
    %2441 = vmax.xlane.f32.xlu0 %v2434
    %v2442 = vpop.xlane.xlu0 %2441
    %v2443 = vsub.f32 %v2431, %v2436
    %v2444 = vsub.f32 %v2432, %v2438
    %v2445 = vsub.f32 %v2433, %v2440
    %v2446 = vsub.f32 %v2434, %v2442
    %v2447 = vmul.f32 %v2443, 1.442695
    %v2448 = vpow.pop %v2447
    %v2449 = vmul.f32 %v2444, 1.442695
    %v2450 = vpow.pop %v2449
    %v2451 = vmul.f32 %v2445, 1.442695
    %v2452 = vpow.pop %v2451
    %v2453 = vmul.f32 %v2446, 1.442695
    %v2454 = vpow.pop %v2453
    %2455 = vadd.xlane.f32.xlu0 %v2448
    %v2456 = vpop.xlane.xlu0 %2455
    %2457 = vadd.xlane.f32.xlu0 %v2450
    %v2458 = vpop.xlane.xlu0 %2457
    %2459 = vadd.xlane.f32.xlu0 %v2452
    %v2460 = vpop.xlane.xlu0 %2459
    %2461 = vadd.xlane.f32.xlu0 %v2454
    %v2462 = vpop.xlane.xlu0 %2461
    %v2463 = vlog2.pop %v2456
    %v2464 = vmul.f32 %v2463, 0.6931472
    %v2465 = vlog2.pop %v2458
    %v2466 = vmul.f32 %v2465, 0.6931472
    %v2467 = vlog2.pop %v2460
    %v2468 = vmul.f32 %v2467, 0.6931472
    %v2469 = vlog2.pop %v2462
    %v2470 = vmul.f32 %v2469, 0.6931472
    %v2471 = vadd.f32 %v2436, %v2464
    %v2472 = vadd.f32 %v2438, %v2466
    %v2473 = vadd.f32 %v2440, %v2468
    %v2474 = vadd.f32 %v2442, %v2470
    %v2475 = vsel %vm2427, %v2384, 0.0
    %v2476 = vsel %vm2427, %v2387, 0.0
    %v2477 = vsel %vm2427, %v2392, 0.0
    %v2478 = vsel %vm2427, %v2395, 0.0
    %v2479 = vmul.f32 %v2475, 1.442695
    %v2480 = vpow.pop %v2479
    %v2481 = vmul.f32 %v2476, 1.442695
    %v2482 = vpow.pop %v2481
    %v2483 = vmul.f32 %v2477, 1.442695
    %v2484 = vpow.pop %v2483
    %v2485 = vmul.f32 %v2478, 1.442695
    %v2486 = vpow.pop %v2485
    %v2487 = vsub.f32 %v2384, %v2471
    %v2488 = vsub.f32 %v2387, %v2472
    %v2489 = vsub.f32 %v2392, %v2473
    %v2490 = vsub.f32 %v2395, %v2474
    %v2491 = vsel %vm2427, %v2480, %v2384
    %v2492 = vsel %vm2427, %v2482, %v2387
    %v2493 = vsel %vm2427, %v2484, %v2392
    %v2494 = vsel %vm2427, %v2486, %v2395
    %v2495 = vsel %vm2430, %v2487, %v2491
    %v2496 = vsel %vm2430, %v2488, %v2492
    %v2497 = vsel %vm2430, %v2489, %v2493
    %v2498 = vsel %vm2430, %v2490, %v2494
    %2499 = vst [vmem:[%s9 + $0x10] sm:$0xff] %v2495
    %2500 = vst [vmem:[%s9 + $0x28] sm:$0xff] %v2496
    %2501 = vst [vmem:[%s9 + $0x40] sm:$0xff] %v2497
    %2502 = vst [vmem:[%s9 + $0x58] sm:$0xff] %v2498
    // Predicated region
    $region95: #{mdlstm_forward.1} parent=1 // pred_check
      _
    $region96: #{mdlstm_forward.1} parent=1 // pred_check_branch
      %2504 = sbr.rel (0) target = $region98
    $region97: #{mdlstm_forward.1} parent=1 // pred_region
      _
    $region98: #{mdlstm_forward.1} parent=1 // pred_fallthru
      _
    // Predicated region
    $region99: #{mdlstm_forward.1} parent=1 // pred_check
      _
    $region100: #{mdlstm_forward.1} parent=1 // pred_check_branch
      %2506 = sbr.rel (0) target = $region102
    $region101: #{mdlstm_forward.1} parent=1 // pred_region
      _
    $region102: #{mdlstm_forward.1} parent=1 // pred_fallthru
      _
    %2507 = vsyncpa [#allocation7], 1
    %2508 = vsyncpa [#allocation9], 1
    %2509 = vsyncpa [#allocation12], 1
    %2510 = vsyncpa [#allocation15], 1
  %2511 = vsyncmov [#allocation5]
  %s2512 = vpop.sfrf %2511
  %p2513 = scmp.eq.s32.totalorder %s2512, 0
  %p2514 = pneg %p2513
  %2516 = shalt.err (%p2514)

</llo_original>
